<compile_context>
chip_gen: v6e
topology: v6e:2x2x1
jax: 0.10.0
libtpu: 0.0.40
codegen_flags: <defaults>
</compile_context>

<pallas_src>
import jax
import jax.numpy as jnp
from jax import lax
from jax.experimental import pallas as pl
from jax.experimental.pallas import tpu as pltpu


def _upmask_kernel(x_ref, w1_ref, b1_ref, w2t_ref, b2t_ref, out_ref,
                   xpad, patches):
    # x_ref   : (1, H, W, Cin)   bf16  full image (re-fetched only when batch changes)
    # w1_ref  : (9*Cin, C2)      bf16  3x3 conv weight, im2col order (dy, dx, cin)
    # b1_ref  : (1, C2)          f32
    # w2t_ref : (Cout, C2)       bf16  1x1 conv weight, transposed, 0.25 folded in
    # b2t_ref : (Cout, 1)        f32   0.25 folded in
    # out_ref : (1, Cout, Ht*W)  f32   channel-major output slab for this row tile
    # xpad    : (H+2, W+2, Cin)  bf16  zero-padded image, persistent across row tiles
    # patches : (Ht*W, 9*Cin)    bf16  im2col slab for this row tile
    _, H, W, Cin = x_ref.shape
    Hp, Wp = H + 2, W + 2
    M = out_ref.shape[2]
    Ht = M // W
    rt = pl.program_id(1)

    # Refresh the padded image once per image (rt == 0).  Only the halo ring is
    # zeroed; the interior is fully overwritten, so no full-scratch zero per step.
    @pl.when(rt == 0)
    def _fill_padded_image():
        xpad[0:1, :, :] = jnp.zeros((1, Wp, Cin), xpad.dtype)
        xpad[Hp - 1:Hp, :, :] = jnp.zeros((1, Wp, Cin), xpad.dtype)
        xpad[:, 0:1, :] = jnp.zeros((Hp, 1, Cin), xpad.dtype)
        xpad[:, Wp - 1:Wp, :] = jnp.zeros((Hp, 1, Cin), xpad.dtype)
        xpad[1:H + 1, 1:W + 1, :] = x_ref[0]

    # im2col for this row tile: write the 9 shifted windows directly into the
    # (M, 9*Cin) scratch.  Column order (dy, dx, cin) matches w1_ref's rows.
    y0 = rt * Ht
    for k in range(9):
        dy, dx = k // 3, k % 3
        win = xpad[pl.ds(y0 + dy, Ht), dx:dx + W, :]           # (Ht, W, Cin)
        patches[:, k * Cin:(k + 1) * Cin] = win.reshape(M, Cin)

    # Conv3x3 as a single tall MXU matmul (K = 9*Cin), bias + ReLU.
    hidden = jnp.dot(patches[...], w1_ref[...],
                     preferred_element_type=jnp.float32)        # (M, C2) f32
    hidden = jnp.maximum(hidden + b1_ref[...], 0.0).astype(jnp.bfloat16)

    # Conv1x1 as an NT matmul producing the channel-major slab (Cout, M); this
    # replaces the wrapper-side NHWC->NCHW transpose over the largest tensor.
    out_t = lax.dot_general(
        w2t_ref[...], hidden,
        dimension_numbers=(((1,), (1,)), ((), ())),
        preferred_element_type=jnp.float32)                     # (Cout, M)
    # TODO(synk): emit bf16 here if the downstream consumer tolerates it
    # (halves HBM store traffic for the 144/576-channel mask).
    out_ref[0] = (out_t + b2t_ref[...]).astype(out_ref.dtype)


def _pick_row_tile(H, W, target_rows=512):
    """Row-tile height: divides H, keeps the output block 128-lane aligned,
    targets ~target_rows matmul rows per step, prefers >=2 tiles per image."""
    divs = [d for d in range(1, H + 1) if H % d == 0]
    aligned = [d for d in divs if (d * W) % 128 == 0]
    cands = aligned if aligned else [H]            # full extent is always legal
    fits = [d for d in cands if d * W <= target_rows]
    ht = max(fits) if fits else min(cands)
    if ht == H:                                     # try to get >=2 row tiles
        smaller = [d for d in cands if d < H]
        if smaller:
            sf = [d for d in smaller if d * W <= target_rows]
            ht = max(sf) if sf else max(smaller)
    return ht


def _round_up(x, m):
    return (x + m - 1) // m * m


def _vmem_limit_bytes(H, W, Cin, C2, Cout, Ht):
    """Tile-padded VMEM estimate; clamp to [32 MiB default, 64 MiB v7x physical]."""
    M = Ht * W

    def padded(shape, itemsize):
        lead = 1
        for d in shape[:-2]:
            lead *= d
        return lead * _round_up(shape[-2], 8) * _round_up(shape[-1], 128) * itemsize

    est = 0
    est += 2 * padded((1, H, W, Cin), 2)            # x block (bf16), double-buffered
    est += 2 * padded((1, Cout, M), 4)              # out block (f32), double-buffered
    est += 2 * padded((9 * Cin, C2), 2)             # w1
    est += 2 * padded((1, C2), 4)                   # b1
    est += 2 * padded((Cout, C2), 2)                # w2t
    est += 2 * padded((Cout, 1), 4)                 # b2t
    est += padded((H + 2, W + 2, Cin), 2)           # xpad scratch
    est += padded((M, 9 * Cin), 2)                  # patches scratch
    return min(64 * 1024 * 1024, max(32 * 1024 * 1024, 2 * est))


def upmask_forward(feat_nchw, w1_hwio, b1, w2_io, b2):
    """feat_nchw: (N, Cin, H, W) float32.  Returns (N, Cout, H, W) float32."""
    N, Cin, H, W = feat_nchw.shape
    C2 = w1_hwio.shape[3]
    Cout = w2_io.shape[1]

    Ht = _pick_row_tile(H, W)
    n_rt = H // Ht
    M = Ht * W

    # Input boundary glue: NCHW -> NHWC + bf16 cast (small tensor, one pass).
    # TODO(synk): carry NHWC activations end-to-end in the surrounding model and
    # drop this transpose as well.
    x_nhwc = jnp.transpose(feat_nchw, (0, 2, 3, 1)).astype(jnp.bfloat16)

    # Weight prep (tiny, trace-time): im2col-reshape w1; transpose w2 and fold
    # in the 0.25 output scale (power of two -> exact in bf16).
    w1_mat = w1_hwio.reshape(9 * Cin, C2).astype(jnp.bfloat16)
    b1_2d = b1.reshape(1, C2).astype(jnp.float32)
    w2t_mat = jnp.transpose(0.25 * w2_io).astype(jnp.bfloat16)      # (Cout, C2)
    b2t_2d = (0.25 * b2).reshape(Cout, 1).astype(jnp.float32)

    out_flat = pl.pallas_call(
        _upmask_kernel,
        out_shape=jax.ShapeDtypeStruct((N, Cout, H * W), jnp.float32),
        grid=(N, n_rt),
        in_specs=[
            pl.BlockSpec((1, H, W, Cin), lambda b, r: (b, 0, 0, 0)),
            pl.BlockSpec((9 * Cin, C2), lambda b, r: (0, 0)),
            pl.BlockSpec((1, C2), lambda b, r: (0, 0)),
            pl.BlockSpec((Cout, C2), lambda b, r: (0, 0)),
            pl.BlockSpec((Cout, 1), lambda b, r: (0, 0)),
        ],
        out_specs=pl.BlockSpec((1, Cout, M), lambda b, r: (b, 0, r)),
        scratch_shapes=[
            pltpu.VMEM((H + 2, W + 2, Cin), jnp.bfloat16),   # padded image
            pltpu.VMEM((M, 9 * Cin), jnp.bfloat16),          # im2col slab
        ],
        compiler_params=pltpu.CompilerParams(
            dimension_semantics=("parallel", "arbitrary"),
            vmem_limit_bytes=_vmem_limit_bytes(H, W, Cin, C2, Cout, Ht),
        ),
    )(x_nhwc, w1_mat, b1_2d, w2t_mat, b2t_2d)

    # (N, Cout, H*W) -> (N, Cout, H, W): free metadata reshape, no HBM pass.
    return out_flat.reshape(N, Cout, H, W)


def _reference_forward(feat_nchw, w1_hwio, b1, w2_io, b2):
    """Pure-JAX f32 reference matching the PyTorch forward."""
    x = jnp.transpose(feat_nchw, (0, 2, 3, 1))  # NHWC
    y = lax.conv_general_dilated(
        x, w1_hwio, window_strides=(1, 1), padding="SAME",
        dimension_numbers=("NHWC", "HWIO", "NHWC"))
    y = jax.nn.relu(y + b1[None, None, None, :])
    z = jnp.einsum("nhwc,co->nhwo", y, w2_io) + b2[None, None, None, :]
    z = 0.25 * z
    return jnp.transpose(z, (0, 3, 1, 2))


if __name__ == "__main__":
    # Small, shape-consistent configuration of UpMaskNet(hidden_dim, ratio).
    hidden_dim = 32
    ratio = 4
    C2 = hidden_dim * 2
    Cout = ratio * ratio * 9          # 144
    N, H, W = 2, 16, 16

    key = jax.random.PRNGKey(0)
    k0, k1, k2, k3, k4 = jax.random.split(key, 5)

    feat = jax.random.normal(k0, (N, hidden_dim, H, W), jnp.float32)
    # Deterministic synthetic parameters (shapes match nn.Conv2d in __init__).
    w1 = 0.05 * jax.random.normal(k1, (3, 3, hidden_dim, C2), jnp.float32)   # HWIO
    b1 = 0.05 * jax.random.normal(k2, (C2,), jnp.float32)
    w2 = 0.05 * jax.random.normal(k3, (C2, Cout), jnp.float32)               # (in, out)
    b2 = 0.05 * jax.random.normal(k4, (Cout,), jnp.float32)

    out = jax.jit(upmask_forward)(feat, w1, b1, w2, b2)
    out = jax.block_until_ready(out)

    ref = _reference_forward(feat, w1, b1, w2, b2)
    assert out.shape == (N, Cout, H, W)
    # bf16 matmul operands (f32 accumulation) => looser tolerance than pure f32.
    assert jnp.allclose(out, ref, atol=2e-2, rtol=2e-2), "mismatch vs reference"

    print("KERNEL_OK")
</pallas_src>

<mosaic_0001>
module attributes {stable_mosaic.version = 11 : i64} {
  func.func @_upmask_kernel(%arg0: i32, %arg1: i32, %arg2: memref<1x16x16x32xbf16, #tpu.memory_space<vmem>>, %arg3: memref<288x64xbf16, #tpu.memory_space<vmem>>, %arg4: memref<1x64xf32, #tpu.memory_space<vmem>>, %arg5: memref<144x64xbf16, #tpu.memory_space<vmem>>, %arg6: memref<144x1xf32, #tpu.memory_space<vmem>>, %arg7: memref<1x144x128xf32, #tpu.memory_space<vmem>>, %arg8: memref<18x18x32xbf16, #tpu.memory_space<vmem>>, %arg9: memref<128x288xbf16, #tpu.memory_space<vmem>>) attributes {dimension_semantics = [#tpu.dimension_semantics<parallel>, #tpu.dimension_semantics<arbitrary>], iteration_bounds = array<i64: 2, 2>, scalar_prefetch = 0 : i64, scratch_operands = 2 : i64, tpu.core_type = #tpu.core_type<tc>, window_params = [{transform_indices = @transform_0, window_bounds = array<i64: 1, 16, 16, 32>}, {pipeline_mode = #tpu.pipeline_mode<synchronous>, transform_indices = @transform_1, window_bounds = array<i64: 288, 64>}, {pipeline_mode = #tpu.pipeline_mode<synchronous>, transform_indices = @transform_2, window_bounds = array<i64: 1, 64>}, {pipeline_mode = #tpu.pipeline_mode<synchronous>, transform_indices = @transform_3, window_bounds = array<i64: 144, 64>}, {pipeline_mode = #tpu.pipeline_mode<synchronous>, transform_indices = @transform_4, window_bounds = array<i64: 144, 1>}, {transform_indices = @transform_5, window_bounds = array<i64: 1, 144, 128>}]} {
    %c0_i32 = arith.constant 0 : i32
    %0 = arith.cmpi eq, %arg1, %c0_i32 : i32
    %1 = arith.extui %0 : i1 to i32
    %c0_i32_0 = arith.constant 0 : i32
    %2 = arith.cmpi ne, %1, %c0_i32_0 : i32
    scf.if %2 {
      %cst_48 = arith.constant 0.000000e+00 : bf16
      %66 = vector.broadcast %cst_48 : bf16 to vector<1x18x32xbf16>
      %c0_49 = arith.constant 0 : index
      %c0_50 = arith.constant 0 : index
      %c0_51 = arith.constant 0 : index
      %67 = vector.load %arg8[%c0_49, %c0_50, %c0_51] : memref<18x18x32xbf16, #tpu.memory_space<vmem>>, vector<1x18x32xbf16>
      tpu.vector_store %arg8[%c0_49, %c0_50, %c0_51], %66 {strides = array<i32>} : memref<18x18x32xbf16, #tpu.memory_space<vmem>>, vector<1x18x32xbf16>,
      %cst_52 = arith.constant 0.000000e+00 : bf16
      %68 = vector.broadcast %cst_52 : bf16 to vector<1x18x32xbf16>
      %c17 = arith.constant 17 : index
      %c0_53 = arith.constant 0 : index
      %c0_54 = arith.constant 0 : index
      %69 = vector.load %arg8[%c17, %c0_53, %c0_54] : memref<18x18x32xbf16, #tpu.memory_space<vmem>>, vector<1x18x32xbf16>
      tpu.vector_store %arg8[%c17, %c0_53, %c0_54], %68 {strides = array<i32>} : memref<18x18x32xbf16, #tpu.memory_space<vmem>>, vector<1x18x32xbf16>,
      %cst_55 = arith.constant 0.000000e+00 : bf16
      %70 = vector.broadcast %cst_55 : bf16 to vector<18x1x32xbf16>
      %c0_56 = arith.constant 0 : index
      %c0_57 = arith.constant 0 : index
      %c0_58 = arith.constant 0 : index
      %71 = vector.load %arg8[%c0_56, %c0_57, %c0_58] : memref<18x18x32xbf16, #tpu.memory_space<vmem>>, vector<18x1x32xbf16>
      tpu.vector_store %arg8[%c0_56, %c0_57, %c0_58], %70 {strides = array<i32>} : memref<18x18x32xbf16, #tpu.memory_space<vmem>>, vector<18x1x32xbf16>,
      %cst_59 = arith.constant 0.000000e+00 : bf16
      %72 = vector.broadcast %cst_59 : bf16 to vector<18x1x32xbf16>
      %c0_60 = arith.constant 0 : index
      %c17_61 = arith.constant 17 : index
      %c0_62 = arith.constant 0 : index
      %73 = vector.load %arg8[%c0_60, %c17_61, %c0_62] : memref<18x18x32xbf16, #tpu.memory_space<vmem>>, vector<18x1x32xbf16>
      tpu.vector_store %arg8[%c0_60, %c17_61, %c0_62], %72 {strides = array<i32>} : memref<18x18x32xbf16, #tpu.memory_space<vmem>>, vector<18x1x32xbf16>,
      %c0_63 = arith.constant 0 : index
      %c0_64 = arith.constant 0 : index
      %c0_65 = arith.constant 0 : index
      %c0_66 = arith.constant 0 : index
      %74 = vector.load %arg2[%c0_63, %c0_64, %c0_65, %c0_66] : memref<1x16x16x32xbf16, #tpu.memory_space<vmem>>, vector<1x16x16x32xbf16>
      %75 = vector.shape_cast %74 : vector<1x16x16x32xbf16> to vector<16x16x32xbf16>
      %c1_67 = arith.constant 1 : index
      %c1_68 = arith.constant 1 : index
      %c0_69 = arith.constant 0 : index
      %76 = vector.load %arg8[%c1_67, %c1_68, %c0_69] : memref<18x18x32xbf16, #tpu.memory_space<vmem>>, vector<16x16x32xbf16>
      tpu.vector_store %arg8[%c1_67, %c1_68, %c0_69], %75 {strides = array<i32>} : memref<18x18x32xbf16, #tpu.memory_space<vmem>>, vector<16x16x32xbf16>,
    } else {
    }
    %c8_i32 = arith.constant 8 : i32
    %3 = arith.muli %arg1, %c8_i32 : i32
    %c0_i32_1 = arith.constant 0 : i32
    %4 = arith.addi %3, %c0_i32_1 : i32
    %5 = arith.index_cast %4 : i32 to index
    %c0 = arith.constant 0 : index
    %c0_2 = arith.constant 0 : index
    %6 = vector.load %arg8[%5, %c0, %c0_2] : memref<18x18x32xbf16, #tpu.memory_space<vmem>>, vector<8x16x32xbf16>
    %7 = vector.shape_cast %6 : vector<8x16x32xbf16> to vector<128x32xbf16>
    %c0_3 = arith.constant 0 : index
    %c0_4 = arith.constant 0 : index
    %8 = vector.load %arg9[%c0_3, %c0_4] : memref<128x288xbf16, #tpu.memory_space<vmem>>, vector<128x32xbf16>
    tpu.vector_store %arg9[%c0_3, %c0_4], %7 {strides = array<i32>} : memref<128x288xbf16, #tpu.memory_space<vmem>>, vector<128x32xbf16>,
    %c0_i32_5 = arith.constant 0 : i32
    %9 = arith.addi %3, %c0_i32_5 : i32
    %10 = arith.index_cast %9 : i32 to index
    %c1 = arith.constant 1 : index
    %c0_6 = arith.constant 0 : index
    %11 = vector.load %arg8[%10, %c1, %c0_6] : memref<18x18x32xbf16, #tpu.memory_space<vmem>>, vector<8x16x32xbf16>
    %12 = vector.shape_cast %11 : vector<8x16x32xbf16> to vector<128x32xbf16>
    %c0_7 = arith.constant 0 : index
    %c32 = arith.constant 32 : index
    %13 = vector.load %arg9[%c0_7, %c32] : memref<128x288xbf16, #tpu.memory_space<vmem>>, vector<128x32xbf16>
    tpu.vector_store %arg9[%c0_7, %c32], %12 {strides = array<i32>} : memref<128x288xbf16, #tpu.memory_space<vmem>>, vector<128x32xbf16>,
    %c0_i32_8 = arith.constant 0 : i32
    %14 = arith.addi %3, %c0_i32_8 : i32
    %15 = arith.index_cast %14 : i32 to index
    %c2 = arith.constant 2 : index
    %c0_9 = arith.constant 0 : index
    %16 = vector.load %arg8[%15, %c2, %c0_9] : memref<18x18x32xbf16, #tpu.memory_space<vmem>>, vector<8x16x32xbf16>
    %17 = vector.shape_cast %16 : vector<8x16x32xbf16> to vector<128x32xbf16>
    %c0_10 = arith.constant 0 : index
    %c64 = arith.constant 64 : index
    %18 = vector.load %arg9[%c0_10, %c64] : memref<128x288xbf16, #tpu.memory_space<vmem>>, vector<128x32xbf16>
    tpu.vector_store %arg9[%c0_10, %c64], %17 {strides = array<i32>} : memref<128x288xbf16, #tpu.memory_space<vmem>>, vector<128x32xbf16>,
    %c1_i32 = arith.constant 1 : i32
    %19 = arith.addi %3, %c1_i32 : i32
    %20 = arith.index_cast %19 : i32 to index
    %c0_11 = arith.constant 0 : index
    %c0_12 = arith.constant 0 : index
    %21 = vector.load %arg8[%20, %c0_11, %c0_12] : memref<18x18x32xbf16, #tpu.memory_space<vmem>>, vector<8x16x32xbf16>
    %22 = vector.shape_cast %21 : vector<8x16x32xbf16> to vector<128x32xbf16>
    %c0_13 = arith.constant 0 : index
    %c96 = arith.constant 96 : index
    %23 = vector.load %arg9[%c0_13, %c96] : memref<128x288xbf16, #tpu.memory_space<vmem>>, vector<128x32xbf16>
    tpu.vector_store %arg9[%c0_13, %c96], %22 {strides = array<i32>} : memref<128x288xbf16, #tpu.memory_space<vmem>>, vector<128x32xbf16>,
    %c1_i32_14 = arith.constant 1 : i32
    %24 = arith.addi %3, %c1_i32_14 : i32
    %25 = arith.index_cast %24 : i32 to index
    %c1_15 = arith.constant 1 : index
    %c0_16 = arith.constant 0 : index
    %26 = vector.load %arg8[%25, %c1_15, %c0_16] : memref<18x18x32xbf16, #tpu.memory_space<vmem>>, vector<8x16x32xbf16>
    %27 = vector.shape_cast %26 : vector<8x16x32xbf16> to vector<128x32xbf16>
    %c0_17 = arith.constant 0 : index
    %c128 = arith.constant 128 : index
    %28 = vector.load %arg9[%c0_17, %c128] : memref<128x288xbf16, #tpu.memory_space<vmem>>, vector<128x32xbf16>
    tpu.vector_store %arg9[%c0_17, %c128], %27 {strides = array<i32>} : memref<128x288xbf16, #tpu.memory_space<vmem>>, vector<128x32xbf16>,
    %c1_i32_18 = arith.constant 1 : i32
    %29 = arith.addi %3, %c1_i32_18 : i32
    %30 = arith.index_cast %29 : i32 to index
    %c2_19 = arith.constant 2 : index
    %c0_20 = arith.constant 0 : index
    %31 = vector.load %arg8[%30, %c2_19, %c0_20] : memref<18x18x32xbf16, #tpu.memory_space<vmem>>, vector<8x16x32xbf16>
    %32 = vector.shape_cast %31 : vector<8x16x32xbf16> to vector<128x32xbf16>
    %c0_21 = arith.constant 0 : index
    %c160 = arith.constant 160 : index
    %33 = vector.load %arg9[%c0_21, %c160] : memref<128x288xbf16, #tpu.memory_space<vmem>>, vector<128x32xbf16>
    tpu.vector_store %arg9[%c0_21, %c160], %32 {strides = array<i32>} : memref<128x288xbf16, #tpu.memory_space<vmem>>, vector<128x32xbf16>,
    %c2_i32 = arith.constant 2 : i32
    %34 = arith.addi %3, %c2_i32 : i32
    %35 = arith.index_cast %34 : i32 to index
    %c0_22 = arith.constant 0 : index
    %c0_23 = arith.constant 0 : index
    %36 = vector.load %arg8[%35, %c0_22, %c0_23] : memref<18x18x32xbf16, #tpu.memory_space<vmem>>, vector<8x16x32xbf16>
    %37 = vector.shape_cast %36 : vector<8x16x32xbf16> to vector<128x32xbf16>
    %c0_24 = arith.constant 0 : index
    %c192 = arith.constant 192 : index
    %38 = vector.load %arg9[%c0_24, %c192] : memref<128x288xbf16, #tpu.memory_space<vmem>>, vector<128x32xbf16>
    tpu.vector_store %arg9[%c0_24, %c192], %37 {strides = array<i32>} : memref<128x288xbf16, #tpu.memory_space<vmem>>, vector<128x32xbf16>,
    %c2_i32_25 = arith.constant 2 : i32
    %39 = arith.addi %3, %c2_i32_25 : i32
    %40 = arith.index_cast %39 : i32 to index
    %c1_26 = arith.constant 1 : index
    %c0_27 = arith.constant 0 : index
    %41 = vector.load %arg8[%40, %c1_26, %c0_27] : memref<18x18x32xbf16, #tpu.memory_space<vmem>>, vector<8x16x32xbf16>
    %42 = vector.shape_cast %41 : vector<8x16x32xbf16> to vector<128x32xbf16>
    %c0_28 = arith.constant 0 : index
    %c224 = arith.constant 224 : index
    %43 = vector.load %arg9[%c0_28, %c224] : memref<128x288xbf16, #tpu.memory_space<vmem>>, vector<128x32xbf16>
    tpu.vector_store %arg9[%c0_28, %c224], %42 {strides = array<i32>} : memref<128x288xbf16, #tpu.memory_space<vmem>>, vector<128x32xbf16>,
    %c2_i32_29 = arith.constant 2 : i32
    %44 = arith.addi %3, %c2_i32_29 : i32
    %45 = arith.index_cast %44 : i32 to index
    %c2_30 = arith.constant 2 : index
    %c0_31 = arith.constant 0 : index
    %46 = vector.load %arg8[%45, %c2_30, %c0_31] : memref<18x18x32xbf16, #tpu.memory_space<vmem>>, vector<8x16x32xbf16>
    %47 = vector.shape_cast %46 : vector<8x16x32xbf16> to vector<128x32xbf16>
    %c0_32 = arith.constant 0 : index
    %c256 = arith.constant 256 : index
    %48 = vector.load %arg9[%c0_32, %c256] : memref<128x288xbf16, #tpu.memory_space<vmem>>, vector<128x32xbf16>
    tpu.vector_store %arg9[%c0_32, %c256], %47 {strides = array<i32>} : memref<128x288xbf16, #tpu.memory_space<vmem>>, vector<128x32xbf16>,
    %c0_33 = arith.constant 0 : index
    %c0_34 = arith.constant 0 : index
    %49 = vector.load %arg9[%c0_33, %c0_34] : memref<128x288xbf16, #tpu.memory_space<vmem>>, vector<128x288xbf16>
    %c0_35 = arith.constant 0 : index
    %c0_36 = arith.constant 0 : index
    %50 = vector.load %arg3[%c0_35, %c0_36] : memref<288x64xbf16, #tpu.memory_space<vmem>>, vector<288x64xbf16>
    %cst = arith.constant dense<0.000000e+00> : vector<128x64xf32>
    %51 = tpu.matmul %49, %50, %cst {dimension_numbers = #tpu.dot_dimension_numbers<[1], [0], [0], [1], [0, 0, 1, 1], [], []>} : vector<128x288xbf16>, vector<288x64xbf16>, vector<128x64xf32> -> vector<128x64xf32>
    %c0_37 = arith.constant 0 : index
    %c0_38 = arith.constant 0 : index
    %52 = vector.load %arg4[%c0_37, %c0_38] : memref<1x64xf32, #tpu.memory_space<vmem>>, vector<1x64xf32>
    %53 = vector.broadcast %52 : vector<1x64xf32> to vector<128x64xf32>
    %54 = arith.addf %51, %53 : vector<128x64xf32>
    %cst_39 = arith.constant 0.000000e+00 : f32
    %55 = vector.broadcast %cst_39 : f32 to vector<128x64xf32>
    %56 = arith.maximumf %54, %55 : vector<128x64xf32>
    %57 = arith.truncf %56 : vector<128x64xf32> to vector<128x64xbf16>
    %c0_40 = arith.constant 0 : index
    %c0_41 = arith.constant 0 : index
    %58 = vector.load %arg5[%c0_40, %c0_41] : memref<144x64xbf16, #tpu.memory_space<vmem>>, vector<144x64xbf16>
    %cst_42 = arith.constant dense<0.000000e+00> : vector<144x128xf32>
    %59 = tpu.matmul %58, %57, %cst_42 {dimension_numbers = #tpu.dot_dimension_numbers<[1], [1], [0], [0], [0, 0, 1, 0], [], []>} : vector<144x64xbf16>, vector<128x64xbf16>, vector<144x128xf32> -> vector<144x128xf32>
    %c0_43 = arith.constant 0 : index
    %c0_44 = arith.constant 0 : index
    %60 = vector.load %arg6[%c0_43, %c0_44] : memref<144x1xf32, #tpu.memory_space<vmem>>, vector<144x1xf32>
    %61 = vector.broadcast %60 : vector<144x1xf32> to vector<144x128xf32>
    %62 = arith.addf %59, %61 : vector<144x128xf32>
    %c0_45 = arith.constant 0 : index
    %c0_46 = arith.constant 0 : index
    %c0_47 = arith.constant 0 : index
    %63 = vector.load %arg7[%c0_45, %c0_46, %c0_47] : memref<1x144x128xf32, #tpu.memory_space<vmem>>, vector<1x144x128xf32>
    %64 = vector.shape_cast %63 : vector<1x144x128xf32> to vector<144x128xf32>
    %65 = vector.shape_cast %62 : vector<144x128xf32> to vector<1x144x128xf32>
    tpu.vector_store %arg7[%c0_45, %c0_46, %c0_47], %65 {strides = array<i32>} : memref<1x144x128xf32, #tpu.memory_space<vmem>>, vector<1x144x128xf32>,
    return
  }
  func.func @transform_0(%arg0: i32, %arg1: i32) -> (i32, i32, i32, i32) {
    %c0_i32 = arith.constant 0 : i32
    %c0_i32_0 = arith.constant 0 : i32
    %c0_i32_1 = arith.constant 0 : i32
    %c0_i32_2 = arith.constant 0 : i32
    return %arg0, %c0_i32, %c0_i32_0, %c0_i32_1 : i32, i32, i32, i32
  }
  func.func @transform_1(%arg0: i32, %arg1: i32) -> (i32, i32) {
    %c0_i32 = arith.constant 0 : i32
    %c0_i32_0 = arith.constant 0 : i32
    %c0_i32_1 = arith.constant 0 : i32
    return %c0_i32, %c0_i32_0 : i32, i32
  }
  func.func @transform_2(%arg0: i32, %arg1: i32) -> (i32, i32) {
    %c0_i32 = arith.constant 0 : i32
    %c0_i32_0 = arith.constant 0 : i32
    %c0_i32_1 = arith.constant 0 : i32
    return %c0_i32, %c0_i32_0 : i32, i32
  }
  func.func @transform_3(%arg0: i32, %arg1: i32) -> (i32, i32) {
    %c0_i32 = arith.constant 0 : i32
    %c0_i32_0 = arith.constant 0 : i32
    %c0_i32_1 = arith.constant 0 : i32
    return %c0_i32, %c0_i32_0 : i32, i32
  }
  func.func @transform_4(%arg0: i32, %arg1: i32) -> (i32, i32) {
    %c0_i32 = arith.constant 0 : i32
    %c0_i32_0 = arith.constant 0 : i32
    %c0_i32_1 = arith.constant 0 : i32
    return %c0_i32, %c0_i32_0 : i32, i32
  }
  func.func @transform_5(%arg0: i32, %arg1: i32) -> (i32, i32, i32) {
    %c0_i32 = arith.constant 0 : i32
    %c0_i32_0 = arith.constant 0 : i32
    return %arg0, %c0_i32, %arg1 : i32, i32, i32
  }
}

</mosaic_0001>

<llo_original>
// kernel: upmask_forward.1
$region0: #{upmask_forward.1}
  #allocation0 [shape = 'u32[]', space=smem, size = 0x4, offset = 0x4, fixed_abs, tag = 'smem constant byte address 0x4 - core index']
  #allocation1 [shape = 'u32[144,128]{1,0:T(1,128)}', space=vmem, size = 0x12000, scoped, tag = 'internal scratch']
  #allocation2 [shape = 'bf16[18,18,32]{2,1,0:T(8,128)(2,1)}', space=vmem, size = 0x1b000, scoped, tag = 'scratch operand']
  #allocation3 [shape = 'bf16[128,288]{1,0:T(8,128)(2,1)}', space=vmem, size = 0x18000, scoped, tag = 'scratch operand']
  %s0 = inlined_call_operand.vmem [shape: bf16[2,16,16,32], index: 0, kind: input, shape index: {}]
  %s1 = inlined_call_operand.vmem [shape: bf16[288,64], index: 1, kind: input, shape index: {}]
  %s2 = inlined_call_operand.vmem [shape: f32[1,64], index: 2, kind: input, shape index: {}]
  %s3 = inlined_call_operand.vmem [shape: bf16[144,64], index: 3, kind: input, shape index: {}]
  %s4 = inlined_call_operand.vmem [shape: f32[144,1], index: 4, kind: input, shape index: {}]
  %s5 = inlined_call_operand.vmem [shape: f32[2,144,256], index: 5, kind: output, shape index: {}]
  %s6 = sld [smem:[#allocation0]]
  $region91: #{upmask_forward.1} parent=0
    _
  %s8 = ssub.s32 1, %s6
  %s9 = scalar_select 0, %s8, %s6
  $region1: #{upmask_forward.1} parent=0
    #allocation4 [shape = 'u8[147456]{0}', space=vmem, size = 0x24000, scoped, tag = 'output window, operand 0']
    loop: start=0, step=1, limit=6
    $region2: #{upmask_forward.1} parent=1 // loop_pre_header
      _
    $region3: #{upmask_forward.1} parent=1 // loop_header
      %s11 = sphi 0, %s15
      %p12 = scmp.ge.s32.totalorder %s11, 6
      %s18 = sphi 0, %s30
      %s19 = sphi 0, %s26
      %s20 = sphi 0, %s18
      %s21 = sphi 0, %s19
      %s22 = sphi 0, %s20
      %s23 = sphi 0, %s21
      %s33 = sphi 0, %s35
      %s36 = sphi 0, %s33
      %s37 = sphi 0, %s36
      %s53 = sphi 0, %s37
      %s57 = sphi 0, %s57
      %s59 = sphi 0, %s57
      %s60 = sphi 0, %s59
      %s74 = sphi 0, %s60
      %s78 = sphi 0, %s78
      %s80 = sphi 0, %s78
      %s81 = sphi 0, %s80
      %s95 = sphi 0, %s81
      %s99 = sphi 0, %s99
      %s101 = sphi 0, %s99
      %s102 = sphi 0, %s101
      %s116 = sphi 0, %s102
      %s120 = sphi 0, %s120
      %s122 = sphi 0, %s120
      %s123 = sphi 0, %s122
      %s137 = sphi 0, %s123
      %s145 = sphi 0, %s147
      %s148 = sphi 0, %s145
      %s149 = sphi 0, %s148
      %s165 = sphi 0, %s149
    $region4: #{upmask_forward.1} parent=1 // loop_header_branch
      %14 = sbr.rel (%p12) target = $region8
    $region5: #{upmask_forward.1} parent=1 // loop_body
      %s16 = ssub.s32 %s11, 1
      %s17 = ssub.s32 %s11, 2
      %s24 = sadd.s32 1, %s19
      %p25 = scmp.ge.s32.totalorder %s24, 2
      %s26 = scalar_select %p25, 0, %s24
      %s27 = sadd.s32 1, %s18
      %s28 = scalar_select %p25, %s27, %s18
      %p29 = scmp.ge.s32.totalorder %s28, 2
      %s30 = scalar_select %p29, 0, %s28
      %s31 = ssub.s32 %s18, %s30
      %p32 = scmp.eq.s32.totalorder %s31, 0
      %s34 = sadd.s32 %s33, 1
      %s35 = scalar_select %p32, %s33, %s34
      %p38 = pneg %p32
      %p39 = scmp.eq.s32.totalorder %s11, 3
      %p40 = por %p38, %p39
      %p41 = scmp.ne.s32.totalorder %s33, %s36
      %p42 = scmp.eq.s32.totalorder %s11, 0
      %p43 = por %p41, %p42
      %p44 = scmp.ne.s32.totalorder %s33, %s36
      %p45 = scmp.eq.s32.totalorder %s16, 3
      %p46 = por %p44, %p45
      %p47 = scmp.ne.s32.totalorder %s36, %s37
      %p48 = scmp.eq.s32.totalorder %s16, 0
      %p49 = por %p47, %p48
      %p50 = scmp.ne.s32.totalorder %s36, %s37
      %p51 = scmp.eq.s32.totalorder %s17, 3
      %p52 = por %p50, %p51
      %p54 = scmp.ne.s32.totalorder %s37, %s53
      %p55 = scmp.eq.s32.totalorder %s17, 0
      %p56 = por %p54, %p55
      %s58 = sadd.s32 %s57, 1
      %p61 = scmp.eq.s32.totalorder %s11, 3
      %p62 = scmp.ne.s32.totalorder %s57, %s59
      %p63 = scmp.eq.s32.totalorder %s11, 0
      %p64 = por %p62, %p63
      %p65 = scmp.ne.s32.totalorder %s57, %s59
      %p66 = scmp.eq.s32.totalorder %s16, 3
      %p67 = por %p65, %p66
      %p68 = scmp.ne.s32.totalorder %s59, %s60
      %p69 = scmp.eq.s32.totalorder %s16, 0
      %p70 = por %p68, %p69
      %p71 = scmp.ne.s32.totalorder %s59, %s60
      %p72 = scmp.eq.s32.totalorder %s17, 3
      %p73 = por %p71, %p72
      %p75 = scmp.ne.s32.totalorder %s60, %s74
      %p76 = scmp.eq.s32.totalorder %s17, 0
      %p77 = por %p75, %p76
      %s79 = sadd.s32 %s78, 1
      %p82 = scmp.eq.s32.totalorder %s11, 3
      %p83 = scmp.ne.s32.totalorder %s78, %s80
      %p84 = scmp.eq.s32.totalorder %s11, 0
      %p85 = por %p83, %p84
      %p86 = scmp.ne.s32.totalorder %s78, %s80
      %p87 = scmp.eq.s32.totalorder %s16, 3
      %p88 = por %p86, %p87
      %p89 = scmp.ne.s32.totalorder %s80, %s81
      %p90 = scmp.eq.s32.totalorder %s16, 0
      %p91 = por %p89, %p90
      %p92 = scmp.ne.s32.totalorder %s80, %s81
      %p93 = scmp.eq.s32.totalorder %s17, 3
      %p94 = por %p92, %p93
      %p96 = scmp.ne.s32.totalorder %s81, %s95
      %p97 = scmp.eq.s32.totalorder %s17, 0
      %p98 = por %p96, %p97
      %s100 = sadd.s32 %s99, 1
      %p103 = scmp.eq.s32.totalorder %s11, 3
      %p104 = scmp.ne.s32.totalorder %s99, %s101
      %p105 = scmp.eq.s32.totalorder %s11, 0
      %p106 = por %p104, %p105
      %p107 = scmp.ne.s32.totalorder %s99, %s101
      %p108 = scmp.eq.s32.totalorder %s16, 3
      %p109 = por %p107, %p108
      %p110 = scmp.ne.s32.totalorder %s101, %s102
      %p111 = scmp.eq.s32.totalorder %s16, 0
      %p112 = por %p110, %p111
      %p113 = scmp.ne.s32.totalorder %s101, %s102
      %p114 = scmp.eq.s32.totalorder %s17, 3
      %p115 = por %p113, %p114
      %p117 = scmp.ne.s32.totalorder %s102, %s116
      %p118 = scmp.eq.s32.totalorder %s17, 0
      %p119 = por %p117, %p118
      %s121 = sadd.s32 %s120, 1
      %p124 = scmp.eq.s32.totalorder %s11, 3
      %p125 = scmp.ne.s32.totalorder %s120, %s122
      %p126 = scmp.eq.s32.totalorder %s11, 0
      %p127 = por %p125, %p126
      %p128 = scmp.ne.s32.totalorder %s120, %s122
      %p129 = scmp.eq.s32.totalorder %s16, 3
      %p130 = por %p128, %p129
      %p131 = scmp.ne.s32.totalorder %s122, %s123
      %p132 = scmp.eq.s32.totalorder %s16, 0
      %p133 = por %p131, %p132
      %p134 = scmp.ne.s32.totalorder %s122, %s123
      %p135 = scmp.eq.s32.totalorder %s17, 3
      %p136 = por %p134, %p135
      %p138 = scmp.ne.s32.totalorder %s123, %s137
      %p139 = scmp.eq.s32.totalorder %s17, 0
      %p140 = por %p138, %p139
      %s141 = ssub.s32 %s18, %s30
      %s142 = ssub.s32 %s19, %s26
      %s143 = sor.u32 %s141, %s142
      %p144 = scmp.eq.s32.totalorder %s143, 0
      %s146 = sadd.s32 %s145, 1
      %s147 = scalar_select %p144, %s145, %s146
      %p150 = pneg %p144
      %p151 = scmp.eq.s32.totalorder %s11, 3
      %p152 = por %p150, %p151
      %p153 = scmp.ne.s32.totalorder %s145, %s148
      %p154 = scmp.eq.s32.totalorder %s11, 0
      %p155 = por %p153, %p154
      %p156 = scmp.ne.s32.totalorder %s145, %s148
      %p157 = scmp.eq.s32.totalorder %s16, 3
      %p158 = por %p156, %p157
      %p159 = scmp.ne.s32.totalorder %s148, %s149
      %p160 = scmp.eq.s32.totalorder %s16, 0
      %p161 = por %p159, %p160
      %p162 = scmp.ne.s32.totalorder %s148, %s149
      %p163 = scmp.eq.s32.totalorder %s17, 3
      %p164 = por %p162, %p163
      %p166 = scmp.ne.s32.totalorder %s149, %s165
      %p167 = scmp.eq.s32.totalorder %s17, 0
      %p168 = por %p166, %p167
      %p169 = scmp.le.s32.totalorder 1, %s11
      %p170 = scmp.lt.s32.totalorder %s11, 5
      %p171 = pnand %p169, %p170
      %p172 = pneg %p171
      // Predicated region
      $region9: #{upmask_forward.1} parent=5 // pred_check
        _
      $region10: #{upmask_forward.1} parent=5 // pred_check_branch
        %174 = sbr.rel (%p171) target = $region12
      $region11: #{upmask_forward.1} parent=5 // pred_region
        %s175 = ssub.s32 %s11, 1
        // Predicated region
        $region13: #{upmask_forward.1} parent=11 // pred_check
          %p176 = pneg %p70
        $region14: #{upmask_forward.1} parent=11 // pred_check_branch
          %178 = sbr.rel (%p176) target = $region16
        $region15: #{upmask_forward.1} parent=11 // pred_region
          _
        $region16: #{upmask_forward.1} parent=11 // pred_fallthru
          _
        // Predicated region
        $region17: #{upmask_forward.1} parent=11 // pred_check
          %p179 = pneg %p91
        $region18: #{upmask_forward.1} parent=11 // pred_check_branch
          %181 = sbr.rel (%p179) target = $region20
        $region19: #{upmask_forward.1} parent=11 // pred_region
          _
        $region20: #{upmask_forward.1} parent=11 // pred_fallthru
          _
        // Predicated region
        $region21: #{upmask_forward.1} parent=11 // pred_check
          %p182 = pneg %p112
        $region22: #{upmask_forward.1} parent=11 // pred_check_branch
          %184 = sbr.rel (%p182) target = $region24
        $region23: #{upmask_forward.1} parent=11 // pred_region
          _
        $region24: #{upmask_forward.1} parent=11 // pred_fallthru
          _
        // Predicated region
        $region25: #{upmask_forward.1} parent=11 // pred_check
          %p185 = pneg %p133
        $region26: #{upmask_forward.1} parent=11 // pred_check_branch
          %187 = sbr.rel (%p185) target = $region28
        $region27: #{upmask_forward.1} parent=11 // pred_region
          _
        $region28: #{upmask_forward.1} parent=11 // pred_fallthru
          _
      $region12: #{upmask_forward.1} parent=5 // pred_fallthru
        _
      %p188 = scmp.lt.s32.totalorder %s11, 4
      // Predicated region
      $region29: #{upmask_forward.1} parent=5 // pred_check
        %p189 = pneg %p188
      $region30: #{upmask_forward.1} parent=5 // pred_check_branch
        %191 = sbr.rel (%p189) target = $region32
      $region31: #{upmask_forward.1} parent=5 // pred_region
        // Predicated region
        $region33: #{upmask_forward.1} parent=31 // pred_check
          %p192 = pneg %p43
        $region34: #{upmask_forward.1} parent=31 // pred_check_branch
          %194 = sbr.rel (%p192) target = $region36
        $region35: #{upmask_forward.1} parent=31 // pred_region
          %p195 = scmp.lt.s32.totalorder %s18, 1
          %s196 = scalar_select %p195, %s18, 1
          %s197 = smul.addr %s196, 32
          %s198 = smul.addr %s197, 4
          %s199 = scalar_lea.vmem %s0, %s198
        $region36: #{upmask_forward.1} parent=31 // pred_fallthru
          _
      $region32: #{upmask_forward.1} parent=5 // pred_fallthru
        _
      %p200 = scmp.le.s32.totalorder 1, %s11
      %p201 = scmp.lt.s32.totalorder %s11, 5
      %p202 = pnand %p200, %p201
      %p203 = pneg %p202
      // Predicated region
      $region37: #{upmask_forward.1} parent=5 // pred_check
        _
      $region38: #{upmask_forward.1} parent=5 // pred_check_branch
        %205 = sbr.rel (%p202) target = $region40
      $region39: #{upmask_forward.1} parent=5 // pred_region
        %s206 = ssub.s32 %s11, 1
        %p207 = scmp.lt.s32.totalorder %s20, 1
        %s208 = scalar_select %p207, %s20, 1
        %s209 = smul.addr %s208, 32
        %s210 = smul.addr %s209, 4
        %s211 = scalar_lea.vmem %s0, %s210
        %p212 = pneg %p49
        %p213 = pneg %p46
        %p214 = pneg %p70
        %p215 = pneg %p67
        %p216 = pneg %p91
        %p217 = pneg %p88
        %p218 = pneg %p112
        %p219 = pneg %p109
        %p220 = pneg %p133
        %p221 = pneg %p130
        %p222 = pneg %p161
        %p223 = pneg %p158
        %s224 = sand.u32 %s148, 1
        %s225 = sand.u32 %s148, 1
        %s226 = smul.addr %s225, 144
        %s227 = scalar_lea.vmem [#allocation4], %s226
        %p228 = scmp.lt.s32.totalorder %s20, 1
        %s229 = scalar_select %p228, %s20, 1
        %s230 = smul.addr %s229, 32
        %s231 = smul.addr %s230, 4
        %s232 = scalar_lea.vmem %s0, %s231
        %p234 = scmp.eq.s32.totalorder %s21, 0
        // Predicated region
        $region41: #{upmask_forward.1} parent=39 // pred_check
          %p235 = pneg %p234
        $region42: #{upmask_forward.1} parent=39 // pred_check_branch
          %237 = sbr.rel (%p235) target = $region44
        $region43: #{upmask_forward.1} parent=39 // pred_region
          %vm238 = vcmask 257024
          %239 = vst.msk [vmem:[#allocation2] sm:$0xf] %vm238, 0
          %240 = vst.msk [vmem:[#allocation2 + $0x4] sm:$0xf] %vm238, 0
          %vm241 = vcmask 253952
          %242 = vst.msk [vmem:[#allocation2 + $0x8] sm:$0x1] %vm241, 0
          %s243 = scalar_lea.vmem [#allocation2], 204
          %244 = vst.msk [vmem:[%s243] sm:$0xf] %vm238, 0
          %245 = vst.msk [vmem:[%s243 + $0x4] sm:$0xf] %vm238, 0
          %246 = vst.msk [vmem:[%s243 + $0x8] sm:$0x1] %vm241, 0
          %vm247 = vcmask 253952
          %vm248 = vsmask.f32 256
          %vm249 = vmand %vm247, %vm248
          %v250 = vld [vmem:[#allocation2] sm:$0x1]
          %v251 = vsel %vm249, 0, %v250
          %252 = vst [vmem:[#allocation2] sm:$0x1] %v251
          %v253 = vld [vmem:[#allocation2 + $0xc] sm:$0x1]
          %v254 = vsel %vm249, 0, %v253
          %255 = vst [vmem:[#allocation2 + $0xc] sm:$0x1] %v254
          %v256 = vld [vmem:[#allocation2 + $0x18] sm:$0x1]
          %v257 = vsel %vm249, 0, %v256
          %258 = vst [vmem:[#allocation2 + $0x18] sm:$0x1] %v257
          %v259 = vld [vmem:[#allocation2 + $0x24] sm:$0x1]
          %v260 = vsel %vm249, 0, %v259
          %261 = vst [vmem:[#allocation2 + $0x24] sm:$0x1] %v260
          %v262 = vld [vmem:[#allocation2 + $0x30] sm:$0x1]
          %v263 = vsel %vm249, 0, %v262
          %264 = vst [vmem:[#allocation2 + $0x30] sm:$0x1] %v263
          %v265 = vld [vmem:[#allocation2 + $0x3c] sm:$0x1]
          %v266 = vsel %vm249, 0, %v265
          %267 = vst [vmem:[#allocation2 + $0x3c] sm:$0x1] %v266
          %v268 = vld [vmem:[#allocation2 + $0x48] sm:$0x1]
          %v269 = vsel %vm249, 0, %v268
          %270 = vst [vmem:[#allocation2 + $0x48] sm:$0x1] %v269
          %v271 = vld [vmem:[#allocation2 + $0x54] sm:$0x1]
          %v272 = vsel %vm249, 0, %v271
          %273 = vst [vmem:[#allocation2 + $0x54] sm:$0x1] %v272
          %v274 = vld [vmem:[#allocation2 + $0x60] sm:$0x1]
          %v275 = vsel %vm249, 0, %v274
          %276 = vst [vmem:[#allocation2 + $0x60] sm:$0x1] %v275
          %v277 = vld [vmem:[#allocation2 + $0x6c] sm:$0x1]
          %v278 = vsel %vm249, 0, %v277
          %279 = vst [vmem:[#allocation2 + $0x6c] sm:$0x1] %v278
          %v280 = vld [vmem:[#allocation2 + $0x78] sm:$0x1]
          %v281 = vsel %vm249, 0, %v280
          %282 = vst [vmem:[#allocation2 + $0x78] sm:$0x1] %v281
          %v283 = vld [vmem:[#allocation2 + $0x84] sm:$0x1]
          %v284 = vsel %vm249, 0, %v283
          %285 = vst [vmem:[#allocation2 + $0x84] sm:$0x1] %v284
          %v286 = vld [vmem:[#allocation2 + $0x90] sm:$0x1]
          %v287 = vsel %vm249, 0, %v286
          %288 = vst [vmem:[#allocation2 + $0x90] sm:$0x1] %v287
          %v289 = vld [vmem:[#allocation2 + $0x9c] sm:$0x1]
          %v290 = vsel %vm249, 0, %v289
          %291 = vst [vmem:[#allocation2 + $0x9c] sm:$0x1] %v290
          %v292 = vld [vmem:[#allocation2 + $0xa8] sm:$0x1]
          %v293 = vsel %vm249, 0, %v292
          %294 = vst [vmem:[#allocation2 + $0xa8] sm:$0x1] %v293
          %v295 = vld [vmem:[#allocation2 + $0xb4] sm:$0x1]
          %v296 = vsel %vm249, 0, %v295
          %297 = vst [vmem:[#allocation2 + $0xb4] sm:$0x1] %v296
          %v298 = vld [vmem:[#allocation2 + $0xc0] sm:$0x1]
          %v299 = vsel %vm249, 0, %v298
          %300 = vst [vmem:[#allocation2 + $0xc0] sm:$0x1] %v299
          %v301 = vld [vmem:[#allocation2 + $0xcc] sm:$0x1]
          %v302 = vsel %vm249, 0, %v301
          %303 = vst [vmem:[#allocation2 + $0xcc] sm:$0x1] %v302
          %vm304 = vsmask.f32 7938
          %vm305 = vmand %vm247, %vm304
          %v306 = vld [vmem:[#allocation2 + $0x8] sm:$0x1]
          %v307 = vsel %vm305, 0, %v306
          %308 = vst [vmem:[#allocation2 + $0x8] sm:$0x1] %v307
          %v309 = vld [vmem:[#allocation2 + $0x14] sm:$0x1]
          %v310 = vsel %vm305, 0, %v309
          %311 = vst [vmem:[#allocation2 + $0x14] sm:$0x1] %v310
          %v312 = vld [vmem:[#allocation2 + $0x20] sm:$0x1]
          %v313 = vsel %vm305, 0, %v312
          %314 = vst [vmem:[#allocation2 + $0x20] sm:$0x1] %v313
          %v315 = vld [vmem:[#allocation2 + $0x2c] sm:$0x1]
          %v316 = vsel %vm305, 0, %v315
          %317 = vst [vmem:[#allocation2 + $0x2c] sm:$0x1] %v316
          %v318 = vld [vmem:[#allocation2 + $0x38] sm:$0x1]
          %v319 = vsel %vm305, 0, %v318
          %320 = vst [vmem:[#allocation2 + $0x38] sm:$0x1] %v319
          %v321 = vld [vmem:[#allocation2 + $0x44] sm:$0x1]
          %v322 = vsel %vm305, 0, %v321
          %323 = vst [vmem:[#allocation2 + $0x44] sm:$0x1] %v322
          %v324 = vld [vmem:[#allocation2 + $0x50] sm:$0x1]
          %v325 = vsel %vm305, 0, %v324
          %326 = vst [vmem:[#allocation2 + $0x50] sm:$0x1] %v325
          %v327 = vld [vmem:[#allocation2 + $0x5c] sm:$0x1]
          %v328 = vsel %vm305, 0, %v327
          %329 = vst [vmem:[#allocation2 + $0x5c] sm:$0x1] %v328
          %v330 = vld [vmem:[#allocation2 + $0x68] sm:$0x1]
          %v331 = vsel %vm305, 0, %v330
          %332 = vst [vmem:[#allocation2 + $0x68] sm:$0x1] %v331
          %v333 = vld [vmem:[#allocation2 + $0x74] sm:$0x1]
          %v334 = vsel %vm305, 0, %v333
          %335 = vst [vmem:[#allocation2 + $0x74] sm:$0x1] %v334
          %v336 = vld [vmem:[#allocation2 + $0x80] sm:$0x1]
          %v337 = vsel %vm305, 0, %v336
          %338 = vst [vmem:[#allocation2 + $0x80] sm:$0x1] %v337
          %v339 = vld [vmem:[#allocation2 + $0x8c] sm:$0x1]
          %v340 = vsel %vm305, 0, %v339
          %341 = vst [vmem:[#allocation2 + $0x8c] sm:$0x1] %v340
          %v342 = vld [vmem:[#allocation2 + $0x98] sm:$0x1]
          %v343 = vsel %vm305, 0, %v342
          %344 = vst [vmem:[#allocation2 + $0x98] sm:$0x1] %v343
          %v345 = vld [vmem:[#allocation2 + $0xa4] sm:$0x1]
          %v346 = vsel %vm305, 0, %v345
          %347 = vst [vmem:[#allocation2 + $0xa4] sm:$0x1] %v346
          %v348 = vld [vmem:[#allocation2 + $0xb0] sm:$0x1]
          %v349 = vsel %vm305, 0, %v348
          %350 = vst [vmem:[#allocation2 + $0xb0] sm:$0x1] %v349
          %v351 = vld [vmem:[#allocation2 + $0xbc] sm:$0x1]
          %v352 = vsel %vm305, 0, %v351
          %353 = vst [vmem:[#allocation2 + $0xbc] sm:$0x1] %v352
          %v354 = vld [vmem:[#allocation2 + $0xc8] sm:$0x1]
          %v355 = vsel %vm305, 0, %v354
          %356 = vst [vmem:[#allocation2 + $0xc8] sm:$0x1] %v355
          %v357 = vld [vmem:[#allocation2 + $0xd4] sm:$0x1]
          %v358 = vsel %vm305, 0, %v357
          %359 = vst [vmem:[#allocation2 + $0xd4] sm:$0x1] %v358
          %v360 = vld [vmem:[%s232] sm:$0xf]
          %v361 = vld [vmem:[%s232 + $0x4] sm:$0xf]
          %v362 = vld [vmem:[%s232 + $0x8] sm:$0xf]
          %v363 = vld [vmem:[%s232 + $0xc] sm:$0xf]
          %v364 = vld [vmem:[%s232 + $0x10] sm:$0xf]
          %v365 = vld [vmem:[%s232 + $0x14] sm:$0xf]
          %v366 = vld [vmem:[%s232 + $0x18] sm:$0xf]
          %v367 = vld [vmem:[%s232 + $0x1c] sm:$0xf]
          %v368 = vld [vmem:[%s232 + $0x20] sm:$0xf]
          %v369 = vld [vmem:[%s232 + $0x24] sm:$0xf]
          %v370 = vld [vmem:[%s232 + $0x28] sm:$0xf]
          %v371 = vld [vmem:[%s232 + $0x2c] sm:$0xf]
          %v372 = vld [vmem:[%s232 + $0x30] sm:$0xf]
          %v373 = vld [vmem:[%s232 + $0x34] sm:$0xf]
          %v374 = vld [vmem:[%s232 + $0x38] sm:$0xf]
          %v375 = vld [vmem:[%s232 + $0x3c] sm:$0xf]
          %v376 = vld [vmem:[%s232 + $0x40] sm:$0xf]
          %v377 = vld [vmem:[%s232 + $0x44] sm:$0xf]
          %v378 = vld [vmem:[%s232 + $0x48] sm:$0xf]
          %v379 = vld [vmem:[%s232 + $0x4c] sm:$0xf]
          %v380 = vld [vmem:[%s232 + $0x50] sm:$0xf]
          %v381 = vld [vmem:[%s232 + $0x54] sm:$0xf]
          %v382 = vld [vmem:[%s232 + $0x58] sm:$0xf]
          %v383 = vld [vmem:[%s232 + $0x5c] sm:$0xf]
          %v384 = vld [vmem:[%s232 + $0x60] sm:$0xf]
          %v385 = vld [vmem:[%s232 + $0x64] sm:$0xf]
          %v386 = vld [vmem:[%s232 + $0x68] sm:$0xf]
          %v387 = vld [vmem:[%s232 + $0x6c] sm:$0xf]
          %v388 = vld [vmem:[%s232 + $0x70] sm:$0xf]
          %v389 = vld [vmem:[%s232 + $0x74] sm:$0xf]
          %v390 = vld [vmem:[%s232 + $0x78] sm:$0xf]
          %v391 = vld [vmem:[%s232 + $0x7c] sm:$0xf]
          %vm392 = vsmask.f32 4368
          %vm393 = vmor %vm248, %vm392
          %v395 = vshrl.u32 %v360, 16
          %v397 = vrot.slane %v395, 7
          %v398 = vshll.u32 %v360, 16
          %v400 = vor.u32 %v397, %v398
          %v401 = vrot.slane %v397, 4
          %v403 = vshrl.u32 %v361, 16
          %v405 = vrot.slane %v403, 7
          %v406 = vshll.u32 %v361, 16
          %v408 = vor.u32 %v405, %v406
          %v409 = vsel %vm393, %v401, %v408
          %v410 = vrot.slane %v405, 4
          %v412 = vshrl.u32 %v362, 16
          %v414 = vrot.slane %v412, 7
          %v415 = vshll.u32 %v362, 16
          %v417 = vor.u32 %v414, %v415
          %v418 = vrot.slane %v414, 4
          %v420 = vshrl.u32 %v363, 16
          %v422 = vrot.slane %v420, 7
          %v423 = vshll.u32 %v363, 16
          %v425 = vor.u32 %v422, %v423
          %v426 = vsel %vm393, %v418, %v425
          %v427 = vrot.slane %v422, 4
          %v429 = vshrl.u32 %v364, 16
          %v431 = vrot.slane %v429, 7
          %v432 = vshll.u32 %v364, 16
          %v434 = vor.u32 %v431, %v432
          %v435 = vrot.slane %v431, 4
          %v437 = vshrl.u32 %v365, 16
          %v439 = vrot.slane %v437, 7
          %v440 = vshll.u32 %v365, 16
          %v442 = vor.u32 %v439, %v440
          %v443 = vsel %vm393, %v435, %v442
          %v444 = vrot.slane %v439, 4
          %v446 = vshrl.u32 %v366, 16
          %v448 = vrot.slane %v446, 7
          %v449 = vshll.u32 %v366, 16
          %v451 = vor.u32 %v448, %v449
          %v452 = vrot.slane %v448, 4
          %v454 = vshrl.u32 %v367, 16
          %v456 = vrot.slane %v454, 7
          %v457 = vshll.u32 %v367, 16
          %v459 = vor.u32 %v456, %v457
          %v460 = vsel %vm393, %v452, %v459
          %v461 = vrot.slane %v456, 4
          %v463 = vshrl.u32 %v368, 16
          %v465 = vrot.slane %v463, 7
          %v466 = vshll.u32 %v368, 16
          %v468 = vor.u32 %v465, %v466
          %v469 = vrot.slane %v465, 4
          %v471 = vshrl.u32 %v369, 16
          %v473 = vrot.slane %v471, 7
          %v474 = vshll.u32 %v369, 16
          %v476 = vor.u32 %v473, %v474
          %v477 = vsel %vm393, %v469, %v476
          %v478 = vrot.slane %v473, 4
          %v480 = vshrl.u32 %v370, 16
          %v482 = vrot.slane %v480, 7
          %v483 = vshll.u32 %v370, 16
          %v485 = vor.u32 %v482, %v483
          %v486 = vrot.slane %v482, 4
          %v488 = vshrl.u32 %v371, 16
          %v490 = vrot.slane %v488, 7
          %v491 = vshll.u32 %v371, 16
          %v493 = vor.u32 %v490, %v491
          %v494 = vsel %vm393, %v486, %v493
          %v495 = vrot.slane %v490, 4
          %v497 = vshrl.u32 %v372, 16
          %v499 = vrot.slane %v497, 7
          %v500 = vshll.u32 %v372, 16
          %v502 = vor.u32 %v499, %v500
          %v503 = vrot.slane %v499, 4
          %v505 = vshrl.u32 %v373, 16
          %v507 = vrot.slane %v505, 7
          %v508 = vshll.u32 %v373, 16
          %v510 = vor.u32 %v507, %v508
          %v511 = vsel %vm393, %v503, %v510
          %v512 = vrot.slane %v507, 4
          %v514 = vshrl.u32 %v374, 16
          %v516 = vrot.slane %v514, 7
          %v517 = vshll.u32 %v374, 16
          %v519 = vor.u32 %v516, %v517
          %v520 = vrot.slane %v516, 4
          %v522 = vshrl.u32 %v375, 16
          %v524 = vrot.slane %v522, 7
          %v525 = vshll.u32 %v375, 16
          %v527 = vor.u32 %v524, %v525
          %v528 = vsel %vm393, %v520, %v527
          %v529 = vrot.slane %v524, 4
          %v531 = vshrl.u32 %v376, 16
          %v533 = vrot.slane %v531, 7
          %v534 = vshll.u32 %v376, 16
          %v536 = vor.u32 %v533, %v534
          %v537 = vrot.slane %v533, 4
          %v539 = vshrl.u32 %v377, 16
          %v541 = vrot.slane %v539, 7
          %v542 = vshll.u32 %v377, 16
          %v544 = vor.u32 %v541, %v542
          %v545 = vsel %vm393, %v537, %v544
          %v546 = vrot.slane %v541, 4
          %v548 = vshrl.u32 %v378, 16
          %v550 = vrot.slane %v548, 7
          %v551 = vshll.u32 %v378, 16
          %v553 = vor.u32 %v550, %v551
          %v554 = vrot.slane %v550, 4
          %v556 = vshrl.u32 %v379, 16
          %v558 = vrot.slane %v556, 7
          %v559 = vshll.u32 %v379, 16
          %v561 = vor.u32 %v558, %v559
          %v562 = vsel %vm393, %v554, %v561
          %v563 = vrot.slane %v558, 4
          %v565 = vshrl.u32 %v380, 16
          %v567 = vrot.slane %v565, 7
          %v568 = vshll.u32 %v380, 16
          %v570 = vor.u32 %v567, %v568
          %v571 = vrot.slane %v567, 4
          %v573 = vshrl.u32 %v381, 16
          %v575 = vrot.slane %v573, 7
          %v576 = vshll.u32 %v381, 16
          %v578 = vor.u32 %v575, %v576
          %v579 = vsel %vm393, %v571, %v578
          %v580 = vrot.slane %v575, 4
          %v582 = vshrl.u32 %v382, 16
          %v584 = vrot.slane %v582, 7
          %v585 = vshll.u32 %v382, 16
          %v587 = vor.u32 %v584, %v585
          %v588 = vrot.slane %v584, 4
          %v590 = vshrl.u32 %v383, 16
          %v592 = vrot.slane %v590, 7
          %v593 = vshll.u32 %v383, 16
          %v595 = vor.u32 %v592, %v593
          %v596 = vsel %vm393, %v588, %v595
          %v597 = vrot.slane %v592, 4
          %v599 = vshrl.u32 %v384, 16
          %v601 = vrot.slane %v599, 7
          %v602 = vshll.u32 %v384, 16
          %v604 = vor.u32 %v601, %v602
          %v605 = vrot.slane %v601, 4
          %v607 = vshrl.u32 %v385, 16
          %v609 = vrot.slane %v607, 7
          %v610 = vshll.u32 %v385, 16
          %v612 = vor.u32 %v609, %v610
          %v613 = vsel %vm393, %v605, %v612
          %v614 = vrot.slane %v609, 4
          %v616 = vshrl.u32 %v386, 16
          %v618 = vrot.slane %v616, 7
          %v619 = vshll.u32 %v386, 16
          %v621 = vor.u32 %v618, %v619
          %v622 = vrot.slane %v618, 4
          %v624 = vshrl.u32 %v387, 16
          %v626 = vrot.slane %v624, 7
          %v627 = vshll.u32 %v387, 16
          %v629 = vor.u32 %v626, %v627
          %v630 = vsel %vm393, %v622, %v629
          %v631 = vrot.slane %v626, 4
          %v633 = vshrl.u32 %v388, 16
          %v635 = vrot.slane %v633, 7
          %v636 = vshll.u32 %v388, 16
          %v638 = vor.u32 %v635, %v636
          %v639 = vrot.slane %v635, 4
          %v641 = vshrl.u32 %v389, 16
          %v643 = vrot.slane %v641, 7
          %v644 = vshll.u32 %v389, 16
          %v646 = vor.u32 %v643, %v644
          %v647 = vsel %vm393, %v639, %v646
          %v648 = vrot.slane %v643, 4
          %v650 = vshrl.u32 %v390, 16
          %v652 = vrot.slane %v650, 7
          %v653 = vshll.u32 %v390, 16
          %v655 = vor.u32 %v652, %v653
          %v656 = vrot.slane %v652, 4
          %v658 = vshrl.u32 %v391, 16
          %v660 = vrot.slane %v658, 7
          %v661 = vshll.u32 %v391, 16
          %v663 = vor.u32 %v660, %v661
          %v664 = vsel %vm393, %v656, %v663
          %v665 = vrot.slane %v660, 4
          %s714 = scalar_lea.vmem [#allocation2], 12
          %vm715 = vcmask 257024
          %vm716 = vmand %vm715, %vm304
          %v717 = vld [vmem:[%s714] sm:$0xf]
          %v718 = vsel %vm716, %v400, %v717
          %719 = vst [vmem:[%s714] sm:$0xf] %v718
          %720 = vst.msk [vmem:[%s714 + $0x4] sm:$0xf] %vm238, %v409
          %v721 = vld [vmem:[%s714 + $0x8] sm:$0x1]
          %v722 = vsel %vm249, %v410, %v721
          %723 = vst [vmem:[%s714 + $0x8] sm:$0x1] %v722
          %v724 = vld [vmem:[%s714 + $0xc] sm:$0xf]
          %v725 = vsel %vm716, %v417, %v724
          %726 = vst [vmem:[%s714 + $0xc] sm:$0xf] %v725
          %727 = vst.msk [vmem:[%s714 + $0x10] sm:$0xf] %vm238, %v426
          %v728 = vld [vmem:[%s714 + $0x14] sm:$0x1]
          %v729 = vsel %vm249, %v427, %v728
          %730 = vst [vmem:[%s714 + $0x14] sm:$0x1] %v729
          %v731 = vld [vmem:[%s714 + $0x18] sm:$0xf]
          %v732 = vsel %vm716, %v434, %v731
          %733 = vst [vmem:[%s714 + $0x18] sm:$0xf] %v732
          %734 = vst.msk [vmem:[%s714 + $0x1c] sm:$0xf] %vm238, %v443
          %v735 = vld [vmem:[%s714 + $0x20] sm:$0x1]
          %v736 = vsel %vm249, %v444, %v735
          %737 = vst [vmem:[%s714 + $0x20] sm:$0x1] %v736
          %v738 = vld [vmem:[%s714 + $0x24] sm:$0xf]
          %v739 = vsel %vm716, %v451, %v738
          %740 = vst [vmem:[%s714 + $0x24] sm:$0xf] %v739
          %741 = vst.msk [vmem:[%s714 + $0x28] sm:$0xf] %vm238, %v460
          %v742 = vld [vmem:[%s714 + $0x2c] sm:$0x1]
          %v743 = vsel %vm249, %v461, %v742
          %744 = vst [vmem:[%s714 + $0x2c] sm:$0x1] %v743
          %v745 = vld [vmem:[%s714 + $0x30] sm:$0xf]
          %v746 = vsel %vm716, %v468, %v745
          %747 = vst [vmem:[%s714 + $0x30] sm:$0xf] %v746
          %748 = vst.msk [vmem:[%s714 + $0x34] sm:$0xf] %vm238, %v477
          %v749 = vld [vmem:[%s714 + $0x38] sm:$0x1]
          %v750 = vsel %vm249, %v478, %v749
          %751 = vst [vmem:[%s714 + $0x38] sm:$0x1] %v750
          %v752 = vld [vmem:[%s714 + $0x3c] sm:$0xf]
          %v753 = vsel %vm716, %v485, %v752
          %754 = vst [vmem:[%s714 + $0x3c] sm:$0xf] %v753
          %755 = vst.msk [vmem:[%s714 + $0x40] sm:$0xf] %vm238, %v494
          %v756 = vld [vmem:[%s714 + $0x44] sm:$0x1]
          %v757 = vsel %vm249, %v495, %v756
          %758 = vst [vmem:[%s714 + $0x44] sm:$0x1] %v757
          %v759 = vld [vmem:[%s714 + $0x48] sm:$0xf]
          %v760 = vsel %vm716, %v502, %v759
          %761 = vst [vmem:[%s714 + $0x48] sm:$0xf] %v760
          %762 = vst.msk [vmem:[%s714 + $0x4c] sm:$0xf] %vm238, %v511
          %v763 = vld [vmem:[%s714 + $0x50] sm:$0x1]
          %v764 = vsel %vm249, %v512, %v763
          %765 = vst [vmem:[%s714 + $0x50] sm:$0x1] %v764
          %v766 = vld [vmem:[%s714 + $0x54] sm:$0xf]
          %v767 = vsel %vm716, %v519, %v766
          %768 = vst [vmem:[%s714 + $0x54] sm:$0xf] %v767
          %769 = vst.msk [vmem:[%s714 + $0x58] sm:$0xf] %vm238, %v528
          %v770 = vld [vmem:[%s714 + $0x5c] sm:$0x1]
          %v771 = vsel %vm249, %v529, %v770
          %772 = vst [vmem:[%s714 + $0x5c] sm:$0x1] %v771
          %v773 = vld [vmem:[%s714 + $0x60] sm:$0xf]
          %v774 = vsel %vm716, %v536, %v773
          %775 = vst [vmem:[%s714 + $0x60] sm:$0xf] %v774
          %776 = vst.msk [vmem:[%s714 + $0x64] sm:$0xf] %vm238, %v545
          %v777 = vld [vmem:[%s714 + $0x68] sm:$0x1]
          %v778 = vsel %vm249, %v546, %v777
          %779 = vst [vmem:[%s714 + $0x68] sm:$0x1] %v778
          %v780 = vld [vmem:[%s714 + $0x6c] sm:$0xf]
          %v781 = vsel %vm716, %v553, %v780
          %782 = vst [vmem:[%s714 + $0x6c] sm:$0xf] %v781
          %783 = vst.msk [vmem:[%s714 + $0x70] sm:$0xf] %vm238, %v562
          %v784 = vld [vmem:[%s714 + $0x74] sm:$0x1]
          %v785 = vsel %vm249, %v563, %v784
          %786 = vst [vmem:[%s714 + $0x74] sm:$0x1] %v785
          %v787 = vld [vmem:[%s714 + $0x78] sm:$0xf]
          %v788 = vsel %vm716, %v570, %v787
          %789 = vst [vmem:[%s714 + $0x78] sm:$0xf] %v788
          %790 = vst.msk [vmem:[%s714 + $0x7c] sm:$0xf] %vm238, %v579
          %v791 = vld [vmem:[%s714 + $0x80] sm:$0x1]
          %v792 = vsel %vm249, %v580, %v791
          %793 = vst [vmem:[%s714 + $0x80] sm:$0x1] %v792
          %v794 = vld [vmem:[%s714 + $0x84] sm:$0xf]
          %v795 = vsel %vm716, %v587, %v794
          %796 = vst [vmem:[%s714 + $0x84] sm:$0xf] %v795
          %797 = vst.msk [vmem:[%s714 + $0x88] sm:$0xf] %vm238, %v596
          %v798 = vld [vmem:[%s714 + $0x8c] sm:$0x1]
          %v799 = vsel %vm249, %v597, %v798
          %800 = vst [vmem:[%s714 + $0x8c] sm:$0x1] %v799
          %v801 = vld [vmem:[%s714 + $0x90] sm:$0xf]
          %v802 = vsel %vm716, %v604, %v801
          %803 = vst [vmem:[%s714 + $0x90] sm:$0xf] %v802
          %804 = vst.msk [vmem:[%s714 + $0x94] sm:$0xf] %vm238, %v613
          %v805 = vld [vmem:[%s714 + $0x98] sm:$0x1]
          %v806 = vsel %vm249, %v614, %v805
          %807 = vst [vmem:[%s714 + $0x98] sm:$0x1] %v806
          %v808 = vld [vmem:[%s714 + $0x9c] sm:$0xf]
          %v809 = vsel %vm716, %v621, %v808
          %810 = vst [vmem:[%s714 + $0x9c] sm:$0xf] %v809
          %811 = vst.msk [vmem:[%s714 + $0xa0] sm:$0xf] %vm238, %v630
          %v812 = vld [vmem:[%s714 + $0xa4] sm:$0x1]
          %v813 = vsel %vm249, %v631, %v812
          %814 = vst [vmem:[%s714 + $0xa4] sm:$0x1] %v813
          %v815 = vld [vmem:[%s714 + $0xa8] sm:$0xf]
          %v816 = vsel %vm716, %v638, %v815
          %817 = vst [vmem:[%s714 + $0xa8] sm:$0xf] %v816
          %818 = vst.msk [vmem:[%s714 + $0xac] sm:$0xf] %vm238, %v647
          %v819 = vld [vmem:[%s714 + $0xb0] sm:$0x1]
          %v820 = vsel %vm249, %v648, %v819
          %821 = vst [vmem:[%s714 + $0xb0] sm:$0x1] %v820
          %v822 = vld [vmem:[%s714 + $0xb4] sm:$0xf]
          %v823 = vsel %vm716, %v655, %v822
          %824 = vst [vmem:[%s714 + $0xb4] sm:$0xf] %v823
          %825 = vst.msk [vmem:[%s714 + $0xb8] sm:$0xf] %vm238, %v664
          %v826 = vld [vmem:[%s714 + $0xbc] sm:$0x1]
          %v827 = vsel %vm249, %v665, %v826
          %828 = vst [vmem:[%s714 + $0xbc] sm:$0x1] %v827
        $region44: #{upmask_forward.1} parent=39 // pred_fallthru
          _
        %s829 = smul.u32 %s21, 8
        %s830 = smul.u32 %s829, 3
        %s831 = smul.addr %s830, 4
        %s832 = scalar_lea.vmem [#allocation2], %s831
        %v833 = vld [vmem:[%s832] sm:$0xf]
        %v834 = vld [vmem:[%s832 + $0x4] sm:$0xf]
        %v835 = vld [vmem:[%s832 + $0xc] sm:$0xf]
        %v836 = vld [vmem:[%s832 + $0x10] sm:$0xf]
        %v837 = vld [vmem:[%s832 + $0x18] sm:$0xf]
        %v838 = vld [vmem:[%s832 + $0x1c] sm:$0xf]
        %v839 = vld [vmem:[%s832 + $0x24] sm:$0xf]
        %v840 = vld [vmem:[%s832 + $0x28] sm:$0xf]
        %v841 = vld [vmem:[%s832 + $0x30] sm:$0xf]
        %v842 = vld [vmem:[%s832 + $0x34] sm:$0xf]
        %v843 = vld [vmem:[%s832 + $0x3c] sm:$0xf]
        %v844 = vld [vmem:[%s832 + $0x40] sm:$0xf]
        %v845 = vld [vmem:[%s832 + $0x48] sm:$0xf]
        %v846 = vld [vmem:[%s832 + $0x4c] sm:$0xf]
        %v847 = vld [vmem:[%s832 + $0x54] sm:$0xf]
        %v848 = vld [vmem:[%s832 + $0x58] sm:$0xf]
        %vm849 = vcmask 257024
        %850 = vst.msk [vmem:[#allocation3] sm:$0xf] %vm849, %v833
        %851 = vst.msk [vmem:[#allocation3 + $0xc] sm:$0xf] %vm849, %v834
        %852 = vst.msk [vmem:[#allocation3 + $0x18] sm:$0xf] %vm849, %v835
        %853 = vst.msk [vmem:[#allocation3 + $0x24] sm:$0xf] %vm849, %v836
        %854 = vst.msk [vmem:[#allocation3 + $0x30] sm:$0xf] %vm849, %v837
        %855 = vst.msk [vmem:[#allocation3 + $0x3c] sm:$0xf] %vm849, %v838
        %856 = vst.msk [vmem:[#allocation3 + $0x48] sm:$0xf] %vm849, %v839
        %857 = vst.msk [vmem:[#allocation3 + $0x54] sm:$0xf] %vm849, %v840
        %858 = vst.msk [vmem:[#allocation3 + $0x60] sm:$0xf] %vm849, %v841
        %859 = vst.msk [vmem:[#allocation3 + $0x6c] sm:$0xf] %vm849, %v842
        %860 = vst.msk [vmem:[#allocation3 + $0x78] sm:$0xf] %vm849, %v843
        %861 = vst.msk [vmem:[#allocation3 + $0x84] sm:$0xf] %vm849, %v844
        %862 = vst.msk [vmem:[#allocation3 + $0x90] sm:$0xf] %vm849, %v845
        %863 = vst.msk [vmem:[#allocation3 + $0x9c] sm:$0xf] %vm849, %v846
        %864 = vst.msk [vmem:[#allocation3 + $0xa8] sm:$0xf] %vm849, %v847
        %865 = vst.msk [vmem:[#allocation3 + $0xb4] sm:$0xf] %vm849, %v848
        %v866 = vld [vmem:[%s832] sm:$0xf]
        %v867 = vld [vmem:[%s832 + $0x4] sm:$0xf]
        %v868 = vld [vmem:[%s832 + $0x8] sm:$0x1]
        %v869 = vld [vmem:[%s832 + $0xc] sm:$0xf]
        %v870 = vld [vmem:[%s832 + $0x10] sm:$0xf]
        %v871 = vld [vmem:[%s832 + $0x14] sm:$0x1]
        %v872 = vld [vmem:[%s832 + $0x18] sm:$0xf]
        %v873 = vld [vmem:[%s832 + $0x1c] sm:$0xf]
        %v874 = vld [vmem:[%s832 + $0x20] sm:$0x1]
        %v875 = vld [vmem:[%s832 + $0x24] sm:$0xf]
        %v876 = vld [vmem:[%s832 + $0x28] sm:$0xf]
        %v877 = vld [vmem:[%s832 + $0x2c] sm:$0x1]
        %v878 = vld [vmem:[%s832 + $0x30] sm:$0xf]
        %v879 = vld [vmem:[%s832 + $0x34] sm:$0xf]
        %v880 = vld [vmem:[%s832 + $0x38] sm:$0x1]
        %v881 = vld [vmem:[%s832 + $0x3c] sm:$0xf]
        %v882 = vld [vmem:[%s832 + $0x40] sm:$0xf]
        %v883 = vld [vmem:[%s832 + $0x44] sm:$0x1]
        %v884 = vld [vmem:[%s832 + $0x48] sm:$0xf]
        %v885 = vld [vmem:[%s832 + $0x4c] sm:$0xf]
        %v886 = vld [vmem:[%s832 + $0x50] sm:$0x1]
        %v887 = vld [vmem:[%s832 + $0x54] sm:$0xf]
        %v888 = vld [vmem:[%s832 + $0x58] sm:$0xf]
        %v889 = vld [vmem:[%s832 + $0x5c] sm:$0x1]
        %vm890 = vsmask.f32 3328
        %vm891 = vsmask.f32 7440
        %vm892 = vmor %vm890, %vm891
        %v894 = vshrl.u32 %v866, 16
        %v896 = vrot.slane %v894, 4
        %v897 = vshll.u32 %v866, 16
        %v899 = vrot.slane %v897, 5
        %v900 = vor.u32 %v896, %v899
        %v901 = vrot.slane %v900, 4
        %v903 = vshll.u32 %v867, 16
        %v905 = vrot.slane %v903, 5
        %v906 = vsel %vm892, %v901, %v905
        %v907 = vshrl.u32 %v867, 16
        %v909 = vrot.slane %v907, 4
        %v910 = vor.u32 %v909, %v905
        %v911 = vrot.slane %v910, 4
        %v913 = vshll.u32 %v868, 16
        %v915 = vrot.slane %v913, 5
        %v916 = vsel %vm892, %v911, %v915
        %v918 = vshrl.u32 %v869, 16
        %v920 = vrot.slane %v918, 4
        %v921 = vshll.u32 %v869, 16
        %v923 = vrot.slane %v921, 5
        %v924 = vor.u32 %v920, %v923
        %v925 = vrot.slane %v924, 4
        %v927 = vshll.u32 %v870, 16
        %v929 = vrot.slane %v927, 5
        %v930 = vsel %vm892, %v925, %v929
        %v931 = vshrl.u32 %v870, 16
        %v933 = vrot.slane %v931, 4
        %v934 = vor.u32 %v933, %v929
        %v935 = vrot.slane %v934, 4
        %v937 = vshll.u32 %v871, 16
        %v939 = vrot.slane %v937, 5
        %v940 = vsel %vm892, %v935, %v939
        %v942 = vshrl.u32 %v872, 16
        %v944 = vrot.slane %v942, 4
        %v945 = vshll.u32 %v872, 16
        %v947 = vrot.slane %v945, 5
        %v948 = vor.u32 %v944, %v947
        %v949 = vrot.slane %v948, 4
        %v951 = vshll.u32 %v873, 16
        %v953 = vrot.slane %v951, 5
        %v954 = vsel %vm892, %v949, %v953
        %v955 = vshrl.u32 %v873, 16
        %v957 = vrot.slane %v955, 4
        %v958 = vor.u32 %v957, %v953
        %v959 = vrot.slane %v958, 4
        %v961 = vshll.u32 %v874, 16
        %v963 = vrot.slane %v961, 5
        %v964 = vsel %vm892, %v959, %v963
        %v966 = vshrl.u32 %v875, 16
        %v968 = vrot.slane %v966, 4
        %v969 = vshll.u32 %v875, 16
        %v971 = vrot.slane %v969, 5
        %v972 = vor.u32 %v968, %v971
        %v973 = vrot.slane %v972, 4
        %v975 = vshll.u32 %v876, 16
        %v977 = vrot.slane %v975, 5
        %v978 = vsel %vm892, %v973, %v977
        %v979 = vshrl.u32 %v876, 16
        %v981 = vrot.slane %v979, 4
        %v982 = vor.u32 %v981, %v977
        %v983 = vrot.slane %v982, 4
        %v985 = vshll.u32 %v877, 16
        %v987 = vrot.slane %v985, 5
        %v988 = vsel %vm892, %v983, %v987
        %v990 = vshrl.u32 %v878, 16
        %v992 = vrot.slane %v990, 4
        %v993 = vshll.u32 %v878, 16
        %v995 = vrot.slane %v993, 5
        %v996 = vor.u32 %v992, %v995
        %v997 = vrot.slane %v996, 4
        %v999 = vshll.u32 %v879, 16
        %v1001 = vrot.slane %v999, 5
        %v1002 = vsel %vm892, %v997, %v1001
        %v1003 = vshrl.u32 %v879, 16
        %v1005 = vrot.slane %v1003, 4
        %v1006 = vor.u32 %v1005, %v1001
        %v1007 = vrot.slane %v1006, 4
        %v1009 = vshll.u32 %v880, 16
        %v1011 = vrot.slane %v1009, 5
        %v1012 = vsel %vm892, %v1007, %v1011
        %v1014 = vshrl.u32 %v881, 16
        %v1016 = vrot.slane %v1014, 4
        %v1017 = vshll.u32 %v881, 16
        %v1019 = vrot.slane %v1017, 5
        %v1020 = vor.u32 %v1016, %v1019
        %v1021 = vrot.slane %v1020, 4
        %v1023 = vshll.u32 %v882, 16
        %v1025 = vrot.slane %v1023, 5
        %v1026 = vsel %vm892, %v1021, %v1025
        %v1027 = vshrl.u32 %v882, 16
        %v1029 = vrot.slane %v1027, 4
        %v1030 = vor.u32 %v1029, %v1025
        %v1031 = vrot.slane %v1030, 4
        %v1033 = vshll.u32 %v883, 16
        %v1035 = vrot.slane %v1033, 5
        %v1036 = vsel %vm892, %v1031, %v1035
        %v1038 = vshrl.u32 %v884, 16
        %v1040 = vrot.slane %v1038, 4
        %v1041 = vshll.u32 %v884, 16
        %v1043 = vrot.slane %v1041, 5
        %v1044 = vor.u32 %v1040, %v1043
        %v1045 = vrot.slane %v1044, 4
        %v1047 = vshll.u32 %v885, 16
        %v1049 = vrot.slane %v1047, 5
        %v1050 = vsel %vm892, %v1045, %v1049
        %v1051 = vshrl.u32 %v885, 16
        %v1053 = vrot.slane %v1051, 4
        %v1054 = vor.u32 %v1053, %v1049
        %v1055 = vrot.slane %v1054, 4
        %v1057 = vshll.u32 %v886, 16
        %v1059 = vrot.slane %v1057, 5
        %v1060 = vsel %vm892, %v1055, %v1059
        %v1062 = vshrl.u32 %v887, 16
        %v1064 = vrot.slane %v1062, 4
        %v1065 = vshll.u32 %v887, 16
        %v1067 = vrot.slane %v1065, 5
        %v1068 = vor.u32 %v1064, %v1067
        %v1069 = vrot.slane %v1068, 4
        %v1071 = vshll.u32 %v888, 16
        %v1073 = vrot.slane %v1071, 5
        %v1074 = vsel %vm892, %v1069, %v1073
        %v1075 = vshrl.u32 %v888, 16
        %v1077 = vrot.slane %v1075, 4
        %v1078 = vor.u32 %v1077, %v1073
        %v1079 = vrot.slane %v1078, 4
        %v1081 = vshll.u32 %v889, 16
        %v1083 = vrot.slane %v1081, 5
        %v1084 = vsel %vm892, %v1079, %v1083
        %1085 = vrot.lane.b32.xlu0 %v906, 32
        %v1086 = vpop.permute.xlu0 %1085
        %1087 = vrot.lane.b32.xlu0 %v916, 32
        %v1088 = vpop.permute.xlu0 %1087
        %1089 = vrot.lane.b32.xlu0 %v930, 32
        %v1090 = vpop.permute.xlu0 %1089
        %1091 = vrot.lane.b32.xlu0 %v940, 32
        %v1092 = vpop.permute.xlu0 %1091
        %1093 = vrot.lane.b32.xlu0 %v954, 32
        %v1094 = vpop.permute.xlu0 %1093
        %1095 = vrot.lane.b32.xlu0 %v964, 32
        %v1096 = vpop.permute.xlu0 %1095
        %1097 = vrot.lane.b32.xlu0 %v978, 32
        %v1098 = vpop.permute.xlu0 %1097
        %1099 = vrot.lane.b32.xlu0 %v988, 32
        %v1100 = vpop.permute.xlu0 %1099
        %1101 = vrot.lane.b32.xlu0 %v1002, 32
        %v1102 = vpop.permute.xlu0 %1101
        %1103 = vrot.lane.b32.xlu0 %v1012, 32
        %v1104 = vpop.permute.xlu0 %1103
        %1105 = vrot.lane.b32.xlu0 %v1026, 32
        %v1106 = vpop.permute.xlu0 %1105
        %1107 = vrot.lane.b32.xlu0 %v1036, 32
        %v1108 = vpop.permute.xlu0 %1107
        %1109 = vrot.lane.b32.xlu0 %v1050, 32
        %v1110 = vpop.permute.xlu0 %1109
        %1111 = vrot.lane.b32.xlu0 %v1060, 32
        %v1112 = vpop.permute.xlu0 %1111
        %1113 = vrot.lane.b32.xlu0 %v1074, 32
        %v1114 = vpop.permute.xlu0 %1113
        %1115 = vrot.lane.b32.xlu0 %v1084, 32
        %v1116 = vpop.permute.xlu0 %1115
        %vm1133 = vcmask 519424
        %1134 = vst.msk [vmem:[#allocation3] sm:$0xf] %vm1133, %v1086
        %1135 = vst.msk [vmem:[#allocation3 + $0xc] sm:$0xf] %vm1133, %v1088
        %1136 = vst.msk [vmem:[#allocation3 + $0x18] sm:$0xf] %vm1133, %v1090
        %1137 = vst.msk [vmem:[#allocation3 + $0x24] sm:$0xf] %vm1133, %v1092
        %1138 = vst.msk [vmem:[#allocation3 + $0x30] sm:$0xf] %vm1133, %v1094
        %1139 = vst.msk [vmem:[#allocation3 + $0x3c] sm:$0xf] %vm1133, %v1096
        %1140 = vst.msk [vmem:[#allocation3 + $0x48] sm:$0xf] %vm1133, %v1098
        %1141 = vst.msk [vmem:[#allocation3 + $0x54] sm:$0xf] %vm1133, %v1100
        %1142 = vst.msk [vmem:[#allocation3 + $0x60] sm:$0xf] %vm1133, %v1102
        %1143 = vst.msk [vmem:[#allocation3 + $0x6c] sm:$0xf] %vm1133, %v1104
        %1144 = vst.msk [vmem:[#allocation3 + $0x78] sm:$0xf] %vm1133, %v1106
        %1145 = vst.msk [vmem:[#allocation3 + $0x84] sm:$0xf] %vm1133, %v1108
        %1146 = vst.msk [vmem:[#allocation3 + $0x90] sm:$0xf] %vm1133, %v1110
        %1147 = vst.msk [vmem:[#allocation3 + $0x9c] sm:$0xf] %vm1133, %v1112
        %1148 = vst.msk [vmem:[#allocation3 + $0xa8] sm:$0xf] %vm1133, %v1114
        %1149 = vst.msk [vmem:[#allocation3 + $0xb4] sm:$0xf] %vm1133, %v1116
        %v1150 = vld [vmem:[%s832] sm:$0xe]
        %v1151 = vld [vmem:[%s832 + $0x4] sm:$0xf]
        %v1152 = vld [vmem:[%s832 + $0x8] sm:$0x1]
        %v1153 = vld [vmem:[%s832 + $0xc] sm:$0xe]
        %v1154 = vld [vmem:[%s832 + $0x10] sm:$0xf]
        %v1155 = vld [vmem:[%s832 + $0x14] sm:$0x1]
        %v1156 = vld [vmem:[%s832 + $0x18] sm:$0xe]
        %v1157 = vld [vmem:[%s832 + $0x1c] sm:$0xf]
        %v1158 = vld [vmem:[%s832 + $0x20] sm:$0x1]
        %v1159 = vld [vmem:[%s832 + $0x24] sm:$0xe]
        %v1160 = vld [vmem:[%s832 + $0x28] sm:$0xf]
        %v1161 = vld [vmem:[%s832 + $0x2c] sm:$0x1]
        %v1162 = vld [vmem:[%s832 + $0x30] sm:$0xe]
        %v1163 = vld [vmem:[%s832 + $0x34] sm:$0xf]
        %v1164 = vld [vmem:[%s832 + $0x38] sm:$0x1]
        %v1165 = vld [vmem:[%s832 + $0x3c] sm:$0xe]
        %v1166 = vld [vmem:[%s832 + $0x40] sm:$0xf]
        %v1167 = vld [vmem:[%s832 + $0x44] sm:$0x1]
        %v1168 = vld [vmem:[%s832 + $0x48] sm:$0xe]
        %v1169 = vld [vmem:[%s832 + $0x4c] sm:$0xf]
        %v1170 = vld [vmem:[%s832 + $0x50] sm:$0x1]
        %v1171 = vld [vmem:[%s832 + $0x54] sm:$0xe]
        %v1172 = vld [vmem:[%s832 + $0x58] sm:$0xf]
        %v1173 = vld [vmem:[%s832 + $0x5c] sm:$0x1]
        %vm1198 = vcmask 1042432
        %vm1199 = vcmask 1046532
        %vm1200 = vmor %vm1198, %vm1199
        %v1201 = vrot.slane %v1150, 5
        %v1202 = vrot.slane %v1201, 4
        %v1203 = vrot.slane %v1151, 5
        %v1204 = vsel %vm1200, %v1202, %v1203
        %v1205 = vrot.slane %v1203, 4
        %v1206 = vrot.slane %v1152, 5
        %v1207 = vsel %vm1200, %v1205, %v1206
        %v1208 = vrot.slane %v1153, 5
        %v1209 = vrot.slane %v1208, 4
        %v1210 = vrot.slane %v1154, 5
        %v1211 = vsel %vm1200, %v1209, %v1210
        %v1212 = vrot.slane %v1210, 4
        %v1213 = vrot.slane %v1155, 5
        %v1214 = vsel %vm1200, %v1212, %v1213
        %v1215 = vrot.slane %v1156, 5
        %v1216 = vrot.slane %v1215, 4
        %v1217 = vrot.slane %v1157, 5
        %v1218 = vsel %vm1200, %v1216, %v1217
        %v1219 = vrot.slane %v1217, 4
        %v1220 = vrot.slane %v1158, 5
        %v1221 = vsel %vm1200, %v1219, %v1220
        %v1222 = vrot.slane %v1159, 5
        %v1223 = vrot.slane %v1222, 4
        %v1224 = vrot.slane %v1160, 5
        %v1225 = vsel %vm1200, %v1223, %v1224
        %v1226 = vrot.slane %v1224, 4
        %v1227 = vrot.slane %v1161, 5
        %v1228 = vsel %vm1200, %v1226, %v1227
        %v1229 = vrot.slane %v1162, 5
        %v1230 = vrot.slane %v1229, 4
        %v1231 = vrot.slane %v1163, 5
        %v1232 = vsel %vm1200, %v1230, %v1231
        %v1233 = vrot.slane %v1231, 4
        %v1234 = vrot.slane %v1164, 5
        %v1235 = vsel %vm1200, %v1233, %v1234
        %v1236 = vrot.slane %v1165, 5
        %v1237 = vrot.slane %v1236, 4
        %v1238 = vrot.slane %v1166, 5
        %v1239 = vsel %vm1200, %v1237, %v1238
        %v1240 = vrot.slane %v1238, 4
        %v1241 = vrot.slane %v1167, 5
        %v1242 = vsel %vm1200, %v1240, %v1241
        %v1243 = vrot.slane %v1168, 5
        %v1244 = vrot.slane %v1243, 4
        %v1245 = vrot.slane %v1169, 5
        %v1246 = vsel %vm1200, %v1244, %v1245
        %v1247 = vrot.slane %v1245, 4
        %v1248 = vrot.slane %v1170, 5
        %v1249 = vsel %vm1200, %v1247, %v1248
        %v1250 = vrot.slane %v1171, 5
        %v1251 = vrot.slane %v1250, 4
        %v1252 = vrot.slane %v1172, 5
        %v1253 = vsel %vm1200, %v1251, %v1252
        %v1254 = vrot.slane %v1252, 4
        %v1255 = vrot.slane %v1173, 5
        %v1256 = vsel %vm1200, %v1254, %v1255
        %1257 = vrot.lane.b32.xlu0 %v1204, 64
        %v1258 = vpop.permute.xlu0 %1257
        %1259 = vrot.lane.b32.xlu0 %v1207, 64
        %v1260 = vpop.permute.xlu0 %1259
        %1261 = vrot.lane.b32.xlu0 %v1211, 64
        %v1262 = vpop.permute.xlu0 %1261
        %1263 = vrot.lane.b32.xlu0 %v1214, 64
        %v1264 = vpop.permute.xlu0 %1263
        %1265 = vrot.lane.b32.xlu0 %v1218, 64
        %v1266 = vpop.permute.xlu0 %1265
        %1267 = vrot.lane.b32.xlu0 %v1221, 64
        %v1268 = vpop.permute.xlu0 %1267
        %1269 = vrot.lane.b32.xlu0 %v1225, 64
        %v1270 = vpop.permute.xlu0 %1269
        %1271 = vrot.lane.b32.xlu0 %v1228, 64
        %v1272 = vpop.permute.xlu0 %1271
        %1273 = vrot.lane.b32.xlu0 %v1232, 64
        %v1274 = vpop.permute.xlu0 %1273
        %1275 = vrot.lane.b32.xlu0 %v1235, 64
        %v1276 = vpop.permute.xlu0 %1275
        %1277 = vrot.lane.b32.xlu0 %v1239, 64
        %v1278 = vpop.permute.xlu0 %1277
        %1279 = vrot.lane.b32.xlu0 %v1242, 64
        %v1280 = vpop.permute.xlu0 %1279
        %1281 = vrot.lane.b32.xlu0 %v1246, 64
        %v1282 = vpop.permute.xlu0 %1281
        %1283 = vrot.lane.b32.xlu0 %v1249, 64
        %v1284 = vpop.permute.xlu0 %1283
        %1285 = vrot.lane.b32.xlu0 %v1253, 64
        %v1286 = vpop.permute.xlu0 %1285
        %1287 = vrot.lane.b32.xlu0 %v1256, 64
        %v1288 = vpop.permute.xlu0 %1287
        %vm1305 = vcmask 781824
        %1306 = vst.msk [vmem:[#allocation3] sm:$0xf] %vm1305, %v1258
        %1307 = vst.msk [vmem:[#allocation3 + $0xc] sm:$0xf] %vm1305, %v1260
        %1308 = vst.msk [vmem:[#allocation3 + $0x18] sm:$0xf] %vm1305, %v1262
        %1309 = vst.msk [vmem:[#allocation3 + $0x24] sm:$0xf] %vm1305, %v1264
        %1310 = vst.msk [vmem:[#allocation3 + $0x30] sm:$0xf] %vm1305, %v1266
        %1311 = vst.msk [vmem:[#allocation3 + $0x3c] sm:$0xf] %vm1305, %v1268
        %1312 = vst.msk [vmem:[#allocation3 + $0x48] sm:$0xf] %vm1305, %v1270
        %1313 = vst.msk [vmem:[#allocation3 + $0x54] sm:$0xf] %vm1305, %v1272
        %1314 = vst.msk [vmem:[#allocation3 + $0x60] sm:$0xf] %vm1305, %v1274
        %1315 = vst.msk [vmem:[#allocation3 + $0x6c] sm:$0xf] %vm1305, %v1276
        %1316 = vst.msk [vmem:[#allocation3 + $0x78] sm:$0xf] %vm1305, %v1278
        %1317 = vst.msk [vmem:[#allocation3 + $0x84] sm:$0xf] %vm1305, %v1280
        %1318 = vst.msk [vmem:[#allocation3 + $0x90] sm:$0xf] %vm1305, %v1282
        %1319 = vst.msk [vmem:[#allocation3 + $0x9c] sm:$0xf] %vm1305, %v1284
        %1320 = vst.msk [vmem:[#allocation3 + $0xa8] sm:$0xf] %vm1305, %v1286
        %1321 = vst.msk [vmem:[#allocation3 + $0xb4] sm:$0xf] %vm1305, %v1288
        %s1322 = sadd.s32 %s829, 1
        %s1323 = smul.u32 %s1322, 3
        %s1324 = smul.addr %s1323, 4
        %s1325 = scalar_lea.vmem [#allocation2], %s1324
        %v1326 = vld [vmem:[%s1325] sm:$0xf]
        %v1327 = vld [vmem:[%s1325 + $0x4] sm:$0xf]
        %v1328 = vld [vmem:[%s1325 + $0xc] sm:$0xf]
        %v1329 = vld [vmem:[%s1325 + $0x10] sm:$0xf]
        %v1330 = vld [vmem:[%s1325 + $0x18] sm:$0xf]
        %v1331 = vld [vmem:[%s1325 + $0x1c] sm:$0xf]
        %v1332 = vld [vmem:[%s1325 + $0x24] sm:$0xf]
        %v1333 = vld [vmem:[%s1325 + $0x28] sm:$0xf]
        %v1334 = vld [vmem:[%s1325 + $0x30] sm:$0xf]
        %v1335 = vld [vmem:[%s1325 + $0x34] sm:$0xf]
        %v1336 = vld [vmem:[%s1325 + $0x3c] sm:$0xf]
        %v1337 = vld [vmem:[%s1325 + $0x40] sm:$0xf]
        %v1338 = vld [vmem:[%s1325 + $0x48] sm:$0xf]
        %v1339 = vld [vmem:[%s1325 + $0x4c] sm:$0xf]
        %v1340 = vld [vmem:[%s1325 + $0x54] sm:$0xf]
        %v1341 = vld [vmem:[%s1325 + $0x58] sm:$0xf]
        %1358 = vrot.lane.b32.xlu0 %v1326, 96
        %v1359 = vpop.permute.xlu0 %1358
        %1360 = vrot.lane.b32.xlu0 %v1327, 96
        %v1361 = vpop.permute.xlu0 %1360
        %1362 = vrot.lane.b32.xlu0 %v1328, 96
        %v1363 = vpop.permute.xlu0 %1362
        %1364 = vrot.lane.b32.xlu0 %v1329, 96
        %v1365 = vpop.permute.xlu0 %1364
        %1366 = vrot.lane.b32.xlu0 %v1330, 96
        %v1367 = vpop.permute.xlu0 %1366
        %1368 = vrot.lane.b32.xlu0 %v1331, 96
        %v1369 = vpop.permute.xlu0 %1368
        %1370 = vrot.lane.b32.xlu0 %v1332, 96
        %v1371 = vpop.permute.xlu0 %1370
        %1372 = vrot.lane.b32.xlu0 %v1333, 96
        %v1373 = vpop.permute.xlu0 %1372
        %1374 = vrot.lane.b32.xlu0 %v1334, 96
        %v1375 = vpop.permute.xlu0 %1374
        %1376 = vrot.lane.b32.xlu0 %v1335, 96
        %v1377 = vpop.permute.xlu0 %1376
        %1378 = vrot.lane.b32.xlu0 %v1336, 96
        %v1379 = vpop.permute.xlu0 %1378
        %1380 = vrot.lane.b32.xlu0 %v1337, 96
        %v1381 = vpop.permute.xlu0 %1380
        %1382 = vrot.lane.b32.xlu0 %v1338, 96
        %v1383 = vpop.permute.xlu0 %1382
        %1384 = vrot.lane.b32.xlu0 %v1339, 96
        %v1385 = vpop.permute.xlu0 %1384
        %1386 = vrot.lane.b32.xlu0 %v1340, 96
        %v1387 = vpop.permute.xlu0 %1386
        %1388 = vrot.lane.b32.xlu0 %v1341, 96
        %v1389 = vpop.permute.xlu0 %1388
        %vm1406 = vcmask 1044224
        %1407 = vst.msk [vmem:[#allocation3] sm:$0xf] %vm1406, %v1359
        %1408 = vst.msk [vmem:[#allocation3 + $0xc] sm:$0xf] %vm1406, %v1361
        %1409 = vst.msk [vmem:[#allocation3 + $0x18] sm:$0xf] %vm1406, %v1363
        %1410 = vst.msk [vmem:[#allocation3 + $0x24] sm:$0xf] %vm1406, %v1365
        %1411 = vst.msk [vmem:[#allocation3 + $0x30] sm:$0xf] %vm1406, %v1367
        %1412 = vst.msk [vmem:[#allocation3 + $0x3c] sm:$0xf] %vm1406, %v1369
        %1413 = vst.msk [vmem:[#allocation3 + $0x48] sm:$0xf] %vm1406, %v1371
        %1414 = vst.msk [vmem:[#allocation3 + $0x54] sm:$0xf] %vm1406, %v1373
        %1415 = vst.msk [vmem:[#allocation3 + $0x60] sm:$0xf] %vm1406, %v1375
        %1416 = vst.msk [vmem:[#allocation3 + $0x6c] sm:$0xf] %vm1406, %v1377
        %1417 = vst.msk [vmem:[#allocation3 + $0x78] sm:$0xf] %vm1406, %v1379
        %1418 = vst.msk [vmem:[#allocation3 + $0x84] sm:$0xf] %vm1406, %v1381
        %1419 = vst.msk [vmem:[#allocation3 + $0x90] sm:$0xf] %vm1406, %v1383
        %1420 = vst.msk [vmem:[#allocation3 + $0x9c] sm:$0xf] %vm1406, %v1385
        %1421 = vst.msk [vmem:[#allocation3 + $0xa8] sm:$0xf] %vm1406, %v1387
        %1422 = vst.msk [vmem:[#allocation3 + $0xb4] sm:$0xf] %vm1406, %v1389
        %v1423 = vld [vmem:[%s1325] sm:$0xf]
        %v1424 = vld [vmem:[%s1325 + $0x4] sm:$0xf]
        %v1425 = vld [vmem:[%s1325 + $0x8] sm:$0x1]
        %v1426 = vld [vmem:[%s1325 + $0xc] sm:$0xf]
        %v1427 = vld [vmem:[%s1325 + $0x10] sm:$0xf]
        %v1428 = vld [vmem:[%s1325 + $0x14] sm:$0x1]
        %v1429 = vld [vmem:[%s1325 + $0x18] sm:$0xf]
        %v1430 = vld [vmem:[%s1325 + $0x1c] sm:$0xf]
        %v1431 = vld [vmem:[%s1325 + $0x20] sm:$0x1]
        %v1432 = vld [vmem:[%s1325 + $0x24] sm:$0xf]
        %v1433 = vld [vmem:[%s1325 + $0x28] sm:$0xf]
        %v1434 = vld [vmem:[%s1325 + $0x2c] sm:$0x1]
        %v1435 = vld [vmem:[%s1325 + $0x30] sm:$0xf]
        %v1436 = vld [vmem:[%s1325 + $0x34] sm:$0xf]
        %v1437 = vld [vmem:[%s1325 + $0x38] sm:$0x1]
        %v1438 = vld [vmem:[%s1325 + $0x3c] sm:$0xf]
        %v1439 = vld [vmem:[%s1325 + $0x40] sm:$0xf]
        %v1440 = vld [vmem:[%s1325 + $0x44] sm:$0x1]
        %v1441 = vld [vmem:[%s1325 + $0x48] sm:$0xf]
        %v1442 = vld [vmem:[%s1325 + $0x4c] sm:$0xf]
        %v1443 = vld [vmem:[%s1325 + $0x50] sm:$0x1]
        %v1444 = vld [vmem:[%s1325 + $0x54] sm:$0xf]
        %v1445 = vld [vmem:[%s1325 + $0x58] sm:$0xf]
        %v1446 = vld [vmem:[%s1325 + $0x5c] sm:$0x1]
        %v1448 = vshrl.u32 %v1423, 16
        %v1450 = vrot.slane %v1448, 4
        %v1451 = vshll.u32 %v1423, 16
        %v1453 = vrot.slane %v1451, 5
        %v1454 = vor.u32 %v1450, %v1453
        %v1455 = vrot.slane %v1454, 4
        %v1457 = vshll.u32 %v1424, 16
        %v1459 = vrot.slane %v1457, 5
        %v1460 = vsel %vm892, %v1455, %v1459
        %v1461 = vshrl.u32 %v1424, 16
        %v1463 = vrot.slane %v1461, 4
        %v1464 = vor.u32 %v1463, %v1459
        %v1465 = vrot.slane %v1464, 4
        %v1467 = vshll.u32 %v1425, 16
        %v1469 = vrot.slane %v1467, 5
        %v1470 = vsel %vm892, %v1465, %v1469
        %v1472 = vshrl.u32 %v1426, 16
        %v1474 = vrot.slane %v1472, 4
        %v1475 = vshll.u32 %v1426, 16
        %v1477 = vrot.slane %v1475, 5
        %v1478 = vor.u32 %v1474, %v1477
        %v1479 = vrot.slane %v1478, 4
        %v1481 = vshll.u32 %v1427, 16
        %v1483 = vrot.slane %v1481, 5
        %v1484 = vsel %vm892, %v1479, %v1483
        %v1485 = vshrl.u32 %v1427, 16
        %v1487 = vrot.slane %v1485, 4
        %v1488 = vor.u32 %v1487, %v1483
        %v1489 = vrot.slane %v1488, 4
        %v1491 = vshll.u32 %v1428, 16
        %v1493 = vrot.slane %v1491, 5
        %v1494 = vsel %vm892, %v1489, %v1493
        %v1496 = vshrl.u32 %v1429, 16
        %v1498 = vrot.slane %v1496, 4
        %v1499 = vshll.u32 %v1429, 16
        %v1501 = vrot.slane %v1499, 5
        %v1502 = vor.u32 %v1498, %v1501
        %v1503 = vrot.slane %v1502, 4
        %v1505 = vshll.u32 %v1430, 16
        %v1507 = vrot.slane %v1505, 5
        %v1508 = vsel %vm892, %v1503, %v1507
        %v1509 = vshrl.u32 %v1430, 16
        %v1511 = vrot.slane %v1509, 4
        %v1512 = vor.u32 %v1511, %v1507
        %v1513 = vrot.slane %v1512, 4
        %v1515 = vshll.u32 %v1431, 16
        %v1517 = vrot.slane %v1515, 5
        %v1518 = vsel %vm892, %v1513, %v1517
        %v1520 = vshrl.u32 %v1432, 16
        %v1522 = vrot.slane %v1520, 4
        %v1523 = vshll.u32 %v1432, 16
        %v1525 = vrot.slane %v1523, 5
        %v1526 = vor.u32 %v1522, %v1525
        %v1527 = vrot.slane %v1526, 4
        %v1529 = vshll.u32 %v1433, 16
        %v1531 = vrot.slane %v1529, 5
        %v1532 = vsel %vm892, %v1527, %v1531
        %v1533 = vshrl.u32 %v1433, 16
        %v1535 = vrot.slane %v1533, 4
        %v1536 = vor.u32 %v1535, %v1531
        %v1537 = vrot.slane %v1536, 4
        %v1539 = vshll.u32 %v1434, 16
        %v1541 = vrot.slane %v1539, 5
        %v1542 = vsel %vm892, %v1537, %v1541
        %v1544 = vshrl.u32 %v1435, 16
        %v1546 = vrot.slane %v1544, 4
        %v1547 = vshll.u32 %v1435, 16
        %v1549 = vrot.slane %v1547, 5
        %v1550 = vor.u32 %v1546, %v1549
        %v1551 = vrot.slane %v1550, 4
        %v1553 = vshll.u32 %v1436, 16
        %v1555 = vrot.slane %v1553, 5
        %v1556 = vsel %vm892, %v1551, %v1555
        %v1557 = vshrl.u32 %v1436, 16
        %v1559 = vrot.slane %v1557, 4
        %v1560 = vor.u32 %v1559, %v1555
        %v1561 = vrot.slane %v1560, 4
        %v1563 = vshll.u32 %v1437, 16
        %v1565 = vrot.slane %v1563, 5
        %v1566 = vsel %vm892, %v1561, %v1565
        %v1568 = vshrl.u32 %v1438, 16
        %v1570 = vrot.slane %v1568, 4
        %v1571 = vshll.u32 %v1438, 16
        %v1573 = vrot.slane %v1571, 5
        %v1574 = vor.u32 %v1570, %v1573
        %v1575 = vrot.slane %v1574, 4
        %v1577 = vshll.u32 %v1439, 16
        %v1579 = vrot.slane %v1577, 5
        %v1580 = vsel %vm892, %v1575, %v1579
        %v1581 = vshrl.u32 %v1439, 16
        %v1583 = vrot.slane %v1581, 4
        %v1584 = vor.u32 %v1583, %v1579
        %v1585 = vrot.slane %v1584, 4
        %v1587 = vshll.u32 %v1440, 16
        %v1589 = vrot.slane %v1587, 5
        %v1590 = vsel %vm892, %v1585, %v1589
        %v1592 = vshrl.u32 %v1441, 16
        %v1594 = vrot.slane %v1592, 4
        %v1595 = vshll.u32 %v1441, 16
        %v1597 = vrot.slane %v1595, 5
        %v1598 = vor.u32 %v1594, %v1597
        %v1599 = vrot.slane %v1598, 4
        %v1601 = vshll.u32 %v1442, 16
        %v1603 = vrot.slane %v1601, 5
        %v1604 = vsel %vm892, %v1599, %v1603
        %v1605 = vshrl.u32 %v1442, 16
        %v1607 = vrot.slane %v1605, 4
        %v1608 = vor.u32 %v1607, %v1603
        %v1609 = vrot.slane %v1608, 4
        %v1611 = vshll.u32 %v1443, 16
        %v1613 = vrot.slane %v1611, 5
        %v1614 = vsel %vm892, %v1609, %v1613
        %v1616 = vshrl.u32 %v1444, 16
        %v1618 = vrot.slane %v1616, 4
        %v1619 = vshll.u32 %v1444, 16
        %v1621 = vrot.slane %v1619, 5
        %v1622 = vor.u32 %v1618, %v1621
        %v1623 = vrot.slane %v1622, 4
        %v1625 = vshll.u32 %v1445, 16
        %v1627 = vrot.slane %v1625, 5
        %v1628 = vsel %vm892, %v1623, %v1627
        %v1629 = vshrl.u32 %v1445, 16
        %v1631 = vrot.slane %v1629, 4
        %v1632 = vor.u32 %v1631, %v1627
        %v1633 = vrot.slane %v1632, 4
        %v1635 = vshll.u32 %v1446, 16
        %v1637 = vrot.slane %v1635, 5
        %v1638 = vsel %vm892, %v1633, %v1637
        %1655 = vst.msk [vmem:[#allocation3 + $0x4] sm:$0xf] %vm849, %v1460
        %1656 = vst.msk [vmem:[#allocation3 + $0x10] sm:$0xf] %vm849, %v1470
        %1657 = vst.msk [vmem:[#allocation3 + $0x1c] sm:$0xf] %vm849, %v1484
        %1658 = vst.msk [vmem:[#allocation3 + $0x28] sm:$0xf] %vm849, %v1494
        %1659 = vst.msk [vmem:[#allocation3 + $0x34] sm:$0xf] %vm849, %v1508
        %1660 = vst.msk [vmem:[#allocation3 + $0x40] sm:$0xf] %vm849, %v1518
        %1661 = vst.msk [vmem:[#allocation3 + $0x4c] sm:$0xf] %vm849, %v1532
        %1662 = vst.msk [vmem:[#allocation3 + $0x58] sm:$0xf] %vm849, %v1542
        %1663 = vst.msk [vmem:[#allocation3 + $0x64] sm:$0xf] %vm849, %v1556
        %1664 = vst.msk [vmem:[#allocation3 + $0x70] sm:$0xf] %vm849, %v1566
        %1665 = vst.msk [vmem:[#allocation3 + $0x7c] sm:$0xf] %vm849, %v1580
        %1666 = vst.msk [vmem:[#allocation3 + $0x88] sm:$0xf] %vm849, %v1590
        %1667 = vst.msk [vmem:[#allocation3 + $0x94] sm:$0xf] %vm849, %v1604
        %1668 = vst.msk [vmem:[#allocation3 + $0xa0] sm:$0xf] %vm849, %v1614
        %1669 = vst.msk [vmem:[#allocation3 + $0xac] sm:$0xf] %vm849, %v1628
        %1670 = vst.msk [vmem:[#allocation3 + $0xb8] sm:$0xf] %vm849, %v1638
        %v1671 = vld [vmem:[%s1325] sm:$0xe]
        %v1672 = vld [vmem:[%s1325 + $0x4] sm:$0xf]
        %v1673 = vld [vmem:[%s1325 + $0x8] sm:$0x1]
        %v1674 = vld [vmem:[%s1325 + $0xc] sm:$0xe]
        %v1675 = vld [vmem:[%s1325 + $0x10] sm:$0xf]
        %v1676 = vld [vmem:[%s1325 + $0x14] sm:$0x1]
        %v1677 = vld [vmem:[%s1325 + $0x18] sm:$0xe]
        %v1678 = vld [vmem:[%s1325 + $0x1c] sm:$0xf]
        %v1679 = vld [vmem:[%s1325 + $0x20] sm:$0x1]
        %v1680 = vld [vmem:[%s1325 + $0x24] sm:$0xe]
        %v1681 = vld [vmem:[%s1325 + $0x28] sm:$0xf]
        %v1682 = vld [vmem:[%s1325 + $0x2c] sm:$0x1]
        %v1683 = vld [vmem:[%s1325 + $0x30] sm:$0xe]
        %v1684 = vld [vmem:[%s1325 + $0x34] sm:$0xf]
        %v1685 = vld [vmem:[%s1325 + $0x38] sm:$0x1]
        %v1686 = vld [vmem:[%s1325 + $0x3c] sm:$0xe]
        %v1687 = vld [vmem:[%s1325 + $0x40] sm:$0xf]
        %v1688 = vld [vmem:[%s1325 + $0x44] sm:$0x1]
        %v1689 = vld [vmem:[%s1325 + $0x48] sm:$0xe]
        %v1690 = vld [vmem:[%s1325 + $0x4c] sm:$0xf]
        %v1691 = vld [vmem:[%s1325 + $0x50] sm:$0x1]
        %v1692 = vld [vmem:[%s1325 + $0x54] sm:$0xe]
        %v1693 = vld [vmem:[%s1325 + $0x58] sm:$0xf]
        %v1694 = vld [vmem:[%s1325 + $0x5c] sm:$0x1]
        %v1719 = vrot.slane %v1671, 5
        %v1720 = vrot.slane %v1719, 4
        %v1721 = vrot.slane %v1672, 5
        %v1722 = vsel %vm1200, %v1720, %v1721
        %v1723 = vrot.slane %v1721, 4
        %v1724 = vrot.slane %v1673, 5
        %v1725 = vsel %vm1200, %v1723, %v1724
        %v1726 = vrot.slane %v1674, 5
        %v1727 = vrot.slane %v1726, 4
        %v1728 = vrot.slane %v1675, 5
        %v1729 = vsel %vm1200, %v1727, %v1728
        %v1730 = vrot.slane %v1728, 4
        %v1731 = vrot.slane %v1676, 5
        %v1732 = vsel %vm1200, %v1730, %v1731
        %v1733 = vrot.slane %v1677, 5
        %v1734 = vrot.slane %v1733, 4
        %v1735 = vrot.slane %v1678, 5
        %v1736 = vsel %vm1200, %v1734, %v1735
        %v1737 = vrot.slane %v1735, 4
        %v1738 = vrot.slane %v1679, 5
        %v1739 = vsel %vm1200, %v1737, %v1738
        %v1740 = vrot.slane %v1680, 5
        %v1741 = vrot.slane %v1740, 4
        %v1742 = vrot.slane %v1681, 5
        %v1743 = vsel %vm1200, %v1741, %v1742
        %v1744 = vrot.slane %v1742, 4
        %v1745 = vrot.slane %v1682, 5
        %v1746 = vsel %vm1200, %v1744, %v1745
        %v1747 = vrot.slane %v1683, 5
        %v1748 = vrot.slane %v1747, 4
        %v1749 = vrot.slane %v1684, 5
        %v1750 = vsel %vm1200, %v1748, %v1749
        %v1751 = vrot.slane %v1749, 4
        %v1752 = vrot.slane %v1685, 5
        %v1753 = vsel %vm1200, %v1751, %v1752
        %v1754 = vrot.slane %v1686, 5
        %v1755 = vrot.slane %v1754, 4
        %v1756 = vrot.slane %v1687, 5
        %v1757 = vsel %vm1200, %v1755, %v1756
        %v1758 = vrot.slane %v1756, 4
        %v1759 = vrot.slane %v1688, 5
        %v1760 = vsel %vm1200, %v1758, %v1759
        %v1761 = vrot.slane %v1689, 5
        %v1762 = vrot.slane %v1761, 4
        %v1763 = vrot.slane %v1690, 5
        %v1764 = vsel %vm1200, %v1762, %v1763
        %v1765 = vrot.slane %v1763, 4
        %v1766 = vrot.slane %v1691, 5
        %v1767 = vsel %vm1200, %v1765, %v1766
        %v1768 = vrot.slane %v1692, 5
        %v1769 = vrot.slane %v1768, 4
        %v1770 = vrot.slane %v1693, 5
        %v1771 = vsel %vm1200, %v1769, %v1770
        %v1772 = vrot.slane %v1770, 4
        %v1773 = vrot.slane %v1694, 5
        %v1774 = vsel %vm1200, %v1772, %v1773
        %1775 = vrot.lane.b32.xlu0 %v1722, 32
        %v1776 = vpop.permute.xlu0 %1775
        %1777 = vrot.lane.b32.xlu0 %v1725, 32
        %v1778 = vpop.permute.xlu0 %1777
        %1779 = vrot.lane.b32.xlu0 %v1729, 32
        %v1780 = vpop.permute.xlu0 %1779
        %1781 = vrot.lane.b32.xlu0 %v1732, 32
        %v1782 = vpop.permute.xlu0 %1781
        %1783 = vrot.lane.b32.xlu0 %v1736, 32
        %v1784 = vpop.permute.xlu0 %1783
        %1785 = vrot.lane.b32.xlu0 %v1739, 32
        %v1786 = vpop.permute.xlu0 %1785
        %1787 = vrot.lane.b32.xlu0 %v1743, 32
        %v1788 = vpop.permute.xlu0 %1787
        %1789 = vrot.lane.b32.xlu0 %v1746, 32
        %v1790 = vpop.permute.xlu0 %1789
        %1791 = vrot.lane.b32.xlu0 %v1750, 32
        %v1792 = vpop.permute.xlu0 %1791
        %1793 = vrot.lane.b32.xlu0 %v1753, 32
        %v1794 = vpop.permute.xlu0 %1793
        %1795 = vrot.lane.b32.xlu0 %v1757, 32
        %v1796 = vpop.permute.xlu0 %1795
        %1797 = vrot.lane.b32.xlu0 %v1760, 32
        %v1798 = vpop.permute.xlu0 %1797
        %1799 = vrot.lane.b32.xlu0 %v1764, 32
        %v1800 = vpop.permute.xlu0 %1799
        %1801 = vrot.lane.b32.xlu0 %v1767, 32
        %v1802 = vpop.permute.xlu0 %1801
        %1803 = vrot.lane.b32.xlu0 %v1771, 32
        %v1804 = vpop.permute.xlu0 %1803
        %1805 = vrot.lane.b32.xlu0 %v1774, 32
        %v1806 = vpop.permute.xlu0 %1805
        %1823 = vst.msk [vmem:[#allocation3 + $0x4] sm:$0xf] %vm1133, %v1776
        %1824 = vst.msk [vmem:[#allocation3 + $0x10] sm:$0xf] %vm1133, %v1778
        %1825 = vst.msk [vmem:[#allocation3 + $0x1c] sm:$0xf] %vm1133, %v1780
        %1826 = vst.msk [vmem:[#allocation3 + $0x28] sm:$0xf] %vm1133, %v1782
        %1827 = vst.msk [vmem:[#allocation3 + $0x34] sm:$0xf] %vm1133, %v1784
        %1828 = vst.msk [vmem:[#allocation3 + $0x40] sm:$0xf] %vm1133, %v1786
        %1829 = vst.msk [vmem:[#allocation3 + $0x4c] sm:$0xf] %vm1133, %v1788
        %1830 = vst.msk [vmem:[#allocation3 + $0x58] sm:$0xf] %vm1133, %v1790
        %1831 = vst.msk [vmem:[#allocation3 + $0x64] sm:$0xf] %vm1133, %v1792
        %1832 = vst.msk [vmem:[#allocation3 + $0x70] sm:$0xf] %vm1133, %v1794
        %1833 = vst.msk [vmem:[#allocation3 + $0x7c] sm:$0xf] %vm1133, %v1796
        %1834 = vst.msk [vmem:[#allocation3 + $0x88] sm:$0xf] %vm1133, %v1798
        %1835 = vst.msk [vmem:[#allocation3 + $0x94] sm:$0xf] %vm1133, %v1800
        %1836 = vst.msk [vmem:[#allocation3 + $0xa0] sm:$0xf] %vm1133, %v1802
        %1837 = vst.msk [vmem:[#allocation3 + $0xac] sm:$0xf] %vm1133, %v1804
        %1838 = vst.msk [vmem:[#allocation3 + $0xb8] sm:$0xf] %vm1133, %v1806
        %s1839 = sadd.s32 %s829, 2
        %s1840 = smul.u32 %s1839, 3
        %s1841 = smul.addr %s1840, 4
        %s1842 = scalar_lea.vmem [#allocation2], %s1841
        %v1843 = vld [vmem:[%s1842] sm:$0xf]
        %v1844 = vld [vmem:[%s1842 + $0x4] sm:$0xf]
        %v1845 = vld [vmem:[%s1842 + $0xc] sm:$0xf]
        %v1846 = vld [vmem:[%s1842 + $0x10] sm:$0xf]
        %v1847 = vld [vmem:[%s1842 + $0x18] sm:$0xf]
        %v1848 = vld [vmem:[%s1842 + $0x1c] sm:$0xf]
        %v1849 = vld [vmem:[%s1842 + $0x24] sm:$0xf]
        %v1850 = vld [vmem:[%s1842 + $0x28] sm:$0xf]
        %v1851 = vld [vmem:[%s1842 + $0x30] sm:$0xf]
        %v1852 = vld [vmem:[%s1842 + $0x34] sm:$0xf]
        %v1853 = vld [vmem:[%s1842 + $0x3c] sm:$0xf]
        %v1854 = vld [vmem:[%s1842 + $0x40] sm:$0xf]
        %v1855 = vld [vmem:[%s1842 + $0x48] sm:$0xf]
        %v1856 = vld [vmem:[%s1842 + $0x4c] sm:$0xf]
        %v1857 = vld [vmem:[%s1842 + $0x54] sm:$0xf]
        %v1858 = vld [vmem:[%s1842 + $0x58] sm:$0xf]
        %1875 = vrot.lane.b32.xlu0 %v1843, 64
        %v1876 = vpop.permute.xlu0 %1875
        %1877 = vrot.lane.b32.xlu0 %v1844, 64
        %v1878 = vpop.permute.xlu0 %1877
        %1879 = vrot.lane.b32.xlu0 %v1845, 64
        %v1880 = vpop.permute.xlu0 %1879
        %1881 = vrot.lane.b32.xlu0 %v1846, 64
        %v1882 = vpop.permute.xlu0 %1881
        %1883 = vrot.lane.b32.xlu0 %v1847, 64
        %v1884 = vpop.permute.xlu0 %1883
        %1885 = vrot.lane.b32.xlu0 %v1848, 64
        %v1886 = vpop.permute.xlu0 %1885
        %1887 = vrot.lane.b32.xlu0 %v1849, 64
        %v1888 = vpop.permute.xlu0 %1887
        %1889 = vrot.lane.b32.xlu0 %v1850, 64
        %v1890 = vpop.permute.xlu0 %1889
        %1891 = vrot.lane.b32.xlu0 %v1851, 64
        %v1892 = vpop.permute.xlu0 %1891
        %1893 = vrot.lane.b32.xlu0 %v1852, 64
        %v1894 = vpop.permute.xlu0 %1893
        %1895 = vrot.lane.b32.xlu0 %v1853, 64
        %v1896 = vpop.permute.xlu0 %1895
        %1897 = vrot.lane.b32.xlu0 %v1854, 64
        %v1898 = vpop.permute.xlu0 %1897
        %1899 = vrot.lane.b32.xlu0 %v1855, 64
        %v1900 = vpop.permute.xlu0 %1899
        %1901 = vrot.lane.b32.xlu0 %v1856, 64
        %v1902 = vpop.permute.xlu0 %1901
        %1903 = vrot.lane.b32.xlu0 %v1857, 64
        %v1904 = vpop.permute.xlu0 %1903
        %1905 = vrot.lane.b32.xlu0 %v1858, 64
        %v1906 = vpop.permute.xlu0 %1905
        %1923 = vst.msk [vmem:[#allocation3 + $0x4] sm:$0xf] %vm1305, %v1876
        %1924 = vst.msk [vmem:[#allocation3 + $0x10] sm:$0xf] %vm1305, %v1878
        %1925 = vst.msk [vmem:[#allocation3 + $0x1c] sm:$0xf] %vm1305, %v1880
        %1926 = vst.msk [vmem:[#allocation3 + $0x28] sm:$0xf] %vm1305, %v1882
        %1927 = vst.msk [vmem:[#allocation3 + $0x34] sm:$0xf] %vm1305, %v1884
        %1928 = vst.msk [vmem:[#allocation3 + $0x40] sm:$0xf] %vm1305, %v1886
        %1929 = vst.msk [vmem:[#allocation3 + $0x4c] sm:$0xf] %vm1305, %v1888
        %1930 = vst.msk [vmem:[#allocation3 + $0x58] sm:$0xf] %vm1305, %v1890
        %1931 = vst.msk [vmem:[#allocation3 + $0x64] sm:$0xf] %vm1305, %v1892
        %1932 = vst.msk [vmem:[#allocation3 + $0x70] sm:$0xf] %vm1305, %v1894
        %1933 = vst.msk [vmem:[#allocation3 + $0x7c] sm:$0xf] %vm1305, %v1896
        %1934 = vst.msk [vmem:[#allocation3 + $0x88] sm:$0xf] %vm1305, %v1898
        %1935 = vst.msk [vmem:[#allocation3 + $0x94] sm:$0xf] %vm1305, %v1900
        %1936 = vst.msk [vmem:[#allocation3 + $0xa0] sm:$0xf] %vm1305, %v1902
        %1937 = vst.msk [vmem:[#allocation3 + $0xac] sm:$0xf] %vm1305, %v1904
        %1938 = vst.msk [vmem:[#allocation3 + $0xb8] sm:$0xf] %vm1305, %v1906
        %v1939 = vld [vmem:[%s1842] sm:$0xf]
        %v1940 = vld [vmem:[%s1842 + $0x4] sm:$0xf]
        %v1941 = vld [vmem:[%s1842 + $0x8] sm:$0x1]
        %v1942 = vld [vmem:[%s1842 + $0xc] sm:$0xf]
        %v1943 = vld [vmem:[%s1842 + $0x10] sm:$0xf]
        %v1944 = vld [vmem:[%s1842 + $0x14] sm:$0x1]
        %v1945 = vld [vmem:[%s1842 + $0x18] sm:$0xf]
        %v1946 = vld [vmem:[%s1842 + $0x1c] sm:$0xf]
        %v1947 = vld [vmem:[%s1842 + $0x20] sm:$0x1]
        %v1948 = vld [vmem:[%s1842 + $0x24] sm:$0xf]
        %v1949 = vld [vmem:[%s1842 + $0x28] sm:$0xf]
        %v1950 = vld [vmem:[%s1842 + $0x2c] sm:$0x1]
        %v1951 = vld [vmem:[%s1842 + $0x30] sm:$0xf]
        %v1952 = vld [vmem:[%s1842 + $0x34] sm:$0xf]
        %v1953 = vld [vmem:[%s1842 + $0x38] sm:$0x1]
        %v1954 = vld [vmem:[%s1842 + $0x3c] sm:$0xf]
        %v1955 = vld [vmem:[%s1842 + $0x40] sm:$0xf]
        %v1956 = vld [vmem:[%s1842 + $0x44] sm:$0x1]
        %v1957 = vld [vmem:[%s1842 + $0x48] sm:$0xf]
        %v1958 = vld [vmem:[%s1842 + $0x4c] sm:$0xf]
        %v1959 = vld [vmem:[%s1842 + $0x50] sm:$0x1]
        %v1960 = vld [vmem:[%s1842 + $0x54] sm:$0xf]
        %v1961 = vld [vmem:[%s1842 + $0x58] sm:$0xf]
        %v1962 = vld [vmem:[%s1842 + $0x5c] sm:$0x1]
        %v1964 = vshrl.u32 %v1939, 16
        %v1966 = vrot.slane %v1964, 4
        %v1967 = vshll.u32 %v1939, 16
        %v1969 = vrot.slane %v1967, 5
        %v1970 = vor.u32 %v1966, %v1969
        %v1971 = vrot.slane %v1970, 4
        %v1973 = vshll.u32 %v1940, 16
        %v1975 = vrot.slane %v1973, 5
        %v1976 = vsel %vm892, %v1971, %v1975
        %v1977 = vshrl.u32 %v1940, 16
        %v1979 = vrot.slane %v1977, 4
        %v1980 = vor.u32 %v1979, %v1975
        %v1981 = vrot.slane %v1980, 4
        %v1983 = vshll.u32 %v1941, 16
        %v1985 = vrot.slane %v1983, 5
        %v1986 = vsel %vm892, %v1981, %v1985
        %v1988 = vshrl.u32 %v1942, 16
        %v1990 = vrot.slane %v1988, 4
        %v1991 = vshll.u32 %v1942, 16
        %v1993 = vrot.slane %v1991, 5
        %v1994 = vor.u32 %v1990, %v1993
        %v1995 = vrot.slane %v1994, 4
        %v1997 = vshll.u32 %v1943, 16
        %v1999 = vrot.slane %v1997, 5
        %v2000 = vsel %vm892, %v1995, %v1999
        %v2001 = vshrl.u32 %v1943, 16
        %v2003 = vrot.slane %v2001, 4
        %v2004 = vor.u32 %v2003, %v1999
        %v2005 = vrot.slane %v2004, 4
        %v2007 = vshll.u32 %v1944, 16
        %v2009 = vrot.slane %v2007, 5
        %v2010 = vsel %vm892, %v2005, %v2009
        %v2012 = vshrl.u32 %v1945, 16
        %v2014 = vrot.slane %v2012, 4
        %v2015 = vshll.u32 %v1945, 16
        %v2017 = vrot.slane %v2015, 5
        %v2018 = vor.u32 %v2014, %v2017
        %v2019 = vrot.slane %v2018, 4
        %v2021 = vshll.u32 %v1946, 16
        %v2023 = vrot.slane %v2021, 5
        %v2024 = vsel %vm892, %v2019, %v2023
        %v2025 = vshrl.u32 %v1946, 16
        %v2027 = vrot.slane %v2025, 4
        %v2028 = vor.u32 %v2027, %v2023
        %v2029 = vrot.slane %v2028, 4
        %v2031 = vshll.u32 %v1947, 16
        %v2033 = vrot.slane %v2031, 5
        %v2034 = vsel %vm892, %v2029, %v2033
        %v2036 = vshrl.u32 %v1948, 16
        %v2038 = vrot.slane %v2036, 4
        %v2039 = vshll.u32 %v1948, 16
        %v2041 = vrot.slane %v2039, 5
        %v2042 = vor.u32 %v2038, %v2041
        %v2043 = vrot.slane %v2042, 4
        %v2045 = vshll.u32 %v1949, 16
        %v2047 = vrot.slane %v2045, 5
        %v2048 = vsel %vm892, %v2043, %v2047
        %v2049 = vshrl.u32 %v1949, 16
        %v2051 = vrot.slane %v2049, 4
        %v2052 = vor.u32 %v2051, %v2047
        %v2053 = vrot.slane %v2052, 4
        %v2055 = vshll.u32 %v1950, 16
        %v2057 = vrot.slane %v2055, 5
        %v2058 = vsel %vm892, %v2053, %v2057
        %v2060 = vshrl.u32 %v1951, 16
        %v2062 = vrot.slane %v2060, 4
        %v2063 = vshll.u32 %v1951, 16
        %v2065 = vrot.slane %v2063, 5
        %v2066 = vor.u32 %v2062, %v2065
        %v2067 = vrot.slane %v2066, 4
        %v2069 = vshll.u32 %v1952, 16
        %v2071 = vrot.slane %v2069, 5
        %v2072 = vsel %vm892, %v2067, %v2071
        %v2073 = vshrl.u32 %v1952, 16
        %v2075 = vrot.slane %v2073, 4
        %v2076 = vor.u32 %v2075, %v2071
        %v2077 = vrot.slane %v2076, 4
        %v2079 = vshll.u32 %v1953, 16
        %v2081 = vrot.slane %v2079, 5
        %v2082 = vsel %vm892, %v2077, %v2081
        %v2084 = vshrl.u32 %v1954, 16
        %v2086 = vrot.slane %v2084, 4
        %v2087 = vshll.u32 %v1954, 16
        %v2089 = vrot.slane %v2087, 5
        %v2090 = vor.u32 %v2086, %v2089
        %v2091 = vrot.slane %v2090, 4
        %v2093 = vshll.u32 %v1955, 16
        %v2095 = vrot.slane %v2093, 5
        %v2096 = vsel %vm892, %v2091, %v2095
        %v2097 = vshrl.u32 %v1955, 16
        %v2099 = vrot.slane %v2097, 4
        %v2100 = vor.u32 %v2099, %v2095
        %v2101 = vrot.slane %v2100, 4
        %v2103 = vshll.u32 %v1956, 16
        %v2105 = vrot.slane %v2103, 5
        %v2106 = vsel %vm892, %v2101, %v2105
        %v2108 = vshrl.u32 %v1957, 16
        %v2110 = vrot.slane %v2108, 4
        %v2111 = vshll.u32 %v1957, 16
        %v2113 = vrot.slane %v2111, 5
        %v2114 = vor.u32 %v2110, %v2113
        %v2115 = vrot.slane %v2114, 4
        %v2117 = vshll.u32 %v1958, 16
        %v2119 = vrot.slane %v2117, 5
        %v2120 = vsel %vm892, %v2115, %v2119
        %v2121 = vshrl.u32 %v1958, 16
        %v2123 = vrot.slane %v2121, 4
        %v2124 = vor.u32 %v2123, %v2119
        %v2125 = vrot.slane %v2124, 4
        %v2127 = vshll.u32 %v1959, 16
        %v2129 = vrot.slane %v2127, 5
        %v2130 = vsel %vm892, %v2125, %v2129
        %v2132 = vshrl.u32 %v1960, 16
        %v2134 = vrot.slane %v2132, 4
        %v2135 = vshll.u32 %v1960, 16
        %v2137 = vrot.slane %v2135, 5
        %v2138 = vor.u32 %v2134, %v2137
        %v2139 = vrot.slane %v2138, 4
        %v2141 = vshll.u32 %v1961, 16
        %v2143 = vrot.slane %v2141, 5
        %v2144 = vsel %vm892, %v2139, %v2143
        %v2145 = vshrl.u32 %v1961, 16
        %v2147 = vrot.slane %v2145, 4
        %v2148 = vor.u32 %v2147, %v2143
        %v2149 = vrot.slane %v2148, 4
        %v2151 = vshll.u32 %v1962, 16
        %v2153 = vrot.slane %v2151, 5
        %v2154 = vsel %vm892, %v2149, %v2153
        %2155 = vrot.lane.b32.xlu0 %v1976, 96
        %v2156 = vpop.permute.xlu0 %2155
        %2157 = vrot.lane.b32.xlu0 %v1986, 96
        %v2158 = vpop.permute.xlu0 %2157
        %2159 = vrot.lane.b32.xlu0 %v2000, 96
        %v2160 = vpop.permute.xlu0 %2159
        %2161 = vrot.lane.b32.xlu0 %v2010, 96
        %v2162 = vpop.permute.xlu0 %2161
        %2163 = vrot.lane.b32.xlu0 %v2024, 96
        %v2164 = vpop.permute.xlu0 %2163
        %2165 = vrot.lane.b32.xlu0 %v2034, 96
        %v2166 = vpop.permute.xlu0 %2165
        %2167 = vrot.lane.b32.xlu0 %v2048, 96
        %v2168 = vpop.permute.xlu0 %2167
        %2169 = vrot.lane.b32.xlu0 %v2058, 96
        %v2170 = vpop.permute.xlu0 %2169
        %2171 = vrot.lane.b32.xlu0 %v2072, 96
        %v2172 = vpop.permute.xlu0 %2171
        %2173 = vrot.lane.b32.xlu0 %v2082, 96
        %v2174 = vpop.permute.xlu0 %2173
        %2175 = vrot.lane.b32.xlu0 %v2096, 96
        %v2176 = vpop.permute.xlu0 %2175
        %2177 = vrot.lane.b32.xlu0 %v2106, 96
        %v2178 = vpop.permute.xlu0 %2177
        %2179 = vrot.lane.b32.xlu0 %v2120, 96
        %v2180 = vpop.permute.xlu0 %2179
        %2181 = vrot.lane.b32.xlu0 %v2130, 96
        %v2182 = vpop.permute.xlu0 %2181
        %2183 = vrot.lane.b32.xlu0 %v2144, 96
        %v2184 = vpop.permute.xlu0 %2183
        %2185 = vrot.lane.b32.xlu0 %v2154, 96
        %v2186 = vpop.permute.xlu0 %2185
        %2203 = vst.msk [vmem:[#allocation3 + $0x4] sm:$0xf] %vm1406, %v2156
        %2204 = vst.msk [vmem:[#allocation3 + $0x10] sm:$0xf] %vm1406, %v2158
        %2205 = vst.msk [vmem:[#allocation3 + $0x1c] sm:$0xf] %vm1406, %v2160
        %2206 = vst.msk [vmem:[#allocation3 + $0x28] sm:$0xf] %vm1406, %v2162
        %2207 = vst.msk [vmem:[#allocation3 + $0x34] sm:$0xf] %vm1406, %v2164
        %2208 = vst.msk [vmem:[#allocation3 + $0x40] sm:$0xf] %vm1406, %v2166
        %2209 = vst.msk [vmem:[#allocation3 + $0x4c] sm:$0xf] %vm1406, %v2168
        %2210 = vst.msk [vmem:[#allocation3 + $0x58] sm:$0xf] %vm1406, %v2170
        %2211 = vst.msk [vmem:[#allocation3 + $0x64] sm:$0xf] %vm1406, %v2172
        %2212 = vst.msk [vmem:[#allocation3 + $0x70] sm:$0xf] %vm1406, %v2174
        %2213 = vst.msk [vmem:[#allocation3 + $0x7c] sm:$0xf] %vm1406, %v2176
        %2214 = vst.msk [vmem:[#allocation3 + $0x88] sm:$0xf] %vm1406, %v2178
        %2215 = vst.msk [vmem:[#allocation3 + $0x94] sm:$0xf] %vm1406, %v2180
        %2216 = vst.msk [vmem:[#allocation3 + $0xa0] sm:$0xf] %vm1406, %v2182
        %2217 = vst.msk [vmem:[#allocation3 + $0xac] sm:$0xf] %vm1406, %v2184
        %2218 = vst.msk [vmem:[#allocation3 + $0xb8] sm:$0xf] %vm1406, %v2186
        %v2219 = vld [vmem:[%s1842] sm:$0xe]
        %v2220 = vld [vmem:[%s1842 + $0x4] sm:$0xf]
        %v2221 = vld [vmem:[%s1842 + $0x8] sm:$0x1]
        %v2222 = vld [vmem:[%s1842 + $0xc] sm:$0xe]
        %v2223 = vld [vmem:[%s1842 + $0x10] sm:$0xf]
        %v2224 = vld [vmem:[%s1842 + $0x14] sm:$0x1]
        %v2225 = vld [vmem:[%s1842 + $0x18] sm:$0xe]
        %v2226 = vld [vmem:[%s1842 + $0x1c] sm:$0xf]
        %v2227 = vld [vmem:[%s1842 + $0x20] sm:$0x1]
        %v2228 = vld [vmem:[%s1842 + $0x24] sm:$0xe]
        %v2229 = vld [vmem:[%s1842 + $0x28] sm:$0xf]
        %v2230 = vld [vmem:[%s1842 + $0x2c] sm:$0x1]
        %v2231 = vld [vmem:[%s1842 + $0x30] sm:$0xe]
        %v2232 = vld [vmem:[%s1842 + $0x34] sm:$0xf]
        %v2233 = vld [vmem:[%s1842 + $0x38] sm:$0x1]
        %v2234 = vld [vmem:[%s1842 + $0x3c] sm:$0xe]
        %v2235 = vld [vmem:[%s1842 + $0x40] sm:$0xf]
        %v2236 = vld [vmem:[%s1842 + $0x44] sm:$0x1]
        %v2237 = vld [vmem:[%s1842 + $0x48] sm:$0xe]
        %v2238 = vld [vmem:[%s1842 + $0x4c] sm:$0xf]
        %v2239 = vld [vmem:[%s1842 + $0x50] sm:$0x1]
        %v2240 = vld [vmem:[%s1842 + $0x54] sm:$0xe]
        %v2241 = vld [vmem:[%s1842 + $0x58] sm:$0xf]
        %v2242 = vld [vmem:[%s1842 + $0x5c] sm:$0x1]
        %v2267 = vrot.slane %v2219, 5
        %v2268 = vrot.slane %v2267, 4
        %v2269 = vrot.slane %v2220, 5
        %v2270 = vsel %vm1200, %v2268, %v2269
        %v2271 = vrot.slane %v2269, 4
        %v2272 = vrot.slane %v2221, 5
        %v2273 = vsel %vm1200, %v2271, %v2272
        %v2274 = vrot.slane %v2222, 5
        %v2275 = vrot.slane %v2274, 4
        %v2276 = vrot.slane %v2223, 5
        %v2277 = vsel %vm1200, %v2275, %v2276
        %v2278 = vrot.slane %v2276, 4
        %v2279 = vrot.slane %v2224, 5
        %v2280 = vsel %vm1200, %v2278, %v2279
        %v2281 = vrot.slane %v2225, 5
        %v2282 = vrot.slane %v2281, 4
        %v2283 = vrot.slane %v2226, 5
        %v2284 = vsel %vm1200, %v2282, %v2283
        %v2285 = vrot.slane %v2283, 4
        %v2286 = vrot.slane %v2227, 5
        %v2287 = vsel %vm1200, %v2285, %v2286
        %v2288 = vrot.slane %v2228, 5
        %v2289 = vrot.slane %v2288, 4
        %v2290 = vrot.slane %v2229, 5
        %v2291 = vsel %vm1200, %v2289, %v2290
        %v2292 = vrot.slane %v2290, 4
        %v2293 = vrot.slane %v2230, 5
        %v2294 = vsel %vm1200, %v2292, %v2293
        %v2295 = vrot.slane %v2231, 5
        %v2296 = vrot.slane %v2295, 4
        %v2297 = vrot.slane %v2232, 5
        %v2298 = vsel %vm1200, %v2296, %v2297
        %v2299 = vrot.slane %v2297, 4
        %v2300 = vrot.slane %v2233, 5
        %v2301 = vsel %vm1200, %v2299, %v2300
        %v2302 = vrot.slane %v2234, 5
        %v2303 = vrot.slane %v2302, 4
        %v2304 = vrot.slane %v2235, 5
        %v2305 = vsel %vm1200, %v2303, %v2304
        %v2306 = vrot.slane %v2304, 4
        %v2307 = vrot.slane %v2236, 5
        %v2308 = vsel %vm1200, %v2306, %v2307
        %v2309 = vrot.slane %v2237, 5
        %v2310 = vrot.slane %v2309, 4
        %v2311 = vrot.slane %v2238, 5
        %v2312 = vsel %vm1200, %v2310, %v2311
        %v2313 = vrot.slane %v2311, 4
        %v2314 = vrot.slane %v2239, 5
        %v2315 = vsel %vm1200, %v2313, %v2314
        %v2316 = vrot.slane %v2240, 5
        %v2317 = vrot.slane %v2316, 4
        %v2318 = vrot.slane %v2241, 5
        %v2319 = vsel %vm1200, %v2317, %v2318
        %v2320 = vrot.slane %v2318, 4
        %v2321 = vrot.slane %v2242, 5
        %v2322 = vsel %vm1200, %v2320, %v2321
        %2339 = vst.msk [vmem:[#allocation3 + $0x8] sm:$0xf] %vm849, %v2270
        %2340 = vst.msk [vmem:[#allocation3 + $0x14] sm:$0xf] %vm849, %v2273
        %2341 = vst.msk [vmem:[#allocation3 + $0x20] sm:$0xf] %vm849, %v2277
        %2342 = vst.msk [vmem:[#allocation3 + $0x2c] sm:$0xf] %vm849, %v2280
        %2343 = vst.msk [vmem:[#allocation3 + $0x38] sm:$0xf] %vm849, %v2284
        %2344 = vst.msk [vmem:[#allocation3 + $0x44] sm:$0xf] %vm849, %v2287
        %2345 = vst.msk [vmem:[#allocation3 + $0x50] sm:$0xf] %vm849, %v2291
        %2346 = vst.msk [vmem:[#allocation3 + $0x5c] sm:$0xf] %vm849, %v2294
        %2347 = vst.msk [vmem:[#allocation3 + $0x68] sm:$0xf] %vm849, %v2298
        %2348 = vst.msk [vmem:[#allocation3 + $0x74] sm:$0xf] %vm849, %v2301
        %2349 = vst.msk [vmem:[#allocation3 + $0x80] sm:$0xf] %vm849, %v2305
        %2350 = vst.msk [vmem:[#allocation3 + $0x8c] sm:$0xf] %vm849, %v2308
        %2351 = vst.msk [vmem:[#allocation3 + $0x98] sm:$0xf] %vm849, %v2312
        %2352 = vst.msk [vmem:[#allocation3 + $0xa4] sm:$0xf] %vm849, %v2315
        %2353 = vst.msk [vmem:[#allocation3 + $0xb0] sm:$0xf] %vm849, %v2319
        %2354 = vst.msk [vmem:[#allocation3 + $0xbc] sm:$0xf] %vm849, %v2322
        %v2355 = vld [vmem:[#allocation3] sm:$0xff]
        %v2356 = vld [vmem:[#allocation3 + $0x8] sm:$0xf]
        %v2357 = vld [vmem:[#allocation3 + $0xc] sm:$0xff]
        %v2358 = vld [vmem:[#allocation3 + $0x14] sm:$0xf]
        %v2359 = vld [vmem:[#allocation3 + $0x18] sm:$0xff]
        %v2360 = vld [vmem:[#allocation3 + $0x20] sm:$0xf]
        %v2361 = vld [vmem:[#allocation3 + $0x24] sm:$0xff]
        %v2362 = vld [vmem:[#allocation3 + $0x2c] sm:$0xf]
        %v2363 = vld [vmem:[#allocation3 + $0x30] sm:$0xff]
        %v2364 = vld [vmem:[#allocation3 + $0x38] sm:$0xf]
        %v2365 = vld [vmem:[#allocation3 + $0x3c] sm:$0xff]
        %v2366 = vld [vmem:[#allocation3 + $0x44] sm:$0xf]
        %v2367 = vld [vmem:[#allocation3 + $0x48] sm:$0xff]
        %v2368 = vld [vmem:[#allocation3 + $0x50] sm:$0xf]
        %v2369 = vld [vmem:[#allocation3 + $0x54] sm:$0xff]
        %v2370 = vld [vmem:[#allocation3 + $0x5c] sm:$0xf]
        %v2371 = vld [vmem:[#allocation3 + $0x60] sm:$0xff]
        %v2372 = vld [vmem:[#allocation3 + $0x68] sm:$0xf]
        %v2373 = vld [vmem:[#allocation3 + $0x6c] sm:$0xff]
        %v2374 = vld [vmem:[#allocation3 + $0x74] sm:$0xf]
        %v2375 = vld [vmem:[#allocation3 + $0x78] sm:$0xff]
        %v2376 = vld [vmem:[#allocation3 + $0x80] sm:$0xf]
        %v2377 = vld [vmem:[#allocation3 + $0x84] sm:$0xff]
        %v2378 = vld [vmem:[#allocation3 + $0x8c] sm:$0xf]
        %v2379 = vld [vmem:[#allocation3 + $0x90] sm:$0xff]
        %v2380 = vld [vmem:[#allocation3 + $0x98] sm:$0xf]
        %v2381 = vld [vmem:[#allocation3 + $0x9c] sm:$0xff]
        %v2382 = vld [vmem:[#allocation3 + $0xa4] sm:$0xf]
        %v2383 = vld [vmem:[#allocation3 + $0xa8] sm:$0xff]
        %v2384 = vld [vmem:[#allocation3 + $0xb0] sm:$0xf]
        %v2385 = vld [vmem:[#allocation3 + $0xb4] sm:$0xff]
        %v2386 = vld [vmem:[#allocation3 + $0xbc] sm:$0xf]
        %v2387 = vld [vmem:[%s1] sm:$0xf]
        %v2388 = vld [vmem:[%s1 + $0x4] sm:$0xf]
        %v2389 = vld [vmem:[%s1 + $0x8] sm:$0xf]
        %v2390 = vld [vmem:[%s1 + $0xc] sm:$0xf]
        %v2391 = vld [vmem:[%s1 + $0x10] sm:$0xf]
        %v2392 = vld [vmem:[%s1 + $0x14] sm:$0xf]
        %v2393 = vld [vmem:[%s1 + $0x18] sm:$0xf]
        %v2394 = vld [vmem:[%s1 + $0x1c] sm:$0xf]
        %v2395 = vld [vmem:[%s1 + $0x20] sm:$0xf]
        %v2396 = vld [vmem:[%s1 + $0x24] sm:$0xf]
        %v2397 = vld [vmem:[%s1 + $0x28] sm:$0xf]
        %v2398 = vld [vmem:[%s1 + $0x2c] sm:$0xf]
        %v2399 = vld [vmem:[%s1 + $0x30] sm:$0xf]
        %v2400 = vld [vmem:[%s1 + $0x34] sm:$0xf]
        %v2401 = vld [vmem:[%s1 + $0x38] sm:$0xf]
        %v2402 = vld [vmem:[%s1 + $0x3c] sm:$0xf]
        %v2403 = vld [vmem:[%s1 + $0x40] sm:$0xf]
        %v2404 = vld [vmem:[%s1 + $0x44] sm:$0xf]
        %v2405 = vld [vmem:[%s1 + $0x48] sm:$0xf]
        %v2406 = vld [vmem:[%s1 + $0x4c] sm:$0xf]
        %v2407 = vld [vmem:[%s1 + $0x50] sm:$0xf]
        %v2408 = vld [vmem:[%s1 + $0x54] sm:$0xf]
        %v2409 = vld [vmem:[%s1 + $0x58] sm:$0xf]
        %v2410 = vld [vmem:[%s1 + $0x5c] sm:$0xf]
        %v2411 = vld [vmem:[%s1 + $0x60] sm:$0xf]
        %v2412 = vld [vmem:[%s1 + $0x64] sm:$0xf]
        %v2413 = vld [vmem:[%s1 + $0x68] sm:$0xf]
        %v2414 = vld [vmem:[%s1 + $0x6c] sm:$0xf]
        %v2415 = vld [vmem:[%s1 + $0x70] sm:$0xf]
        %v2416 = vld [vmem:[%s1 + $0x74] sm:$0xf]
        %v2417 = vld [vmem:[%s1 + $0x78] sm:$0xf]
        %v2418 = vld [vmem:[%s1 + $0x7c] sm:$0xf]
        %v2419 = vld [vmem:[%s1 + $0x80] sm:$0xf]
        %v2420 = vld [vmem:[%s1 + $0x84] sm:$0xf]
        %v2421 = vld [vmem:[%s1 + $0x88] sm:$0xf]
        %v2422 = vld [vmem:[%s1 + $0x8c] sm:$0xf]
        %v2423 = vld [vmem:[%s2] sm:$0x1]
        %v2425 = vlaneseq
        %v2426 = vshrl.u32 %v2425, 7
        %v2427 = vsub.s32 0, %v2426
        %v2428 = vrot.slane %v2423, %v2427
        %v2462 = vunpack.c.l.b16 %v2355
        %v2463 = vunpack.c.h.b16 %v2355
        %v2464 = vunpack.c.l.b16 %v2356
        %v2465 = vunpack.c.l.b16 %v2357
        %v2466 = vunpack.c.h.b16 %v2357
        %v2467 = vunpack.c.l.b16 %v2358
        %v2468 = vunpack.c.l.b16 %v2359
        %v2469 = vunpack.c.h.b16 %v2359
        %v2470 = vunpack.c.l.b16 %v2360
        %v2471 = vunpack.c.l.b16 %v2361
        %v2472 = vunpack.c.h.b16 %v2361
        %v2473 = vunpack.c.l.b16 %v2362
        %v2474 = vunpack.c.l.b16 %v2363
        %v2475 = vunpack.c.h.b16 %v2363
        %v2476 = vunpack.c.l.b16 %v2364
        %v2477 = vunpack.c.l.b16 %v2365
        %v2478 = vunpack.c.h.b16 %v2365
        %v2479 = vunpack.c.l.b16 %v2366
        %v2480 = vunpack.c.l.b16 %v2367
        %v2481 = vunpack.c.h.b16 %v2367
        %v2482 = vunpack.c.l.b16 %v2368
        %v2483 = vunpack.c.l.b16 %v2369
        %v2484 = vunpack.c.h.b16 %v2369
        %v2485 = vunpack.c.l.b16 %v2370
        %v2486 = vunpack.c.l.b16 %v2371
        %v2487 = vunpack.c.h.b16 %v2371
        %v2488 = vunpack.c.l.b16 %v2372
        %v2489 = vunpack.c.l.b16 %v2373
        %v2490 = vunpack.c.h.b16 %v2373
        %v2491 = vunpack.c.l.b16 %v2374
        %v2492 = vunpack.c.l.b16 %v2375
        %v2493 = vunpack.c.h.b16 %v2375
        %v2494 = vunpack.c.l.b16 %v2376
        %v2495 = vunpack.c.l.b16 %v2377
        %v2496 = vunpack.c.h.b16 %v2377
        %v2497 = vunpack.c.l.b16 %v2378
        %v2498 = vunpack.c.l.b16 %v2379
        %v2499 = vunpack.c.h.b16 %v2379
        %v2500 = vunpack.c.l.b16 %v2380
        %v2501 = vunpack.c.l.b16 %v2381
        %v2502 = vunpack.c.h.b16 %v2381
        %v2503 = vunpack.c.l.b16 %v2382
        %v2504 = vunpack.c.l.b16 %v2383
        %v2505 = vunpack.c.h.b16 %v2383
        %v2506 = vunpack.c.l.b16 %v2384
        %v2507 = vunpack.c.l.b16 %v2385
        %v2508 = vunpack.c.h.b16 %v2385
        %v2509 = vunpack.c.l.b16 %v2386
        %v2510 = vpack.c.b16 %v2465, %v2462
        %v2511 = vpack.c.b16 %v2466, %v2463
        %v2512 = vpack.c.b16 %v2467, %v2464
        %v2513 = vpack.c.b16 %v2471, %v2468
        %v2514 = vpack.c.b16 %v2472, %v2469
        %v2515 = vpack.c.b16 %v2473, %v2470
        %v2516 = vpack.c.b16 %v2477, %v2474
        %v2517 = vpack.c.b16 %v2478, %v2475
        %v2518 = vpack.c.b16 %v2479, %v2476
        %v2519 = vpack.c.b16 %v2483, %v2480
        %v2520 = vpack.c.b16 %v2484, %v2481
        %v2521 = vpack.c.b16 %v2485, %v2482
        %v2522 = vpack.c.b16 %v2489, %v2486
        %v2523 = vpack.c.b16 %v2490, %v2487
        %v2524 = vpack.c.b16 %v2491, %v2488
        %v2525 = vpack.c.b16 %v2495, %v2492
        %v2526 = vpack.c.b16 %v2496, %v2493
        %v2527 = vpack.c.b16 %v2497, %v2494
        %v2528 = vpack.c.b16 %v2501, %v2498
        %v2529 = vpack.c.b16 %v2502, %v2499
        %v2530 = vpack.c.b16 %v2503, %v2500
        %v2531 = vpack.c.b16 %v2507, %v2504
        %v2532 = vpack.c.b16 %v2508, %v2505
        %v2533 = vpack.c.b16 %v2509, %v2506
        %v2586 = vunpack.c.l.b16 %v2387
        %v2587 = vunpack.c.l.b16 %v2388
        %v2588 = vunpack.c.l.b16 %v2389
        %v2589 = vunpack.c.l.b16 %v2390
        %v2590 = vunpack.c.l.b16 %v2391
        %v2591 = vunpack.c.l.b16 %v2392
        %v2592 = vunpack.c.l.b16 %v2393
        %v2593 = vunpack.c.l.b16 %v2394
        %v2594 = vunpack.c.l.b16 %v2395
        %v2595 = vunpack.c.l.b16 %v2396
        %v2596 = vunpack.c.l.b16 %v2397
        %v2597 = vunpack.c.l.b16 %v2398
        %v2598 = vunpack.c.l.b16 %v2399
        %v2599 = vunpack.c.l.b16 %v2400
        %v2600 = vunpack.c.l.b16 %v2401
        %v2601 = vunpack.c.l.b16 %v2402
        %v2602 = vunpack.c.l.b16 %v2403
        %v2603 = vunpack.c.l.b16 %v2404
        %v2604 = vunpack.c.l.b16 %v2405
        %v2605 = vunpack.c.l.b16 %v2406
        %v2606 = vunpack.c.l.b16 %v2407
        %v2607 = vunpack.c.l.b16 %v2408
        %v2608 = vunpack.c.l.b16 %v2409
        %v2609 = vunpack.c.l.b16 %v2410
        %v2610 = vunpack.c.l.b16 %v2411
        %v2611 = vunpack.c.l.b16 %v2412
        %v2612 = vunpack.c.l.b16 %v2413
        %v2613 = vunpack.c.l.b16 %v2414
        %v2614 = vunpack.c.l.b16 %v2415
        %v2615 = vunpack.c.l.b16 %v2416
        %v2616 = vunpack.c.l.b16 %v2417
        %v2617 = vunpack.c.l.b16 %v2418
        %v2618 = vunpack.c.l.b16 %v2419
        %v2619 = vunpack.c.l.b16 %v2420
        %v2620 = vunpack.c.l.b16 %v2421
        %v2621 = vunpack.c.l.b16 %v2422
        %v2622 = vpack.c.b16 %v2587, %v2586
        %v2623 = vpack.c.b16 %v2589, %v2588
        %v2624 = vpack.c.b16 %v2591, %v2590
        %v2625 = vpack.c.b16 %v2593, %v2592
        %v2626 = vpack.c.b16 %v2595, %v2594
        %v2627 = vpack.c.b16 %v2597, %v2596
        %v2628 = vpack.c.b16 %v2599, %v2598
        %v2629 = vpack.c.b16 %v2601, %v2600
        %v2630 = vpack.c.b16 %v2603, %v2602
        %v2631 = vpack.c.b16 %v2605, %v2604
        %v2632 = vpack.c.b16 %v2607, %v2606
        %v2633 = vpack.c.b16 %v2609, %v2608
        %v2634 = vpack.c.b16 %v2611, %v2610
        %v2635 = vpack.c.b16 %v2613, %v2612
        %v2636 = vpack.c.b16 %v2615, %v2614
        %v2637 = vpack.c.b16 %v2617, %v2616
        %v2638 = vpack.c.b16 %v2619, %v2618
        %v2639 = vpack.c.b16 %v2621, %v2620
        %vm2658 = vcmask 261120
        %v2660 = vsel %vm2658, %v2512, 0
        %v2663 = vsel %vm2658, %v2515, 0
        %v2666 = vsel %vm2658, %v2518, 0
        %v2669 = vsel %vm2658, %v2521, 0
        %v2672 = vsel %vm2658, %v2524, 0
        %v2675 = vsel %vm2658, %v2527, 0
        %v2678 = vsel %vm2658, %v2530, 0
        %v2681 = vsel %vm2658, %v2533, 0
        %2683 = vmatprep.subr.bf16.mxu0 0
        %2684 = vmatpush1.bf16.msra.mxu0 %v2629
        %2685 = vmatprep.subr.bf16.mxu0 0
        %2686 = vmatpush1.bf16.msra.mxu0 %v2628
        %2687 = vmatprep.subr.bf16.mxu0 0
        %2688 = vmatpush1.bf16.msra.mxu0 %v2627
        %2689 = vmatprep.subr.bf16.mxu0 0
        %2690 = vmatpush1.bf16.msra.mxu0 %v2626
        %2691 = vmatprep.subr.bf16.mxu0 0
        %2692 = vmatpush1.bf16.msra.mxu0 %v2625
        %2693 = vmatprep.subr.bf16.mxu0 0
        %2694 = vmatpush1.bf16.msra.mxu0 %v2624
        %2695 = vmatprep.subr.bf16.mxu0 0
        %2696 = vmatpush1.bf16.msra.mxu0 %v2623
        %2697 = vmatprep.subr.bf16.mxu0 0
        %2698 = vmatpush1.bf16.msra.mxu0 %v2622
        %2699 = vmatprep.subr.bf16.mxu0 0
        %2700 = vmatpush2.bf16.msra.mxu0 %v2637
        %2701 = vmatprep.subr.bf16.mxu0 0
        %2702 = vmatpush2.bf16.msra.mxu0 %v2636
        %2703 = vmatprep.subr.bf16.mxu0 0
        %2704 = vmatpush2.bf16.msra.mxu0 %v2635
        %2705 = vmatprep.subr.bf16.mxu0 0
        %2706 = vmatpush2.bf16.msra.mxu0 %v2634
        %2707 = vmatprep.subr.bf16.mxu0 0
        %2708 = vmatpush2.bf16.msra.mxu0 %v2633
        %2709 = vmatprep.subr.bf16.mxu0 0
        %2710 = vmatpush2.bf16.msra.mxu0 %v2632
        %2711 = vmatprep.subr.bf16.mxu0 0
        %2712 = vmatpush2.bf16.msra.mxu0 %v2631
        %2713 = vmatprep.subr.bf16.mxu0 0
        %2714 = vmatpush2.bf16.msra.mxu0 %v2630
        %2715 = vmatprep.mubr.bf16.mxu0 %v2511
        %2716 = vmatmul.mubr.bf16.gmra.mxu0 %v2510
        %v2717 = vpop.f32.mrf.mxu0
        %v2718 = vadd.f32 %v2428, %v2717
        %v2719 = vpop.f32.mrf.mxu0
        %v2720 = vpop.f32.mrf.mxu0
        %v2721 = vadd.f32 %v2428, %v2720
        %v2722 = vpop.f32.mrf.mxu0
        %2723 = vmatprep.mubr.bf16.mxu0 %v2514
        %2724 = vmatmul.mubr.bf16.gmra.mxu0 %v2513
        %v2725 = vpop.f32.mrf.mxu0
        %v2726 = vadd.f32 %v2428, %v2725
        %v2727 = vpop.f32.mrf.mxu0
        %v2728 = vpop.f32.mrf.mxu0
        %v2729 = vadd.f32 %v2428, %v2728
        %v2730 = vpop.f32.mrf.mxu0
        %2731 = vmatprep.mubr.bf16.mxu0 %v2517
        %2732 = vmatmul.mubr.bf16.gmra.mxu0 %v2516
        %v2733 = vpop.f32.mrf.mxu0
        %v2734 = vadd.f32 %v2428, %v2733
        %v2735 = vpop.f32.mrf.mxu0
        %v2736 = vpop.f32.mrf.mxu0
        %v2737 = vadd.f32 %v2428, %v2736
        %v2738 = vpop.f32.mrf.mxu0
        %2739 = vmatprep.mubr.bf16.mxu0 %v2520
        %2740 = vmatmul.mubr.bf16.gmra.mxu0 %v2519
        %v2741 = vpop.f32.mrf.mxu0
        %v2742 = vadd.f32 %v2428, %v2741
        %v2743 = vpop.f32.mrf.mxu0
        %v2744 = vpop.f32.mrf.mxu0
        %v2745 = vadd.f32 %v2428, %v2744
        %v2746 = vpop.f32.mrf.mxu0
        %2747 = vmatprep.mubr.bf16.mxu0 %v2523
        %2748 = vmatmul.mubr.bf16.gmra.mxu0 %v2522
        %v2749 = vpop.f32.mrf.mxu0
        %v2750 = vadd.f32 %v2428, %v2749
        %v2751 = vpop.f32.mrf.mxu0
        %v2752 = vpop.f32.mrf.mxu0
        %v2753 = vadd.f32 %v2428, %v2752
        %v2754 = vpop.f32.mrf.mxu0
        %2755 = vmatprep.mubr.bf16.mxu0 %v2526
        %2756 = vmatmul.mubr.bf16.gmra.mxu0 %v2525
        %v2757 = vpop.f32.mrf.mxu0
        %v2758 = vadd.f32 %v2428, %v2757
        %v2759 = vpop.f32.mrf.mxu0
        %v2760 = vpop.f32.mrf.mxu0
        %v2761 = vadd.f32 %v2428, %v2760
        %v2762 = vpop.f32.mrf.mxu0
        %2763 = vmatprep.mubr.bf16.mxu0 %v2529
        %2764 = vmatmul.mubr.bf16.gmra.mxu0 %v2528
        %v2765 = vpop.f32.mrf.mxu0
        %v2766 = vadd.f32 %v2428, %v2765
        %v2767 = vpop.f32.mrf.mxu0
        %v2768 = vpop.f32.mrf.mxu0
        %v2769 = vadd.f32 %v2428, %v2768
        %v2770 = vpop.f32.mrf.mxu0
        %2771 = vmatprep.mubr.bf16.mxu0 %v2532
        %2772 = vmatmul.mubr.bf16.gmra.mxu0 %v2531
        %v2773 = vpop.f32.mrf.mxu0
        %v2774 = vadd.f32 %v2428, %v2773
        %v2775 = vpop.f32.mrf.mxu0
        %v2776 = vpop.f32.mrf.mxu0
        %v2777 = vadd.f32 %v2428, %v2776
        %v2778 = vpop.f32.mrf.mxu0
        %2779 = vdwg.mxu0
        %2780 = vmatprep.subr.bf16.mxu0 0
        %2781 = vmatpush1.bf16.msra.mxu0 0
        %2782 = vmatprep.subr.bf16.mxu0 0
        %2783 = vmatpush1.bf16.msra.mxu0 0
        %2784 = vmatprep.subr.bf16.mxu0 0
        %2785 = vmatpush1.bf16.msra.mxu0 0
        %2786 = vmatprep.subr.bf16.mxu0 0
        %2787 = vmatpush1.bf16.msra.mxu0 0
        %2788 = vmatprep.subr.bf16.mxu0 0
        %2789 = vmatpush1.bf16.msra.mxu0 0
        %2790 = vmatprep.subr.bf16.mxu0 0
        %2791 = vmatpush1.bf16.msra.mxu0 0
        %2792 = vmatprep.subr.bf16.mxu0 0
        %2793 = vmatpush1.bf16.msra.mxu0 %v2639
        %2794 = vmatprep.subr.bf16.mxu0 0
        %2795 = vmatpush1.bf16.msra.mxu0 %v2638
        %2796 = vmatprep.subr.bf16.mxu0 0
        %2797 = vmatpush2.bf16.msra.mxu0 0
        %2798 = vmatprep.subr.bf16.mxu0 0
        %2799 = vmatpush2.bf16.msra.mxu0 0
        %2800 = vmatprep.subr.bf16.mxu0 0
        %2801 = vmatpush2.bf16.msra.mxu0 0
        %2802 = vmatprep.subr.bf16.mxu0 0
        %2803 = vmatpush2.bf16.msra.mxu0 0
        %2804 = vmatprep.subr.bf16.mxu0 0
        %2805 = vmatpush2.bf16.msra.mxu0 0
        %2806 = vmatprep.subr.bf16.mxu0 0
        %2807 = vmatpush2.bf16.msra.mxu0 0
        %2808 = vmatprep.subr.bf16.mxu0 0
        %2809 = vmatpush2.bf16.msra.mxu0 0
        %2810 = vmatprep.subr.bf16.mxu0 0
        %2811 = vmatpush2.bf16.msra.mxu0 0
        %2812 = vmatprep.mubr.bf16.mxu0 0
        %2813 = vmatmul.mubr.bf16.gmra.mxu0 %v2660
        %v2814 = vpop.f32.mrf.mxu0
        %v2815 = vadd.f32 %v2718, %v2814
        %v2816 = vpop.f32.mrf.mxu0
        %v2817 = vpop.f32.mrf.mxu0
        %v2818 = vadd.f32 %v2721, %v2817
        %v2819 = vpop.f32.mrf.mxu0
        %2820 = vmatprep.mubr.bf16.mxu0 0
        %2821 = vmatmul.mubr.bf16.gmra.mxu0 %v2663
        %v2822 = vpop.f32.mrf.mxu0
        %v2823 = vadd.f32 %v2726, %v2822
        %v2824 = vpop.f32.mrf.mxu0
        %v2825 = vpop.f32.mrf.mxu0
        %v2826 = vadd.f32 %v2729, %v2825
        %v2827 = vpop.f32.mrf.mxu0
        %2828 = vmatprep.mubr.bf16.mxu0 0
        %2829 = vmatmul.mubr.bf16.gmra.mxu0 %v2666
        %v2830 = vpop.f32.mrf.mxu0
        %v2831 = vadd.f32 %v2734, %v2830
        %v2832 = vpop.f32.mrf.mxu0
        %v2833 = vpop.f32.mrf.mxu0
        %v2834 = vadd.f32 %v2737, %v2833
        %v2835 = vpop.f32.mrf.mxu0
        %2836 = vmatprep.mubr.bf16.mxu0 0
        %2837 = vmatmul.mubr.bf16.gmra.mxu0 %v2669
        %v2838 = vpop.f32.mrf.mxu0
        %v2839 = vadd.f32 %v2742, %v2838
        %v2840 = vpop.f32.mrf.mxu0
        %v2841 = vpop.f32.mrf.mxu0
        %v2842 = vadd.f32 %v2745, %v2841
        %v2843 = vpop.f32.mrf.mxu0
        %2844 = vmatprep.mubr.bf16.mxu0 0
        %2845 = vmatmul.mubr.bf16.gmra.mxu0 %v2672
        %v2846 = vpop.f32.mrf.mxu0
        %v2847 = vadd.f32 %v2750, %v2846
        %v2848 = vpop.f32.mrf.mxu0
        %v2849 = vpop.f32.mrf.mxu0
        %v2850 = vadd.f32 %v2753, %v2849
        %v2851 = vpop.f32.mrf.mxu0
        %2852 = vmatprep.mubr.bf16.mxu0 0
        %2853 = vmatmul.mubr.bf16.gmra.mxu0 %v2675
        %v2854 = vpop.f32.mrf.mxu0
        %v2855 = vadd.f32 %v2758, %v2854
        %v2856 = vpop.f32.mrf.mxu0
        %v2857 = vpop.f32.mrf.mxu0
        %v2858 = vadd.f32 %v2761, %v2857
        %v2859 = vpop.f32.mrf.mxu0
        %2860 = vmatprep.mubr.bf16.mxu0 0
        %2861 = vmatmul.mubr.bf16.gmra.mxu0 %v2678
        %v2862 = vpop.f32.mrf.mxu0
        %v2863 = vadd.f32 %v2766, %v2862
        %v2864 = vpop.f32.mrf.mxu0
        %v2865 = vpop.f32.mrf.mxu0
        %v2866 = vadd.f32 %v2769, %v2865
        %v2867 = vpop.f32.mrf.mxu0
        %2868 = vmatprep.mubr.bf16.mxu0 0
        %2869 = vmatmul.mubr.bf16.gmra.mxu0 %v2681
        %v2870 = vpop.f32.mrf.mxu0
        %v2871 = vadd.f32 %v2774, %v2870
        %v2872 = vpop.f32.mrf.mxu0
        %v2873 = vpop.f32.mrf.mxu0
        %v2874 = vadd.f32 %v2777, %v2873
        %v2875 = vpop.f32.mrf.mxu0
        %2876 = vdwg.mxu0
        %v2877 = vmax.f32 %v2815, 0.0
        %v2878 = vmax.f32 %v2818, 0.0
        %v2879 = vmax.f32 %v2823, 0.0
        %v2880 = vmax.f32 %v2826, 0.0
        %v2881 = vmax.f32 %v2831, 0.0
        %v2882 = vmax.f32 %v2834, 0.0
        %v2883 = vmax.f32 %v2839, 0.0
        %v2884 = vmax.f32 %v2842, 0.0
        %v2885 = vmax.f32 %v2847, 0.0
        %v2886 = vmax.f32 %v2850, 0.0
        %v2887 = vmax.f32 %v2855, 0.0
        %v2888 = vmax.f32 %v2858, 0.0
        %v2889 = vmax.f32 %v2863, 0.0
        %v2890 = vmax.f32 %v2866, 0.0
        %v2891 = vmax.f32 %v2871, 0.0
        %v2892 = vmax.f32 %v2874, 0.0
        %v2893 = vpack.c.bf16 %v2878, %v2877
        %v2894 = vpack.c.bf16 %v2880, %v2879
        %v2895 = vpack.c.bf16 %v2882, %v2881
        %v2896 = vpack.c.bf16 %v2884, %v2883
        %v2897 = vpack.c.bf16 %v2886, %v2885
        %v2898 = vpack.c.bf16 %v2888, %v2887
        %v2899 = vpack.c.bf16 %v2890, %v2889
        %v2900 = vpack.c.bf16 %v2892, %v2891
        %v2901 = vld [vmem:[%s3] sm:$0xf]
        %v2902 = vld [vmem:[%s3 + $0x4] sm:$0xf]
        %v2903 = vld [vmem:[%s3 + $0x8] sm:$0xf]
        %v2904 = vld [vmem:[%s3 + $0xc] sm:$0xf]
        %v2905 = vld [vmem:[%s3 + $0x10] sm:$0xf]
        %v2906 = vld [vmem:[%s3 + $0x14] sm:$0xf]
        %v2907 = vld [vmem:[%s3 + $0x18] sm:$0xf]
        %v2908 = vld [vmem:[%s3 + $0x1c] sm:$0xf]
        %v2909 = vld [vmem:[%s3 + $0x20] sm:$0xf]
        %v2910 = vld [vmem:[%s3 + $0x24] sm:$0xf]
        %v2911 = vld [vmem:[%s3 + $0x28] sm:$0xf]
        %v2912 = vld [vmem:[%s3 + $0x2c] sm:$0xf]
        %v2913 = vld [vmem:[%s3 + $0x30] sm:$0xf]
        %v2914 = vld [vmem:[%s3 + $0x34] sm:$0xf]
        %v2915 = vld [vmem:[%s3 + $0x38] sm:$0xf]
        %v2916 = vld [vmem:[%s3 + $0x3c] sm:$0xf]
        %v2917 = vld [vmem:[%s3 + $0x40] sm:$0xf]
        %v2918 = vld [vmem:[%s3 + $0x44] sm:$0xf]
        %v2919 = vld [vmem:[%s4] sm:$0xff]
        %v2920 = vld [vmem:[%s4 + $0x8] sm:$0xff]
        %v2921 = vld [vmem:[%s4 + $0x10] sm:$0xff]
        %v2922 = vld [vmem:[%s4 + $0x18] sm:$0xff]
        %v2923 = vld [vmem:[%s4 + $0x20] sm:$0xff]
        %v2924 = vld [vmem:[%s4 + $0x28] sm:$0xff]
        %v2925 = vld [vmem:[%s4 + $0x30] sm:$0xff]
        %v2926 = vld [vmem:[%s4 + $0x38] sm:$0xff]
        %v2927 = vld [vmem:[%s4 + $0x40] sm:$0xff]
        %v2928 = vld [vmem:[%s4 + $0x48] sm:$0xff]
        %v2929 = vld [vmem:[%s4 + $0x50] sm:$0xff]
        %v2930 = vld [vmem:[%s4 + $0x58] sm:$0xff]
        %v2931 = vld [vmem:[%s4 + $0x60] sm:$0xff]
        %v2932 = vld [vmem:[%s4 + $0x68] sm:$0xff]
        %v2933 = vld [vmem:[%s4 + $0x70] sm:$0xff]
        %v2934 = vld [vmem:[%s4 + $0x78] sm:$0xff]
        %v2935 = vld [vmem:[%s4 + $0x80] sm:$0xff]
        %v2936 = vld [vmem:[%s4 + $0x88] sm:$0xff]
        %2938 = vset.pattern.permute.xlu0 0
        %2939 = vperm.xlu0 %2938, %v2919
        %v2940 = vpop.permute.xlu0 %2939
        %2943 = vset.pattern.permute.xlu0 0
        %2944 = vperm.xlu0 %2943, %v2920
        %v2945 = vpop.permute.xlu0 %2944
        %2948 = vset.pattern.permute.xlu0 0
        %2949 = vperm.xlu0 %2948, %v2921
        %v2950 = vpop.permute.xlu0 %2949
        %2953 = vset.pattern.permute.xlu0 0
        %2954 = vperm.xlu0 %2953, %v2922
        %v2955 = vpop.permute.xlu0 %2954
        %2958 = vset.pattern.permute.xlu0 0
        %2959 = vperm.xlu0 %2958, %v2923
        %v2960 = vpop.permute.xlu0 %2959
        %2963 = vset.pattern.permute.xlu0 0
        %2964 = vperm.xlu0 %2963, %v2924
        %v2965 = vpop.permute.xlu0 %2964
        %2968 = vset.pattern.permute.xlu0 0
        %2969 = vperm.xlu0 %2968, %v2925
        %v2970 = vpop.permute.xlu0 %2969
        %2973 = vset.pattern.permute.xlu0 0
        %2974 = vperm.xlu0 %2973, %v2926
        %v2975 = vpop.permute.xlu0 %2974
        %2978 = vset.pattern.permute.xlu0 0
        %2979 = vperm.xlu0 %2978, %v2927
        %v2980 = vpop.permute.xlu0 %2979
        %2983 = vset.pattern.permute.xlu0 0
        %2984 = vperm.xlu0 %2983, %v2928
        %v2985 = vpop.permute.xlu0 %2984
        %2988 = vset.pattern.permute.xlu0 0
        %2989 = vperm.xlu0 %2988, %v2929
        %v2990 = vpop.permute.xlu0 %2989
        %2993 = vset.pattern.permute.xlu0 0
        %2994 = vperm.xlu0 %2993, %v2930
        %v2995 = vpop.permute.xlu0 %2994
        %2998 = vset.pattern.permute.xlu0 0
        %2999 = vperm.xlu0 %2998, %v2931
        %v3000 = vpop.permute.xlu0 %2999
        %3003 = vset.pattern.permute.xlu0 0
        %3004 = vperm.xlu0 %3003, %v2932
        %v3005 = vpop.permute.xlu0 %3004
        %3008 = vset.pattern.permute.xlu0 0
        %3009 = vperm.xlu0 %3008, %v2933
        %v3010 = vpop.permute.xlu0 %3009
        %3013 = vset.pattern.permute.xlu0 0
        %3014 = vperm.xlu0 %3013, %v2934
        %v3015 = vpop.permute.xlu0 %3014
        %3018 = vset.pattern.permute.xlu0 0
        %3019 = vperm.xlu0 %3018, %v2935
        %v3020 = vpop.permute.xlu0 %3019
        %3023 = vset.pattern.permute.xlu0 0
        %3024 = vperm.xlu0 %3023, %v2936
        %v3025 = vpop.permute.xlu0 %3024
        %v3045 = vunpack.c.l.b16 %v2901
        %v3046 = vunpack.c.l.b16 %v2902
        %v3047 = vunpack.c.l.b16 %v2903
        %v3048 = vunpack.c.l.b16 %v2904
        %v3049 = vunpack.c.l.b16 %v2905
        %v3050 = vunpack.c.l.b16 %v2906
        %v3051 = vunpack.c.l.b16 %v2907
        %v3052 = vunpack.c.l.b16 %v2908
        %v3053 = vunpack.c.l.b16 %v2909
        %v3054 = vunpack.c.l.b16 %v2910
        %v3055 = vunpack.c.l.b16 %v2911
        %v3056 = vunpack.c.l.b16 %v2912
        %v3057 = vunpack.c.l.b16 %v2913
        %v3058 = vunpack.c.l.b16 %v2914
        %v3059 = vunpack.c.l.b16 %v2915
        %v3060 = vunpack.c.l.b16 %v2916
        %v3061 = vunpack.c.l.b16 %v2917
        %v3062 = vunpack.c.l.b16 %v2918
        %v3063 = vpack.c.b16 %v3046, %v3045
        %v3064 = vpack.c.b16 %v3048, %v3047
        %v3065 = vpack.c.b16 %v3050, %v3049
        %v3066 = vpack.c.b16 %v3052, %v3051
        %v3067 = vpack.c.b16 %v3054, %v3053
        %v3068 = vpack.c.b16 %v3056, %v3055
        %v3069 = vpack.c.b16 %v3058, %v3057
        %v3070 = vpack.c.b16 %v3060, %v3059
        %v3071 = vpack.c.b16 %v3062, %v3061
        %vm3072 = vcmask 523264
        %v3074 = vsel %vm3072, %v3063, 0
        %v3077 = vsel %vm3072, %v3064, 0
        %v3080 = vsel %vm3072, %v3065, 0
        %v3083 = vsel %vm3072, %v3066, 0
        %v3086 = vsel %vm3072, %v3067, 0
        %v3089 = vsel %vm3072, %v3068, 0
        %v3092 = vsel %vm3072, %v3069, 0
        %v3095 = vsel %vm3072, %v3070, 0
        %v3098 = vsel %vm3072, %v3071, 0
        %v3101 = vsel %vm3072, %v2893, 0
        %v3104 = vsel %vm3072, %v2894, 0
        %v3107 = vsel %vm3072, %v2895, 0
        %v3110 = vsel %vm3072, %v2896, 0
        %v3113 = vsel %vm3072, %v2897, 0
        %v3116 = vsel %vm3072, %v2898, 0
        %v3119 = vsel %vm3072, %v2899, 0
        %v3122 = vsel %vm3072, %v2900, 0
        %3124 = vmatprep.subr.bf16.mxu0 0
        %3125 = vmatpush1.bf16.xpose.msra.mxu0 %v3122
        %3126 = vmatprep.subr.bf16.mxu0 0
        %3127 = vmatpush1.bf16.xpose.msra.mxu0 %v3119
        %3128 = vmatprep.subr.bf16.mxu0 0
        %3129 = vmatpush1.bf16.xpose.msra.mxu0 %v3116
        %3130 = vmatprep.subr.bf16.mxu0 0
        %3131 = vmatpush1.bf16.xpose.msra.mxu0 %v3113
        %3132 = vmatprep.subr.bf16.mxu0 0
        %3133 = vmatpush1.bf16.xpose.msra.mxu0 %v3110
        %3134 = vmatprep.subr.bf16.mxu0 0
        %3135 = vmatpush1.bf16.xpose.msra.mxu0 %v3107
        %3136 = vmatprep.subr.bf16.mxu0 0
        %3137 = vmatpush1.bf16.xpose.msra.mxu0 %v3104
        %3138 = vmatprep.subr.bf16.mxu0 0
        %3139 = vmatpush1.bf16.xpose.msra.mxu0 %v3101
        %3140 = vmatprep.subr.bf16.mxu0 0
        %3141 = vmatpush2.bf16.xpose.msra.mxu0 0
        %3142 = vmatprep.subr.bf16.mxu0 0
        %3143 = vmatpush2.bf16.xpose.msra.mxu0 0
        %3144 = vmatprep.subr.bf16.mxu0 0
        %3145 = vmatpush2.bf16.xpose.msra.mxu0 0
        %3146 = vmatprep.subr.bf16.mxu0 0
        %3147 = vmatpush2.bf16.xpose.msra.mxu0 0
        %3148 = vmatprep.subr.bf16.mxu0 0
        %3149 = vmatpush2.bf16.xpose.msra.mxu0 0
        %3150 = vmatprep.subr.bf16.mxu0 0
        %3151 = vmatpush2.bf16.xpose.msra.mxu0 0
        %3152 = vmatprep.subr.bf16.mxu0 0
        %3153 = vmatpush2.bf16.xpose.msra.mxu0 0
        %3154 = vmatprep.subr.bf16.mxu0 0
        %3155 = vmatpush2.bf16.xpose.msra.mxu0 0
        %3156 = vmatprep.mubr.bf16.mxu0 0
        %3157 = vmatmul.mubr.bf16.gmra.mxu0 %v3074
        %v3158 = vpop.f32.mrf.mxu0
        %v3159 = vadd.f32 %v2940, %v3158
        %v3160 = vpop.f32.mrf.mxu0
        %v3161 = vpop.f32.mrf.mxu0
        %v3162 = vadd.f32 %v2945, %v3161
        %v3163 = vpop.f32.mrf.mxu0
        %3164 = vmatprep.mubr.bf16.mxu0 0
        %3165 = vmatmul.mubr.bf16.gmra.mxu0 %v3077
        %v3166 = vpop.f32.mrf.mxu0
        %v3167 = vadd.f32 %v2950, %v3166
        %v3168 = vpop.f32.mrf.mxu0
        %v3169 = vpop.f32.mrf.mxu0
        %v3170 = vadd.f32 %v2955, %v3169
        %v3171 = vpop.f32.mrf.mxu0
        %3172 = vmatprep.mubr.bf16.mxu0 0
        %3173 = vmatmul.mubr.bf16.gmra.mxu0 %v3080
        %v3174 = vpop.f32.mrf.mxu0
        %v3175 = vadd.f32 %v2960, %v3174
        %v3176 = vpop.f32.mrf.mxu0
        %v3177 = vpop.f32.mrf.mxu0
        %v3178 = vadd.f32 %v2965, %v3177
        %v3179 = vpop.f32.mrf.mxu0
        %3180 = vmatprep.mubr.bf16.mxu0 0
        %3181 = vmatmul.mubr.bf16.gmra.mxu0 %v3083
        %v3182 = vpop.f32.mrf.mxu0
        %v3183 = vadd.f32 %v2970, %v3182
        %v3184 = vpop.f32.mrf.mxu0
        %v3185 = vpop.f32.mrf.mxu0
        %v3186 = vadd.f32 %v2975, %v3185
        %v3187 = vpop.f32.mrf.mxu0
        %3188 = vmatprep.mubr.bf16.mxu0 0
        %3189 = vmatmul.mubr.bf16.gmra.mxu0 %v3086
        %v3190 = vpop.f32.mrf.mxu0
        %v3191 = vadd.f32 %v2980, %v3190
        %v3192 = vpop.f32.mrf.mxu0
        %v3193 = vpop.f32.mrf.mxu0
        %v3194 = vadd.f32 %v2985, %v3193
        %v3195 = vpop.f32.mrf.mxu0
        %3196 = vmatprep.mubr.bf16.mxu0 0
        %3197 = vmatmul.mubr.bf16.gmra.mxu0 %v3089
        %v3198 = vpop.f32.mrf.mxu0
        %v3199 = vadd.f32 %v2990, %v3198
        %v3200 = vpop.f32.mrf.mxu0
        %v3201 = vpop.f32.mrf.mxu0
        %v3202 = vadd.f32 %v2995, %v3201
        %v3203 = vpop.f32.mrf.mxu0
        %3204 = vmatprep.mubr.bf16.mxu0 0
        %3205 = vmatmul.mubr.bf16.gmra.mxu0 %v3092
        %v3206 = vpop.f32.mrf.mxu0
        %v3207 = vadd.f32 %v3000, %v3206
        %v3208 = vpop.f32.mrf.mxu0
        %v3209 = vpop.f32.mrf.mxu0
        %v3210 = vadd.f32 %v3005, %v3209
        %v3211 = vpop.f32.mrf.mxu0
        %3212 = vmatprep.mubr.bf16.mxu0 0
        %3213 = vmatmul.mubr.bf16.gmra.mxu0 %v3095
        %v3214 = vpop.f32.mrf.mxu0
        %v3215 = vadd.f32 %v3010, %v3214
        %v3216 = vpop.f32.mrf.mxu0
        %v3217 = vpop.f32.mrf.mxu0
        %v3218 = vadd.f32 %v3015, %v3217
        %v3219 = vpop.f32.mrf.mxu0
        %3220 = vmatprep.mubr.bf16.mxu0 0
        %3221 = vmatmul.mubr.bf16.gmra.mxu0 %v3098
        %v3222 = vpop.f32.mrf.mxu0
        %v3223 = vadd.f32 %v3020, %v3222
        %v3224 = vpop.f32.mrf.mxu0
        %v3225 = vpop.f32.mrf.mxu0
        %v3226 = vadd.f32 %v3025, %v3225
        %v3227 = vpop.f32.mrf.mxu0
        %3228 = vdwg.mxu0
        %3229 = vst [vmem:[%s227] sm:$0xff] %v3159
        %3230 = vst [vmem:[%s227 + $0x8] sm:$0xff] %v3162
        %3231 = vst [vmem:[%s227 + $0x10] sm:$0xff] %v3167
        %3232 = vst [vmem:[%s227 + $0x18] sm:$0xff] %v3170
        %3233 = vst [vmem:[%s227 + $0x20] sm:$0xff] %v3175
        %3234 = vst [vmem:[%s227 + $0x28] sm:$0xff] %v3178
        %3235 = vst [vmem:[%s227 + $0x30] sm:$0xff] %v3183
        %3236 = vst [vmem:[%s227 + $0x38] sm:$0xff] %v3186
        %3237 = vst [vmem:[%s227 + $0x40] sm:$0xff] %v3191
        %3238 = vst [vmem:[%s227 + $0x48] sm:$0xff] %v3194
        %3239 = vst [vmem:[%s227 + $0x50] sm:$0xff] %v3199
        %3240 = vst [vmem:[%s227 + $0x58] sm:$0xff] %v3202
        %3241 = vst [vmem:[%s227 + $0x60] sm:$0xff] %v3207
        %3242 = vst [vmem:[%s227 + $0x68] sm:$0xff] %v3210
        %3243 = vst [vmem:[%s227 + $0x70] sm:$0xff] %v3215
        %3244 = vst [vmem:[%s227 + $0x78] sm:$0xff] %v3218
        %3245 = vst [vmem:[%s227 + $0x80] sm:$0xff] %v3223
        %3246 = vst [vmem:[%s227 + $0x88] sm:$0xff] %v3226
        %s3247 = sand.u32 %s148, 1
        %s3248 = sand.u32 %s148, 1
        %s3249 = smul.addr %s3248, 144
        %s3250 = scalar_lea.vmem [#allocation4], %s3249
        // Predicated region
        $region45: #{upmask_forward.1} parent=39 // pred_check
          %p3251 = pneg %p158
        $region46: #{upmask_forward.1} parent=39 // pred_check_branch
          %3253 = sbr.rel (%p3251) target = $region48
        $region47: #{upmask_forward.1} parent=39 // pred_region
          %s3254 = smul.addr %s20, 36
          %s3255 = sadd.s32 %s21, %s3254
          %s3256 = smul.addr %s3255, 8
          %s3257 = scalar_lea.vmem %s5, %s3256
          // Predicated region
          $region49: #{upmask_forward.1} parent=47 // pred_check
            _
          $region50: #{upmask_forward.1} parent=47 // pred_check_branch
            %3259 = sbr.rel (0) target = $region52
          $region51: #{upmask_forward.1} parent=47 // pred_region
            // Predicated region
            $region53: #{upmask_forward.1} parent=51 // pred_check
              _
            $region54: #{upmask_forward.1} parent=51 // pred_check_branch
              %3261 = sbr.rel (0) target = $region56
            $region55: #{upmask_forward.1} parent=51 // pred_region
              // Predicated region
              $region68: #{upmask_forward.1} parent=55 // pred_check
                _
              $region69: #{upmask_forward.1} parent=55 // pred_check_branch
                %3311 = sbr.rel (0) target = $region71
              $region70: #{upmask_forward.1} parent=55 // pred_region
                loop: start=0, step=1, limit=1
                $region72: #{upmask_forward.1} parent=70 // loop_pre_header
                  _
                $region73: #{upmask_forward.1} parent=70 // loop_header
                  %s3313 = sphi 0, %s3317
                  %p3314 = scmp.ge.s32.totalorder %s3313, 1
                  %s3318 = sphi %s3250, %s3250
                  %s3319 = sphi %s3257, %s3257
                $region74: #{upmask_forward.1} parent=70 // loop_header_branch
                  %3316 = sbr.rel (%p3314) target = $region78
                $region75: #{upmask_forward.1} parent=70 // loop_body
                  %v3320 = vld [vmem:[%s3318] sm:$0xff]
                  %3321 = vst [vmem:[%s3319] sm:$0xff] %v3320
                  %v3322 = vld [vmem:[%s3318 + $0x8] sm:$0xff]
                  %3323 = vst [vmem:[%s3319 + $0x10] sm:$0xff] %v3322
                  %v3324 = vld [vmem:[%s3318 + $0x10] sm:$0xff]
                  %3325 = vst [vmem:[%s3319 + $0x20] sm:$0xff] %v3324
                  %v3326 = vld [vmem:[%s3318 + $0x18] sm:$0xff]
                  %3327 = vst [vmem:[%s3319 + $0x30] sm:$0xff] %v3326
                  %v3328 = vld [vmem:[%s3318 + $0x20] sm:$0xff]
                  %3329 = vst [vmem:[%s3319 + $0x40] sm:$0xff] %v3328
                  %v3330 = vld [vmem:[%s3318 + $0x28] sm:$0xff]
                  %3331 = vst [vmem:[%s3319 + $0x50] sm:$0xff] %v3330
                  %v3332 = vld [vmem:[%s3318 + $0x30] sm:$0xff]
                  %3333 = vst [vmem:[%s3319 + $0x60] sm:$0xff] %v3332
                  %v3334 = vld [vmem:[%s3318 + $0x38] sm:$0xff]
                  %3335 = vst [vmem:[%s3319 + $0x70] sm:$0xff] %v3334
                  %v3336 = vld [vmem:[%s3318 + $0x40] sm:$0xff]
                  %3337 = vst [vmem:[%s3319 + $0x80] sm:$0xff] %v3336
                  %v3338 = vld [vmem:[%s3318 + $0x48] sm:$0xff]
                  %3339 = vst [vmem:[%s3319 + $0x90] sm:$0xff] %v3338
                  %v3340 = vld [vmem:[%s3318 + $0x50] sm:$0xff]
                  %3341 = vst [vmem:[%s3319 + $0xa0] sm:$0xff] %v3340
                  %v3342 = vld [vmem:[%s3318 + $0x58] sm:$0xff]
                  %3343 = vst [vmem:[%s3319 + $0xb0] sm:$0xff] %v3342
                  %v3344 = vld [vmem:[%s3318 + $0x60] sm:$0xff]
                  %3345 = vst [vmem:[%s3319 + $0xc0] sm:$0xff] %v3344
                  %v3346 = vld [vmem:[%s3318 + $0x68] sm:$0xff]
                  %3347 = vst [vmem:[%s3319 + $0xd0] sm:$0xff] %v3346
                  %v3348 = vld [vmem:[%s3318 + $0x70] sm:$0xff]
                  %3349 = vst [vmem:[%s3319 + $0xe0] sm:$0xff] %v3348
                  %v3350 = vld [vmem:[%s3318 + $0x78] sm:$0xff]
                  %3351 = vst [vmem:[%s3319 + $0xf0] sm:$0xff] %v3350
                  %v3352 = vld [vmem:[%s3318 + $0x80] sm:$0xff]
                  %3353 = vst [vmem:[%s3319 + $0x100] sm:$0xff] %v3352
                  %v3354 = vld [vmem:[%s3318 + $0x88] sm:$0xff]
                  %3355 = vst [vmem:[%s3319 + $0x110] sm:$0xff] %v3354
                $region76: #{upmask_forward.1} parent=70 // loop_footer
                  %s3317 = sadd.s32 1, %s3313
                $region77: #{upmask_forward.1} parent=70 // loop_footer_branch
                  %3312 = sbr.rel target = $region73
                $region78: #{upmask_forward.1} parent=70 // loop_exit
                  _
              $region71: #{upmask_forward.1} parent=55 // pred_fallthru
                _
              // Predicated region
              $region79: #{upmask_forward.1} parent=55 // pred_check
                _
              $region80: #{upmask_forward.1} parent=55 // pred_check_branch
                %3357 = sbr.rel target = $region82
              $region81: #{upmask_forward.1} parent=55 // pred_region
                _
              $region82: #{upmask_forward.1} parent=55 // pred_fallthru
                _
            $region56: #{upmask_forward.1} parent=51 // pred_fallthru
              _
            // Predicated region
            $region57: #{upmask_forward.1} parent=51 // pred_check
              _
            $region58: #{upmask_forward.1} parent=51 // pred_check_branch
              %3263 = sbr.rel target = $region60
            $region59: #{upmask_forward.1} parent=51 // pred_region
              %s3265 = ssub.s32 256, 1
              loop: start=0, step=1, limit=1
              $region61: #{upmask_forward.1} parent=59 // loop_pre_header
                _
              $region62: #{upmask_forward.1} parent=59 // loop_header
                %s3267 = sphi 0, %s3271
                %p3268 = scmp.ge.s32.totalorder %s3267, 1
                %s3272 = sphi %s3250, %s3250
                %s3273 = sphi %s3257, %s3257
              $region63: #{upmask_forward.1} parent=59 // loop_header_branch
                %3270 = sbr.rel (%p3268) target = $region67
              $region64: #{upmask_forward.1} parent=59 // loop_body
                %v3274 = vld [vmem:[%s3272] sm:%s3265]
                %3275 = vst [vmem:[%s3273] sm:%s3265] %v3274
                %v3276 = vld [vmem:[%s3272 + $0x8] sm:%s3265]
                %3277 = vst [vmem:[%s3273 + $0x10] sm:%s3265] %v3276
                %v3278 = vld [vmem:[%s3272 + $0x10] sm:%s3265]
                %3279 = vst [vmem:[%s3273 + $0x20] sm:%s3265] %v3278
                %v3280 = vld [vmem:[%s3272 + $0x18] sm:%s3265]
                %3281 = vst [vmem:[%s3273 + $0x30] sm:%s3265] %v3280
                %v3282 = vld [vmem:[%s3272 + $0x20] sm:%s3265]
                %3283 = vst [vmem:[%s3273 + $0x40] sm:%s3265] %v3282
                %v3284 = vld [vmem:[%s3272 + $0x28] sm:%s3265]
                %3285 = vst [vmem:[%s3273 + $0x50] sm:%s3265] %v3284
                %v3286 = vld [vmem:[%s3272 + $0x30] sm:%s3265]
                %3287 = vst [vmem:[%s3273 + $0x60] sm:%s3265] %v3286
                %v3288 = vld [vmem:[%s3272 + $0x38] sm:%s3265]
                %3289 = vst [vmem:[%s3273 + $0x70] sm:%s3265] %v3288
                %v3290 = vld [vmem:[%s3272 + $0x40] sm:%s3265]
                %3291 = vst [vmem:[%s3273 + $0x80] sm:%s3265] %v3290
                %v3292 = vld [vmem:[%s3272 + $0x48] sm:%s3265]
                %3293 = vst [vmem:[%s3273 + $0x90] sm:%s3265] %v3292
                %v3294 = vld [vmem:[%s3272 + $0x50] sm:%s3265]
                %3295 = vst [vmem:[%s3273 + $0xa0] sm:%s3265] %v3294
                %v3296 = vld [vmem:[%s3272 + $0x58] sm:%s3265]
                %3297 = vst [vmem:[%s3273 + $0xb0] sm:%s3265] %v3296
                %v3298 = vld [vmem:[%s3272 + $0x60] sm:%s3265]
                %3299 = vst [vmem:[%s3273 + $0xc0] sm:%s3265] %v3298
                %v3300 = vld [vmem:[%s3272 + $0x68] sm:%s3265]
                %3301 = vst [vmem:[%s3273 + $0xd0] sm:%s3265] %v3300
                %v3302 = vld [vmem:[%s3272 + $0x70] sm:%s3265]
                %3303 = vst [vmem:[%s3273 + $0xe0] sm:%s3265] %v3302
                %v3304 = vld [vmem:[%s3272 + $0x78] sm:%s3265]
                %3305 = vst [vmem:[%s3273 + $0xf0] sm:%s3265] %v3304
                %v3306 = vld [vmem:[%s3272 + $0x80] sm:%s3265]
                %3307 = vst [vmem:[%s3273 + $0x100] sm:%s3265] %v3306
                %v3308 = vld [vmem:[%s3272 + $0x88] sm:%s3265]
                %3309 = vst [vmem:[%s3273 + $0x110] sm:%s3265] %v3308
              $region65: #{upmask_forward.1} parent=59 // loop_footer
                %s3271 = sadd.s32 1, %s3267
              $region66: #{upmask_forward.1} parent=59 // loop_footer_branch
                %3266 = sbr.rel target = $region62
              $region67: #{upmask_forward.1} parent=59 // loop_exit
                _
            $region60: #{upmask_forward.1} parent=51 // pred_fallthru
              _
          $region52: #{upmask_forward.1} parent=47 // pred_fallthru
            _
          %3358 = vnop
        $region48: #{upmask_forward.1} parent=39 // pred_fallthru
          _
      $region40: #{upmask_forward.1} parent=5 // pred_fallthru
        _
      %p3359 = scmp.le.s32.totalorder 2, %s11
      // Predicated region
      $region83: #{upmask_forward.1} parent=5 // pred_check
        %p3360 = pneg %p3359
      $region84: #{upmask_forward.1} parent=5 // pred_check_branch
        %3362 = sbr.rel (%p3360) target = $region86
      $region85: #{upmask_forward.1} parent=5 // pred_region
        %s3363 = ssub.s32 %s11, 2
        // Predicated region
        $region87: #{upmask_forward.1} parent=85 // pred_check
          %p3364 = pneg %p164
        $region88: #{upmask_forward.1} parent=85 // pred_check_branch
          %3366 = sbr.rel (%p3364) target = $region90
        $region89: #{upmask_forward.1} parent=85 // pred_region
          %s3367 = sand.u32 %s149, 1
          %s3368 = sand.u32 %s149, 1
          %s3369 = smul.addr %s3368, 144
          %s3370 = scalar_lea.vmem [#allocation4], %s3369
        $region90: #{upmask_forward.1} parent=85 // pred_fallthru
          _
      $region86: #{upmask_forward.1} parent=5 // pred_fallthru
        _
    $region6: #{upmask_forward.1} parent=1 // loop_footer
      %s15 = sadd.s32 1, %s11
    $region7: #{upmask_forward.1} parent=1 // loop_footer_branch
      %10 = sbr.rel target = $region3
    $region8: #{upmask_forward.1} parent=1 // loop_exit
      _

</llo_original>
